<compile_context>
chip_gen: v5e
topology: v5e:2x2
jax: 0.10.0
libtpu: 0.0.40
codegen_flags: <defaults>
</compile_context>

<pallas_src>
import jax
import jax.numpy as jnp
import numpy as np
from jax import lax
from jax.experimental import pallas as pl
from jax.experimental.pallas import tpu as pltpu

PRE_NMS_TOPK = 1024  # pre-NMS candidate cap (review: top-k instead of argsort)


# ----------------------------------------------------------------------------
# Pallas kernel: greedy NMS keep-mask over confidence-sorted candidates.
# ----------------------------------------------------------------------------
def _make_nms_kernel(iou_thres, n_pad):
    iou_thres = float(iou_thres)

    def kernel(cnt_ref, cols_ref, cols_t_ref, keep_ref, mask_ref):
        # cnt_ref   : SMEM (B,) int32    -- number of valid candidates per image
        # cols_ref  : VMEM (8, n_pad)    -- rows: x1,y1,x2,y2,area,valid,0,0 (lane = box)
        # cols_t_ref: VMEM (n_pad, 8)    -- same data transposed (sublane = box)
        # keep_ref  : VMEM (1, n_pad)    -- output keep mask (1.0 keep / 0.0 drop)
        # mask_ref  : VMEM (n_pad,n_pad) -- scratch: mask[i,j] = 1 iff box i (if kept)
        #                                  suppresses later box j (IoU > thr, j > i)
        b = pl.program_id(0)
        n = cnt_ref[b]

        # ---- one-shot, fully vectorized pairwise decision-mask precompute ----
        x1r = cols_ref[0:1, :]      # (1, n_pad) -- candidate j along lanes
        y1r = cols_ref[1:2, :]
        x2r = cols_ref[2:3, :]
        y2r = cols_ref[3:4, :]
        ar_r = cols_ref[4:5, :]
        valid = cols_ref[5:6, :]

        x1c = cols_t_ref[:, 0:1]    # (n_pad, 1) -- suppressor i along sublanes
        y1c = cols_t_ref[:, 1:2]
        x2c = cols_t_ref[:, 2:3]
        y2c = cols_t_ref[:, 3:4]
        ar_c = cols_t_ref[:, 4:5]

        xx1 = jnp.maximum(x1c, x1r)
        yy1 = jnp.maximum(y1c, y1r)
        xx2 = jnp.minimum(x2c, x2r)
        yy2 = jnp.minimum(y2c, y2r)
        iw = jnp.maximum(xx2 - xx1, 0.0)
        ih = jnp.maximum(yy2 - yy1, 0.0)
        inter = iw * ih
        union = ar_c + ar_r - inter + 1e-7
        overlap = inter > iou_thres * union             # IoU > thr, no division

        row_idx = lax.broadcasted_iota(jnp.int32, (n_pad, n_pad), 0)
        col_idx = lax.broadcasted_iota(jnp.int32, (n_pad, n_pad), 1)
        later = col_idx > row_idx                        # only suppress later boxes
        mask_ref[...] = jnp.where(overlap & later, 1.0, 0.0).astype(jnp.float32)

        # ---- serial greedy pass: suppressor-driven forward update ----
        lane1 = lax.broadcasted_iota(jnp.int32, (1, n_pad), 1)

        def body(i, keep):
            # Cheap dynamic-sublane slice (address offset), 3 vregs at n_pad=384.
            row_i = mask_ref[pl.ds(i, 1), :]                       # (1, n_pad)
            # keep[i] as a (1,1) value via a 3-vreg select + lane reduce.
            keep_i = jnp.max(jnp.where(lane1 == i, keep, 0.0),
                             axis=-1, keepdims=True)               # (1, 1)
            # If box i is still kept, drop every later box it overlaps.
            return keep * (1.0 - keep_i * row_i)

        keep = lax.fori_loop(0, n, body, valid)
        keep_ref[...] = keep

    return kernel


def _nms_keep_pallas(counts, cols, cols_t, iou_thres):
    """counts: (B,) int32, cols: (B,8,n_pad), cols_t: (B,n_pad,8) -> keep (B,n_pad) f32."""
    B, _, n_pad = cols.shape
    kernel = _make_nms_kernel(iou_thres, n_pad)
    keep = pl.pallas_call(
        kernel,
        out_shape=jax.ShapeDtypeStruct((B, 1, n_pad), jnp.float32),
        grid_spec=pltpu.PrefetchScalarGridSpec(
            num_scalar_prefetch=1,
            grid=(B,),
            in_specs=[
                pl.BlockSpec((None, 8, n_pad), lambda b, cnt: (b, 0, 0)),
                pl.BlockSpec((None, n_pad, 8), lambda b, cnt: (b, 0, 0)),
            ],
            out_specs=pl.BlockSpec((None, 1, n_pad), lambda b, cnt: (b, 0, 0)),
            scratch_shapes=[pltpu.VMEM((n_pad, n_pad), jnp.float32)],
        ),
        compiler_params=pltpu.CompilerParams(
            dimension_semantics=("parallel",),   # batch shards across v7x's 2 TCs
        ),
    )(counts, cols, cols_t)
    return keep[:, 0, :]


# ----------------------------------------------------------------------------
# XLA-side pre/post processing (decode, filter, top-k, assemble detections).
# ----------------------------------------------------------------------------
def _xywh2xyxy(x):
    cx, cy, w, h = x[..., 0], x[..., 1], x[..., 2], x[..., 3]
    return jnp.stack([cx - w * 0.5, cy - h * 0.5, cx + w * 0.5, cy + h * 0.5],
                     axis=-1)


def _prepare(prediction, conf_thres, classes, pre_nms_topk=PRE_NMS_TOPK,
             max_wh=7680.0):
    """Decode, filter, class-offset, top-k by confidence, pack for the kernel."""
    B, N, _ = prediction.shape
    boxes = _xywh2xyxy(prediction[..., :4])
    obj = prediction[..., 4]
    cls_conf = prediction[..., 5:] * obj[..., None]          # conf = obj * cls
    conf = jnp.max(cls_conf, axis=-1)
    cls_id = jnp.argmax(cls_conf, axis=-1)
    valid = (obj > conf_thres) & (conf > conf_thres)
    if classes is not None:
        valid = valid & jnp.isin(cls_id, jnp.asarray(classes, dtype=cls_id.dtype))

    # Top-k by confidence (descending) instead of a full argsort; invalid last.
    k_eff = min(N, pre_nms_topk)
    n_pad = ((k_eff + 127) // 128) * 128
    key = jnp.where(valid, conf, -jnp.inf)
    _, order = lax.top_k(key, k_eff)                          # (B, k_eff)
    boxes_s = jnp.take_along_axis(boxes, order[..., None], axis=1)
    conf_s = jnp.take_along_axis(conf, order, axis=1)
    cls_s = jnp.take_along_axis(cls_id, order, axis=1).astype(jnp.float32)
    valid_s = jnp.take_along_axis(valid, order, axis=1)

    # Pad the candidate axis to a multiple of 128 (lane-dense slab).
    pad = n_pad - k_eff
    boxes_s = jnp.pad(boxes_s, ((0, 0), (0, pad), (0, 0)))
    conf_s = jnp.pad(conf_s, ((0, 0), (0, pad)))
    cls_s = jnp.pad(cls_s, ((0, 0), (0, pad)))
    valid_f = jnp.pad(valid_s.astype(jnp.float32), ((0, 0), (0, pad)))

    # Class-aware NMS via per-class coordinate offset (same trick as torchvision path).
    boxes_nms = boxes_s + (cls_s * max_wh)[..., None]
    area = ((boxes_nms[..., 2] - boxes_nms[..., 0]) *
            (boxes_nms[..., 3] - boxes_nms[..., 1]))
    zeros = jnp.zeros_like(valid_f)
    cols = jnp.stack(
        [boxes_nms[..., 0], boxes_nms[..., 1],
         boxes_nms[..., 2], boxes_nms[..., 3],
         area, valid_f, zeros, zeros], axis=1)                # (B, 8, n_pad)
    cols_t = jnp.transpose(cols, (0, 2, 1))                   # (B, n_pad, 8)
    counts = jnp.sum(valid_f, axis=-1).astype(jnp.int32)      # (B,)
    return cols, cols_t, counts, boxes_s, conf_s, cls_s


def non_max_suppression_pallas(prediction, conf_thres=0.25, iou_thres=0.45,
                               classes=None, max_det=300,
                               pre_nms_topk=PRE_NMS_TOPK):
    """prediction: (B, N, 5+nc) -> (dets (B, max_det, 6), num_dets (B,) int32)."""
    cols, cols_t, counts, boxes_s, conf_s, cls_s = _prepare(
        prediction, conf_thres, classes, pre_nms_topk)
    n_pad = cols.shape[-1]
    max_det = min(max_det, n_pad)

    keep = _nms_keep_pallas(counts, cols, cols_t, iou_thres) > 0.5  # (B, n_pad)

    # Compact kept (already confidence-sorted) detections into fixed slots
    # with a top-k instead of a full argsort.
    idx = jnp.arange(n_pad, dtype=jnp.int32)
    sel_key = jnp.where(keep, idx, n_pad + idx)               # smaller = earlier kept
    _, sel = lax.top_k(-sel_key, max_det)                     # ascending sel_key order
    g_boxes = jnp.take_along_axis(boxes_s, sel[..., None], axis=1)
    g_conf = jnp.take_along_axis(conf_s, sel, axis=1)
    g_cls = jnp.take_along_axis(cls_s, sel, axis=1)

    n_kept = jnp.sum(keep, axis=-1).astype(jnp.int32)
    det_valid = jnp.arange(max_det)[None, :] < n_kept[:, None]
    dets = jnp.concatenate([g_boxes, g_conf[..., None], g_cls[..., None]], axis=-1)
    dets = jnp.where(det_valid[..., None], dets, 0.0)
    return dets, jnp.minimum(n_kept, max_det)


class NMSPallas:
    """Mirror of the PyTorch `NMS` module."""
    conf = 0.25
    iou = 0.45
    classes = None

    def __call__(self, x):
        return non_max_suppression_pallas(
            x[0], conf_thres=self.conf, iou_thres=self.iou, classes=self.classes)


# ----------------------------------------------------------------------------
# Self-test
# ----------------------------------------------------------------------------
if __name__ == "__main__":
    B, N, NC = 2, 384, 16
    key = jax.random.PRNGKey(0)
    k1, k2, k3, k4 = jax.random.split(key, 4)
    cxcy = jax.random.uniform(k1, (B, N, 2), minval=32.0, maxval=608.0)
    wh = jax.random.uniform(k2, (B, N, 2), minval=8.0, maxval=160.0)
    obj = jax.random.uniform(k3, (B, N, 1), minval=0.0, maxval=1.0)
    cls = jax.random.uniform(k4, (B, N, NC), minval=0.0, maxval=1.0)
    pred = jnp.concatenate([cxcy, wh, obj, cls], axis=-1).astype(jnp.float32)

    module = NMSPallas()
    dets, n_kept = module((pred,))
    dets = jax.block_until_ready(dets)
    n_kept = jax.block_until_ready(n_kept)

    # Validate the Pallas keep mask against a pure-numpy greedy NMS reference.
    cols, cols_t, counts, _, _, _ = _prepare(pred, NMSPallas.conf, None)
    keep = jax.block_until_ready(
        _nms_keep_pallas(counts, cols, cols_t, NMSPallas.iou))
    cols_np = np.asarray(cols)
    counts_np = np.asarray(counts)
    keep_np = np.asarray(keep) > 0.5
    n_pad = cols.shape[-1]

    def ref_keep(cols_b, n, thr):
        cols_b = np.asarray(cols_b, dtype=np.float32)
        x1, y1, x2, y2, area, valid = (cols_b[r] for r in range(6))
        thr = np.float32(thr)
        eps = np.float32(1e-7)
        zero = np.float32(0.0)
        k = valid > 0.5
        for i in range(n):
            if not k[i]:
                continue
            for j in range(i):
                if not k[j]:
                    continue
                iw = max(min(x2[i], x2[j]) - max(x1[i], x1[j]), zero)
                ih = max(min(y2[i], y2[j]) - max(y1[i], y1[j]), zero)
                inter = iw * ih
                union = area[i] + area[j] - inter + eps
                if inter > thr * union:
                    k[i] = False
                    break
        return k

    for b in range(B):
        rk = ref_keep(cols_np[b], int(counts_np[b]), NMSPallas.iou)
        assert np.array_equal(rk, keep_np[b]), f"keep mask mismatch for image {b}"

    assert dets.shape == (B, min(300, n_pad), 6)
    assert int(np.asarray(n_kept).sum()) > 0, "expected at least one detection"
    print("KERNEL_OK")
</pallas_src>

<mosaic_0001>
module attributes {stable_mosaic.version = 11 : i64} {
  func.func @kernel(%arg0: i32, %arg1: memref<2xi32, #tpu.memory_space<smem>>, %arg2: memref<1x8x384xf32, #tpu.memory_space<vmem>>, %arg3: memref<1x384x8xf32, #tpu.memory_space<vmem>>, %arg4: memref<1x1x384xf32, #tpu.memory_space<vmem>>, %arg5: memref<384x384xf32, #tpu.memory_space<vmem>>) attributes {dimension_semantics = [#tpu.dimension_semantics<parallel>], iteration_bounds = array<i64: 2>, scalar_prefetch = 1 : i64, scratch_operands = 1 : i64, tpu.core_type = #tpu.core_type<tc>, window_params = [{transform_indices = @transform_0, window_bounds = array<i64: 1, 8, 384>}, {transform_indices = @transform_1, window_bounds = array<i64: 1, 384, 8>}, {transform_indices = @transform_2, window_bounds = array<i64: 1, 1, 384>}]} {
    %0 = arith.index_cast %arg0 : i32 to index
    %1 = memref.load %arg1[%0] : memref<2xi32, #tpu.memory_space<smem>>
    %c0 = arith.constant 0 : index
    %c0_0 = arith.constant 0 : index
    %c0_1 = arith.constant 0 : index
    %2 = vector.load %arg2[%c0, %c0_0, %c0_1] : memref<1x8x384xf32, #tpu.memory_space<vmem>>, vector<1x1x384xf32>
    %3 = vector.shape_cast %2 : vector<1x1x384xf32> to vector<1x384xf32>
    %c0_2 = arith.constant 0 : index
    %c1 = arith.constant 1 : index
    %c0_3 = arith.constant 0 : index
    %4 = vector.load %arg2[%c0_2, %c1, %c0_3] : memref<1x8x384xf32, #tpu.memory_space<vmem>>, vector<1x1x384xf32>
    %5 = vector.shape_cast %4 : vector<1x1x384xf32> to vector<1x384xf32>
    %c0_4 = arith.constant 0 : index
    %c2 = arith.constant 2 : index
    %c0_5 = arith.constant 0 : index
    %6 = vector.load %arg2[%c0_4, %c2, %c0_5] : memref<1x8x384xf32, #tpu.memory_space<vmem>>, vector<1x1x384xf32>
    %7 = vector.shape_cast %6 : vector<1x1x384xf32> to vector<1x384xf32>
    %c0_6 = arith.constant 0 : index
    %c3 = arith.constant 3 : index
    %c0_7 = arith.constant 0 : index
    %8 = vector.load %arg2[%c0_6, %c3, %c0_7] : memref<1x8x384xf32, #tpu.memory_space<vmem>>, vector<1x1x384xf32>
    %9 = vector.shape_cast %8 : vector<1x1x384xf32> to vector<1x384xf32>
    %c0_8 = arith.constant 0 : index
    %c4 = arith.constant 4 : index
    %c0_9 = arith.constant 0 : index
    %10 = vector.load %arg2[%c0_8, %c4, %c0_9] : memref<1x8x384xf32, #tpu.memory_space<vmem>>, vector<1x1x384xf32>
    %11 = vector.shape_cast %10 : vector<1x1x384xf32> to vector<1x384xf32>
    %c0_10 = arith.constant 0 : index
    %c5 = arith.constant 5 : index
    %c0_11 = arith.constant 0 : index
    %12 = vector.load %arg2[%c0_10, %c5, %c0_11] : memref<1x8x384xf32, #tpu.memory_space<vmem>>, vector<1x1x384xf32>
    %13 = vector.shape_cast %12 : vector<1x1x384xf32> to vector<1x384xf32>
    %c0_12 = arith.constant 0 : index
    %c0_13 = arith.constant 0 : index
    %c0_14 = arith.constant 0 : index
    %14 = vector.load %arg3[%c0_12, %c0_13, %c0_14] : memref<1x384x8xf32, #tpu.memory_space<vmem>>, vector<1x384x1xf32>
    %15 = vector.shape_cast %14 : vector<1x384x1xf32> to vector<384x1xf32>
    %c0_15 = arith.constant 0 : index
    %c0_16 = arith.constant 0 : index
    %c1_17 = arith.constant 1 : index
    %16 = vector.load %arg3[%c0_15, %c0_16, %c1_17] : memref<1x384x8xf32, #tpu.memory_space<vmem>>, vector<1x384x1xf32>
    %17 = vector.shape_cast %16 : vector<1x384x1xf32> to vector<384x1xf32>
    %c0_18 = arith.constant 0 : index
    %c0_19 = arith.constant 0 : index
    %c2_20 = arith.constant 2 : index
    %18 = vector.load %arg3[%c0_18, %c0_19, %c2_20] : memref<1x384x8xf32, #tpu.memory_space<vmem>>, vector<1x384x1xf32>
    %19 = vector.shape_cast %18 : vector<1x384x1xf32> to vector<384x1xf32>
    %c0_21 = arith.constant 0 : index
    %c0_22 = arith.constant 0 : index
    %c3_23 = arith.constant 3 : index
    %20 = vector.load %arg3[%c0_21, %c0_22, %c3_23] : memref<1x384x8xf32, #tpu.memory_space<vmem>>, vector<1x384x1xf32>
    %21 = vector.shape_cast %20 : vector<1x384x1xf32> to vector<384x1xf32>
    %c0_24 = arith.constant 0 : index
    %c0_25 = arith.constant 0 : index
    %c4_26 = arith.constant 4 : index
    %22 = vector.load %arg3[%c0_24, %c0_25, %c4_26] : memref<1x384x8xf32, #tpu.memory_space<vmem>>, vector<1x384x1xf32>
    %23 = vector.shape_cast %22 : vector<1x384x1xf32> to vector<384x1xf32>
    %24 = vector.broadcast %15 : vector<384x1xf32> to vector<384x384xf32>
    %25 = vector.broadcast %3 : vector<1x384xf32> to vector<384x384xf32>
    %26 = arith.maximumf %24, %25 : vector<384x384xf32>
    %27 = vector.broadcast %17 : vector<384x1xf32> to vector<384x384xf32>
    %28 = vector.broadcast %5 : vector<1x384xf32> to vector<384x384xf32>
    %29 = arith.maximumf %27, %28 : vector<384x384xf32>
    %30 = vector.broadcast %19 : vector<384x1xf32> to vector<384x384xf32>
    %31 = vector.broadcast %7 : vector<1x384xf32> to vector<384x384xf32>
    %32 = arith.minimumf %30, %31 : vector<384x384xf32>
    %33 = vector.broadcast %21 : vector<384x1xf32> to vector<384x384xf32>
    %34 = vector.broadcast %9 : vector<1x384xf32> to vector<384x384xf32>
    %35 = arith.minimumf %33, %34 : vector<384x384xf32>
    %36 = arith.subf %32, %26 : vector<384x384xf32>
    %cst = arith.constant 0.000000e+00 : f32
    %37 = vector.broadcast %cst : f32 to vector<384x384xf32>
    %38 = arith.maximumf %36, %37 : vector<384x384xf32>
    %39 = arith.subf %35, %29 : vector<384x384xf32>
    %cst_27 = arith.constant 0.000000e+00 : f32
    %40 = vector.broadcast %cst_27 : f32 to vector<384x384xf32>
    %41 = arith.maximumf %39, %40 : vector<384x384xf32>
    %42 = arith.mulf %38, %41 : vector<384x384xf32>
    %43 = vector.broadcast %23 : vector<384x1xf32> to vector<384x384xf32>
    %44 = vector.broadcast %11 : vector<1x384xf32> to vector<384x384xf32>
    %45 = arith.addf %43, %44 : vector<384x384xf32>
    %46 = arith.subf %45, %42 : vector<384x384xf32>
    %cst_28 = arith.constant 1.000000e-07 : f32
    %47 = vector.broadcast %cst_28 : f32 to vector<384x384xf32>
    %48 = arith.addf %46, %47 : vector<384x384xf32>
    %cst_29 = arith.constant 4.500000e-01 : f32
    %49 = vector.broadcast %cst_29 : f32 to vector<384x384xf32>
    %50 = arith.mulf %49, %48 : vector<384x384xf32>
    %51 = arith.cmpf ogt, %42, %50 : vector<384x384xf32>
    %52 = tpu.iota {dimensions = array<i32: 0>} : vector<384x384xi32>
    %53 = tpu.iota {dimensions = array<i32: 1>} : vector<384x384xi32>
    %54 = arith.cmpi sgt, %53, %52 : vector<384x384xi32>
    %55 = arith.andi %51, %54 : vector<384x384xi1>
    %cst_30 = arith.constant 1.000000e+00 : f32
    %cst_31 = arith.constant 0.000000e+00 : f32
    %56 = vector.broadcast %cst_30 : f32 to vector<384x384xf32>
    %57 = vector.broadcast %cst_31 : f32 to vector<384x384xf32>
    %58 = arith.select %55, %56, %57 : vector<384x384xi1>, vector<384x384xf32>
    %c0_32 = arith.constant 0 : index
    %c0_33 = arith.constant 0 : index
    %59 = vector.load %arg5[%c0_32, %c0_33] : memref<384x384xf32, #tpu.memory_space<vmem>>, vector<384x384xf32>
    tpu.vector_store %arg5[%c0_32, %c0_33], %58 {strides = array<i32>} : memref<384x384xf32, #tpu.memory_space<vmem>>, vector<384x384xf32>,
    %60 = tpu.iota {dimensions = array<i32: 1>} : vector<1x384xi32>
    %c0_i32 = arith.constant 0 : i32
    %61 = arith.subi %1, %c0_i32 : i32
    %62 = arith.addi %c0_i32, %61 : i32
    %c1_i32 = arith.constant 1 : i32
    %63 = scf.for %arg6 = %c0_i32 to %62 step %c1_i32 iter_args(%arg7 = %13) -> (vector<1x384xf32>)  : i32 {
      %67 = arith.index_cast %arg6 : i32 to index
      %c0_37 = arith.constant 0 : index
      %68 = vector.load %arg5[%67, %c0_37] : memref<384x384xf32, #tpu.memory_space<vmem>>, vector<1x384xf32>
      %69 = vector.broadcast %arg6 : i32 to vector<1x384xi32>
      %70 = arith.cmpi eq, %60, %69 : vector<1x384xi32>
      %cst_38 = arith.constant 0.000000e+00 : f32
      %71 = vector.broadcast %cst_38 : f32 to vector<1x384xf32>
      %72 = arith.select %70, %arg7, %71 : vector<1x384xi1>, vector<1x384xf32>
      %cst_39 = arith.constant dense<0xFF800000> : vector<1xf32>
      %73 = vector.multi_reduction <maximumf>, %72, %cst_39 [1] : vector<1x384xf32> to vector<1xf32>
      %74 = vector.shape_cast %73 : vector<1xf32> to vector<1x1xf32>
      %75 = vector.broadcast %74 : vector<1x1xf32> to vector<1x384xf32>
      %76 = arith.mulf %75, %68 : vector<1x384xf32>
      %cst_40 = arith.constant 1.000000e+00 : f32
      %77 = vector.broadcast %cst_40 : f32 to vector<1x384xf32>
      %78 = arith.subf %77, %76 : vector<1x384xf32>
      %79 = arith.mulf %arg7, %78 : vector<1x384xf32>
      scf.yield %79 : vector<1x384xf32>
    }
    %c0_34 = arith.constant 0 : index
    %c0_35 = arith.constant 0 : index
    %c0_36 = arith.constant 0 : index
    %64 = vector.load %arg4[%c0_34, %c0_35, %c0_36] : memref<1x1x384xf32, #tpu.memory_space<vmem>>, vector<1x1x384xf32>
    %65 = vector.shape_cast %64 : vector<1x1x384xf32> to vector<1x384xf32>
    %66 = vector.shape_cast %63 : vector<1x384xf32> to vector<1x1x384xf32>
    tpu.vector_store %arg4[%c0_34, %c0_35, %c0_36], %66 {strides = array<i32>} : memref<1x1x384xf32, #tpu.memory_space<vmem>>, vector<1x1x384xf32>,
    return
  }
  func.func @transform_0(%arg0: i32, %arg1: memref<2xi32, #tpu.memory_space<smem>>) -> (i32, i32, i32) {
    %c0_i32 = arith.constant 0 : i32
    %c0_i32_0 = arith.constant 0 : i32
    %c0_i32_1 = arith.constant 0 : i32
    return %arg0, %c0_i32, %c0_i32_0 : i32, i32, i32
  }
  func.func @transform_1(%arg0: i32, %arg1: memref<2xi32, #tpu.memory_space<smem>>) -> (i32, i32, i32) {
    %c0_i32 = arith.constant 0 : i32
    %c0_i32_0 = arith.constant 0 : i32
    %c0_i32_1 = arith.constant 0 : i32
    return %arg0, %c0_i32, %c0_i32_0 : i32, i32, i32
  }
  func.func @transform_2(%arg0: i32, %arg1: memref<2xi32, #tpu.memory_space<smem>>) -> (i32, i32, i32) {
    %c0_i32 = arith.constant 0 : i32
    %c0_i32_0 = arith.constant 0 : i32
    %c0_i32_1 = arith.constant 0 : i32
    return %arg0, %c0_i32, %c0_i32_0 : i32, i32, i32
  }
}

</mosaic_0001>

<llo_original>
// kernel: tpu_custom_call.1
$region0: #{tpu_custom_call.1}
  #allocation0 [shape = 'u32[]', space=smem, size = 0x4, offset = 0x4, fixed_abs, tag = 'smem constant byte address 0x4 - core index']
  #allocation1 [shape = 'u32[72,128]{1,0:T(1,128)}', space=vmem, size = 0x9000, scoped, tag = 'internal scratch']
  #allocation2 [shape = 'f32[384,384]{1,0:T(8,128)}', space=vmem, size = 0x90000, scoped, tag = 'scratch operand']
  #allocation3 [shape = 's32[1]{0}', space=sflag, size = 0x4, scoped, tag = 'scoped memory for tpu_custom_call.1']
  #allocation4 [shape = 'u8[512]{0}', space=smem, size = 0x200, scoped, tag = 'prefetched SMEM operand 0']
  %s0 = inlined_call_operand.vmem [shape: s32[2], index: 0, kind: input, shape index: {}]
  %s1 = inlined_call_operand.vmem [shape: f32[2,8,384], index: 1, kind: input, shape index: {}]
  %s2 = inlined_call_operand.vmem [shape: f32[2,384,8], index: 2, kind: input, shape index: {}]
  %s3 = inlined_call_operand.hbm [shape: f32[2,1,384], index: 3, kind: output, shape index: {}]
  %s4 = sld [smem:[#allocation0]]
  $region48: #{tpu_custom_call.1} parent=0
    _
  %s6 = ssub.s32 1, %s4
  %s7 = scalar_select 0, %s6, %s4
  %s9 = sshll.u32 %s0, 4
  %s10 = int_to_ptr.vmem [resolvable:$true] %s9
  %12 = dma.vmem_to_smem %s10, 16, [#allocation4], [#allocation3]
  %14 = dma.done [#allocation3], 16
  %15 = sfence
  $region1: #{tpu_custom_call.1} parent=0
    #allocation5 [shape = 'u8[3072]{0}', space=vmem, size = 0xc00, scoped, tag = 'output window, operand 0']
    #allocation6 [shape = 's32[2]{0}', space=sflag, size = 0x8, scoped, tag = 'scoped memory for tpu_custom_call.1']
    %16 = vsyncpa [#allocation6], 0
    %s17 = scalar_lea.sflag [#allocation6], 1
    %18 = vsyncpa %s17, 0
    loop: start=0, step=1, limit=4
    $region2: #{tpu_custom_call.1} parent=1 // loop_pre_header
      _
    $region3: #{tpu_custom_call.1} parent=1 // loop_header
      %s20 = sphi 0, %s24
      %p21 = scmp.ge.s32.totalorder %s20, 4
      %s30 = sphi 0, %s32
      %s33 = sphi 0, %s30
      %s34 = sphi 0, %s33
      %s50 = sphi 0, %s34
      %s56 = sphi 0, %s58
      %s59 = sphi 0, %s56
      %s60 = sphi 0, %s59
      %s76 = sphi 0, %s60
      %s82 = sphi 0, %s84
      %s85 = sphi 0, %s82
      %s86 = sphi 0, %s85
      %s102 = sphi 0, %s86
    $region4: #{tpu_custom_call.1} parent=1 // loop_header_branch
      %23 = sbr.rel (%p21) target = $region8
    $region5: #{tpu_custom_call.1} parent=1 // loop_body
      %s25 = ssub.s32 %s20, 1
      %s26 = ssub.s32 %s20, 2
      %s27 = sadd.s32 %s20, 1
      %s28 = ssub.s32 %s20, %s27
      %p29 = scmp.eq.s32.totalorder %s28, 0
      %s31 = sadd.s32 %s30, 1
      %s32 = scalar_select %p29, %s30, %s31
      %p35 = pneg %p29
      %p36 = scmp.eq.s32.totalorder %s20, 1
      %p37 = por %p35, %p36
      %p38 = scmp.ne.s32.totalorder %s30, %s33
      %p39 = scmp.eq.s32.totalorder %s20, 0
      %p40 = por %p38, %p39
      %p41 = scmp.ne.s32.totalorder %s30, %s33
      %p42 = scmp.eq.s32.totalorder %s25, 1
      %p43 = por %p41, %p42
      %p44 = scmp.ne.s32.totalorder %s33, %s34
      %p45 = scmp.eq.s32.totalorder %s25, 0
      %p46 = por %p44, %p45
      %p47 = scmp.ne.s32.totalorder %s33, %s34
      %p48 = scmp.eq.s32.totalorder %s26, 1
      %p49 = por %p47, %p48
      %p51 = scmp.ne.s32.totalorder %s34, %s50
      %p52 = scmp.eq.s32.totalorder %s26, 0
      %p53 = por %p51, %p52
      %s54 = ssub.s32 %s20, %s27
      %p55 = scmp.eq.s32.totalorder %s54, 0
      %s57 = sadd.s32 %s56, 1
      %s58 = scalar_select %p55, %s56, %s57
      %p61 = pneg %p55
      %p62 = scmp.eq.s32.totalorder %s20, 1
      %p63 = por %p61, %p62
      %p64 = scmp.ne.s32.totalorder %s56, %s59
      %p65 = scmp.eq.s32.totalorder %s20, 0
      %p66 = por %p64, %p65
      %p67 = scmp.ne.s32.totalorder %s56, %s59
      %p68 = scmp.eq.s32.totalorder %s25, 1
      %p69 = por %p67, %p68
      %p70 = scmp.ne.s32.totalorder %s59, %s60
      %p71 = scmp.eq.s32.totalorder %s25, 0
      %p72 = por %p70, %p71
      %p73 = scmp.ne.s32.totalorder %s59, %s60
      %p74 = scmp.eq.s32.totalorder %s26, 1
      %p75 = por %p73, %p74
      %p77 = scmp.ne.s32.totalorder %s60, %s76
      %p78 = scmp.eq.s32.totalorder %s26, 0
      %p79 = por %p77, %p78
      %s80 = ssub.s32 %s20, %s27
      %p81 = scmp.eq.s32.totalorder %s80, 0
      %s83 = sadd.s32 %s82, 1
      %s84 = scalar_select %p81, %s82, %s83
      %p87 = pneg %p81
      %p88 = scmp.eq.s32.totalorder %s20, 1
      %p89 = por %p87, %p88
      %p90 = scmp.ne.s32.totalorder %s82, %s85
      %p91 = scmp.eq.s32.totalorder %s20, 0
      %p92 = por %p90, %p91
      %p93 = scmp.ne.s32.totalorder %s82, %s85
      %p94 = scmp.eq.s32.totalorder %s25, 1
      %p95 = por %p93, %p94
      %p96 = scmp.ne.s32.totalorder %s85, %s86
      %p97 = scmp.eq.s32.totalorder %s25, 0
      %p98 = por %p96, %p97
      %p99 = scmp.ne.s32.totalorder %s85, %s86
      %p100 = scmp.eq.s32.totalorder %s26, 1
      %p101 = por %p99, %p100
      %p103 = scmp.ne.s32.totalorder %s86, %s102
      %p104 = scmp.eq.s32.totalorder %s26, 0
      %p105 = por %p103, %p104
      %p106 = scmp.le.s32.totalorder 1, %s20
      %p107 = scmp.lt.s32.totalorder %s20, 3
      %p108 = pnand %p106, %p107
      %p109 = pneg %p108
      // Predicated region
      $region9: #{tpu_custom_call.1} parent=5 // pred_check
        _
      $region10: #{tpu_custom_call.1} parent=5 // pred_check_branch
        %111 = sbr.rel (%p108) target = $region12
      $region11: #{tpu_custom_call.1} parent=5 // pred_region
        %s112 = ssub.s32 %s20, 1
      $region12: #{tpu_custom_call.1} parent=5 // pred_fallthru
        _
      %p113 = scmp.lt.s32.totalorder %s20, 2
      // Predicated region
      $region13: #{tpu_custom_call.1} parent=5 // pred_check
        %p114 = pneg %p113
      $region14: #{tpu_custom_call.1} parent=5 // pred_check_branch
        %116 = sbr.rel (%p114) target = $region16
      $region15: #{tpu_custom_call.1} parent=5 // pred_region
        // Predicated region
        $region17: #{tpu_custom_call.1} parent=15 // pred_check
          %p117 = pneg %p40
        $region18: #{tpu_custom_call.1} parent=15 // pred_check_branch
          %119 = sbr.rel (%p117) target = $region20
        $region19: #{tpu_custom_call.1} parent=15 // pred_region
          %p120 = scmp.lt.s32.totalorder %s20, 1
          %s121 = scalar_select %p120, %s20, 1
          %s122 = smul.addr %s121, 3
          %s123 = smul.addr %s122, 8
          %s124 = scalar_lea.vmem %s1, %s123
        $region20: #{tpu_custom_call.1} parent=15 // pred_fallthru
          _
        // Predicated region
        $region21: #{tpu_custom_call.1} parent=15 // pred_check
          %p125 = pneg %p66
        $region22: #{tpu_custom_call.1} parent=15 // pred_check_branch
          %127 = sbr.rel (%p125) target = $region24
        $region23: #{tpu_custom_call.1} parent=15 // pred_region
          %p128 = scmp.lt.s32.totalorder %s20, 1
          %s129 = scalar_select %p128, %s20, 1
          %s130 = smul.addr %s129, 48
          %s131 = smul.addr %s130, 8
          %s132 = scalar_lea.vmem %s2, %s131
        $region24: #{tpu_custom_call.1} parent=15 // pred_fallthru
          _
      $region16: #{tpu_custom_call.1} parent=5 // pred_fallthru
        _
      %p133 = scmp.le.s32.totalorder 1, %s20
      %p134 = scmp.lt.s32.totalorder %s20, 3
      %p135 = pnand %p133, %p134
      %p136 = pneg %p135
      // Predicated region
      $region25: #{tpu_custom_call.1} parent=5 // pred_check
        _
      $region26: #{tpu_custom_call.1} parent=5 // pred_check_branch
        %138 = sbr.rel (%p135) target = $region28
      $region27: #{tpu_custom_call.1} parent=5 // pred_region
        %s139 = ssub.s32 %s20, 1
        %p140 = scmp.lt.s32.totalorder %s25, 1
        %s141 = scalar_select %p140, %s25, 1
        %s142 = smul.addr %s141, 3
        %s143 = smul.addr %s142, 8
        %s144 = scalar_lea.vmem %s1, %s143
        %p145 = pneg %p46
        %p146 = pneg %p43
        %p147 = scmp.lt.s32.totalorder %s25, 1
        %s148 = scalar_select %p147, %s25, 1
        %s149 = smul.addr %s148, 48
        %s150 = smul.addr %s149, 8
        %s151 = scalar_lea.vmem %s2, %s150
        %p152 = pneg %p72
        %p153 = pneg %p69
        %p154 = pneg %p98
        %p155 = pneg %p95
        %s156 = sand.u32 %s85, 1
        %s157 = scalar_lea.sflag [#allocation6], %s156
        %s158 = sand.u32 %s85, 1
        %s159 = smul.addr %s158, 3
        %s160 = scalar_lea.vmem [#allocation5], %s159
        %p161 = scmp.lt.s32.totalorder %s25, 1
        %s162 = scalar_select %p161, %s25, 1
        %s163 = smul.addr %s162, 3
        %s164 = smul.addr %s163, 8
        %s165 = scalar_lea.vmem %s1, %s164
        %p166 = scmp.lt.s32.totalorder %s25, 1
        %s167 = scalar_select %p166, %s25, 1
        %s168 = smul.addr %s167, 48
        %s169 = smul.addr %s168, 8
        %s170 = scalar_lea.vmem %s2, %s169
        %s171 = sld [smem:[#allocation4 + %s25]]
        %v172 = vld [vmem:[%s165] ss:$8 sm:$0x7]
        %s173 = scalar_lea.vmem %s165, 1
        %v174 = vld [vmem:[%s173] ss:$8 sm:$0x7]
        %s175 = scalar_lea.vmem %s165, 2
        %v176 = vld [vmem:[%s175] ss:$8 sm:$0x7]
        %s177 = scalar_lea.vmem %s165, 3
        %v178 = vld [vmem:[%s177] ss:$8 sm:$0x7]
        %s179 = scalar_lea.vmem %s165, 4
        %v180 = vld [vmem:[%s179] ss:$8 sm:$0x7]
        %s181 = scalar_lea.vmem %s165, 5
        %v182 = vld [vmem:[%s181] ss:$8 sm:$0x7]
        %v183 = vld [vmem:[%s170] sm:$0xff]
        %v184 = vld [vmem:[%s170 + $0x8] sm:$0xff]
        %v185 = vld [vmem:[%s170 + $0x10] sm:$0xff]
        %v186 = vld [vmem:[%s170 + $0x18] sm:$0xff]
        %v187 = vld [vmem:[%s170 + $0x20] sm:$0xff]
        %v188 = vld [vmem:[%s170 + $0x28] sm:$0xff]
        %v189 = vld [vmem:[%s170 + $0x30] sm:$0xff]
        %v190 = vld [vmem:[%s170 + $0x38] sm:$0xff]
        %v191 = vld [vmem:[%s170 + $0x40] sm:$0xff]
        %v192 = vld [vmem:[%s170 + $0x48] sm:$0xff]
        %v193 = vld [vmem:[%s170 + $0x50] sm:$0xff]
        %v194 = vld [vmem:[%s170 + $0x58] sm:$0xff]
        %v195 = vld [vmem:[%s170 + $0x60] sm:$0xff]
        %v196 = vld [vmem:[%s170 + $0x68] sm:$0xff]
        %v197 = vld [vmem:[%s170 + $0x70] sm:$0xff]
        %v198 = vld [vmem:[%s170 + $0x78] sm:$0xff]
        %v199 = vld [vmem:[%s170 + $0x80] sm:$0xff]
        %v200 = vld [vmem:[%s170 + $0x88] sm:$0xff]
        %v201 = vld [vmem:[%s170 + $0x90] sm:$0xff]
        %v202 = vld [vmem:[%s170 + $0x98] sm:$0xff]
        %v203 = vld [vmem:[%s170 + $0xa0] sm:$0xff]
        %v204 = vld [vmem:[%s170 + $0xa8] sm:$0xff]
        %v205 = vld [vmem:[%s170 + $0xb0] sm:$0xff]
        %v206 = vld [vmem:[%s170 + $0xb8] sm:$0xff]
        %v207 = vld [vmem:[%s170 + $0xc0] sm:$0xff]
        %v208 = vld [vmem:[%s170 + $0xc8] sm:$0xff]
        %v209 = vld [vmem:[%s170 + $0xd0] sm:$0xff]
        %v210 = vld [vmem:[%s170 + $0xd8] sm:$0xff]
        %v211 = vld [vmem:[%s170 + $0xe0] sm:$0xff]
        %v212 = vld [vmem:[%s170 + $0xe8] sm:$0xff]
        %v213 = vld [vmem:[%s170 + $0xf0] sm:$0xff]
        %v214 = vld [vmem:[%s170 + $0xf8] sm:$0xff]
        %v215 = vld [vmem:[%s170 + $0x100] sm:$0xff]
        %v216 = vld [vmem:[%s170 + $0x108] sm:$0xff]
        %v217 = vld [vmem:[%s170 + $0x110] sm:$0xff]
        %v218 = vld [vmem:[%s170 + $0x118] sm:$0xff]
        %v219 = vld [vmem:[%s170 + $0x120] sm:$0xff]
        %v220 = vld [vmem:[%s170 + $0x128] sm:$0xff]
        %v221 = vld [vmem:[%s170 + $0x130] sm:$0xff]
        %v222 = vld [vmem:[%s170 + $0x138] sm:$0xff]
        %v223 = vld [vmem:[%s170 + $0x140] sm:$0xff]
        %v224 = vld [vmem:[%s170 + $0x148] sm:$0xff]
        %v225 = vld [vmem:[%s170 + $0x150] sm:$0xff]
        %v226 = vld [vmem:[%s170 + $0x158] sm:$0xff]
        %v227 = vld [vmem:[%s170 + $0x160] sm:$0xff]
        %v228 = vld [vmem:[%s170 + $0x168] sm:$0xff]
        %v229 = vld [vmem:[%s170 + $0x170] sm:$0xff]
        %v230 = vld [vmem:[%s170 + $0x178] sm:$0xff]
        %232 = vset.pattern.permute.xlu0 0
        %233 = vperm.xlu0 %232, %v183
        %v234 = vpop.permute.xlu0 %233
        %237 = vset.pattern.permute.xlu0 0
        %238 = vperm.xlu0 %237, %v184
        %v239 = vpop.permute.xlu0 %238
        %242 = vset.pattern.permute.xlu0 0
        %243 = vperm.xlu0 %242, %v185
        %v244 = vpop.permute.xlu0 %243
        %247 = vset.pattern.permute.xlu0 0
        %248 = vperm.xlu0 %247, %v186
        %v249 = vpop.permute.xlu0 %248
        %252 = vset.pattern.permute.xlu0 0
        %253 = vperm.xlu0 %252, %v187
        %v254 = vpop.permute.xlu0 %253
        %257 = vset.pattern.permute.xlu0 0
        %258 = vperm.xlu0 %257, %v188
        %v259 = vpop.permute.xlu0 %258
        %262 = vset.pattern.permute.xlu0 0
        %263 = vperm.xlu0 %262, %v189
        %v264 = vpop.permute.xlu0 %263
        %267 = vset.pattern.permute.xlu0 0
        %268 = vperm.xlu0 %267, %v190
        %v269 = vpop.permute.xlu0 %268
        %272 = vset.pattern.permute.xlu0 0
        %273 = vperm.xlu0 %272, %v191
        %v274 = vpop.permute.xlu0 %273
        %277 = vset.pattern.permute.xlu0 0
        %278 = vperm.xlu0 %277, %v192
        %v279 = vpop.permute.xlu0 %278
        %282 = vset.pattern.permute.xlu0 0
        %283 = vperm.xlu0 %282, %v193
        %v284 = vpop.permute.xlu0 %283
        %287 = vset.pattern.permute.xlu0 0
        %288 = vperm.xlu0 %287, %v194
        %v289 = vpop.permute.xlu0 %288
        %292 = vset.pattern.permute.xlu0 0
        %293 = vperm.xlu0 %292, %v195
        %v294 = vpop.permute.xlu0 %293
        %297 = vset.pattern.permute.xlu0 0
        %298 = vperm.xlu0 %297, %v196
        %v299 = vpop.permute.xlu0 %298
        %302 = vset.pattern.permute.xlu0 0
        %303 = vperm.xlu0 %302, %v197
        %v304 = vpop.permute.xlu0 %303
        %307 = vset.pattern.permute.xlu0 0
        %308 = vperm.xlu0 %307, %v198
        %v309 = vpop.permute.xlu0 %308
        %312 = vset.pattern.permute.xlu0 0
        %313 = vperm.xlu0 %312, %v199
        %v314 = vpop.permute.xlu0 %313
        %317 = vset.pattern.permute.xlu0 0
        %318 = vperm.xlu0 %317, %v200
        %v319 = vpop.permute.xlu0 %318
        %322 = vset.pattern.permute.xlu0 0
        %323 = vperm.xlu0 %322, %v201
        %v324 = vpop.permute.xlu0 %323
        %327 = vset.pattern.permute.xlu0 0
        %328 = vperm.xlu0 %327, %v202
        %v329 = vpop.permute.xlu0 %328
        %332 = vset.pattern.permute.xlu0 0
        %333 = vperm.xlu0 %332, %v203
        %v334 = vpop.permute.xlu0 %333
        %337 = vset.pattern.permute.xlu0 0
        %338 = vperm.xlu0 %337, %v204
        %v339 = vpop.permute.xlu0 %338
        %342 = vset.pattern.permute.xlu0 0
        %343 = vperm.xlu0 %342, %v205
        %v344 = vpop.permute.xlu0 %343
        %347 = vset.pattern.permute.xlu0 0
        %348 = vperm.xlu0 %347, %v206
        %v349 = vpop.permute.xlu0 %348
        %352 = vset.pattern.permute.xlu0 0
        %353 = vperm.xlu0 %352, %v207
        %v354 = vpop.permute.xlu0 %353
        %357 = vset.pattern.permute.xlu0 0
        %358 = vperm.xlu0 %357, %v208
        %v359 = vpop.permute.xlu0 %358
        %362 = vset.pattern.permute.xlu0 0
        %363 = vperm.xlu0 %362, %v209
        %v364 = vpop.permute.xlu0 %363
        %367 = vset.pattern.permute.xlu0 0
        %368 = vperm.xlu0 %367, %v210
        %v369 = vpop.permute.xlu0 %368
        %372 = vset.pattern.permute.xlu0 0
        %373 = vperm.xlu0 %372, %v211
        %v374 = vpop.permute.xlu0 %373
        %377 = vset.pattern.permute.xlu0 0
        %378 = vperm.xlu0 %377, %v212
        %v379 = vpop.permute.xlu0 %378
        %382 = vset.pattern.permute.xlu0 0
        %383 = vperm.xlu0 %382, %v213
        %v384 = vpop.permute.xlu0 %383
        %387 = vset.pattern.permute.xlu0 0
        %388 = vperm.xlu0 %387, %v214
        %v389 = vpop.permute.xlu0 %388
        %392 = vset.pattern.permute.xlu0 0
        %393 = vperm.xlu0 %392, %v215
        %v394 = vpop.permute.xlu0 %393
        %397 = vset.pattern.permute.xlu0 0
        %398 = vperm.xlu0 %397, %v216
        %v399 = vpop.permute.xlu0 %398
        %402 = vset.pattern.permute.xlu0 0
        %403 = vperm.xlu0 %402, %v217
        %v404 = vpop.permute.xlu0 %403
        %407 = vset.pattern.permute.xlu0 0
        %408 = vperm.xlu0 %407, %v218
        %v409 = vpop.permute.xlu0 %408
        %412 = vset.pattern.permute.xlu0 0
        %413 = vperm.xlu0 %412, %v219
        %v414 = vpop.permute.xlu0 %413
        %417 = vset.pattern.permute.xlu0 0
        %418 = vperm.xlu0 %417, %v220
        %v419 = vpop.permute.xlu0 %418
        %422 = vset.pattern.permute.xlu0 0
        %423 = vperm.xlu0 %422, %v221
        %v424 = vpop.permute.xlu0 %423
        %427 = vset.pattern.permute.xlu0 0
        %428 = vperm.xlu0 %427, %v222
        %v429 = vpop.permute.xlu0 %428
        %432 = vset.pattern.permute.xlu0 0
        %433 = vperm.xlu0 %432, %v223
        %v434 = vpop.permute.xlu0 %433
        %437 = vset.pattern.permute.xlu0 0
        %438 = vperm.xlu0 %437, %v224
        %v439 = vpop.permute.xlu0 %438
        %442 = vset.pattern.permute.xlu0 0
        %443 = vperm.xlu0 %442, %v225
        %v444 = vpop.permute.xlu0 %443
        %447 = vset.pattern.permute.xlu0 0
        %448 = vperm.xlu0 %447, %v226
        %v449 = vpop.permute.xlu0 %448
        %452 = vset.pattern.permute.xlu0 0
        %453 = vperm.xlu0 %452, %v227
        %v454 = vpop.permute.xlu0 %453
        %457 = vset.pattern.permute.xlu0 0
        %458 = vperm.xlu0 %457, %v228
        %v459 = vpop.permute.xlu0 %458
        %462 = vset.pattern.permute.xlu0 0
        %463 = vperm.xlu0 %462, %v229
        %v464 = vpop.permute.xlu0 %463
        %467 = vset.pattern.permute.xlu0 0
        %468 = vperm.xlu0 %467, %v230
        %v469 = vpop.permute.xlu0 %468
        %v472 = vperm.slane %v172, 0
        %v473 = vperm.slane %v172, 1
        %v474 = vperm.slane %v172, 2
        %v478 = vmax.f32 %v234, %v472
        %v479 = vmax.f32 %v234, %v473
        %v480 = vmax.f32 %v234, %v474
        %v481 = vmax.f32 %v239, %v472
        %v482 = vmax.f32 %v239, %v473
        %v483 = vmax.f32 %v239, %v474
        %v484 = vmax.f32 %v244, %v472
        %v485 = vmax.f32 %v244, %v473
        %v486 = vmax.f32 %v244, %v474
        %v487 = vmax.f32 %v249, %v472
        %v488 = vmax.f32 %v249, %v473
        %v489 = vmax.f32 %v249, %v474
        %v490 = vmax.f32 %v254, %v472
        %v491 = vmax.f32 %v254, %v473
        %v492 = vmax.f32 %v254, %v474
        %v493 = vmax.f32 %v259, %v472
        %v494 = vmax.f32 %v259, %v473
        %v495 = vmax.f32 %v259, %v474
        %v496 = vmax.f32 %v264, %v472
        %v497 = vmax.f32 %v264, %v473
        %v498 = vmax.f32 %v264, %v474
        %v499 = vmax.f32 %v269, %v472
        %v500 = vmax.f32 %v269, %v473
        %v501 = vmax.f32 %v269, %v474
        %v502 = vmax.f32 %v274, %v472
        %v503 = vmax.f32 %v274, %v473
        %v504 = vmax.f32 %v274, %v474
        %v505 = vmax.f32 %v279, %v472
        %v506 = vmax.f32 %v279, %v473
        %v507 = vmax.f32 %v279, %v474
        %v508 = vmax.f32 %v284, %v472
        %v509 = vmax.f32 %v284, %v473
        %v510 = vmax.f32 %v284, %v474
        %v511 = vmax.f32 %v289, %v472
        %v512 = vmax.f32 %v289, %v473
        %v513 = vmax.f32 %v289, %v474
        %v514 = vmax.f32 %v294, %v472
        %v515 = vmax.f32 %v294, %v473
        %v516 = vmax.f32 %v294, %v474
        %v517 = vmax.f32 %v299, %v472
        %v518 = vmax.f32 %v299, %v473
        %v519 = vmax.f32 %v299, %v474
        %v520 = vmax.f32 %v304, %v472
        %v521 = vmax.f32 %v304, %v473
        %v522 = vmax.f32 %v304, %v474
        %v523 = vmax.f32 %v309, %v472
        %v524 = vmax.f32 %v309, %v473
        %v525 = vmax.f32 %v309, %v474
        %v526 = vmax.f32 %v314, %v472
        %v527 = vmax.f32 %v314, %v473
        %v528 = vmax.f32 %v314, %v474
        %v529 = vmax.f32 %v319, %v472
        %v530 = vmax.f32 %v319, %v473
        %v531 = vmax.f32 %v319, %v474
        %v532 = vmax.f32 %v324, %v472
        %v533 = vmax.f32 %v324, %v473
        %v534 = vmax.f32 %v324, %v474
        %v535 = vmax.f32 %v329, %v472
        %v536 = vmax.f32 %v329, %v473
        %v537 = vmax.f32 %v329, %v474
        %v538 = vmax.f32 %v334, %v472
        %v539 = vmax.f32 %v334, %v473
        %v540 = vmax.f32 %v334, %v474
        %v541 = vmax.f32 %v339, %v472
        %v542 = vmax.f32 %v339, %v473
        %v543 = vmax.f32 %v339, %v474
        %v544 = vmax.f32 %v344, %v472
        %v545 = vmax.f32 %v344, %v473
        %v546 = vmax.f32 %v344, %v474
        %v547 = vmax.f32 %v349, %v472
        %v548 = vmax.f32 %v349, %v473
        %v549 = vmax.f32 %v349, %v474
        %v550 = vmax.f32 %v354, %v472
        %v551 = vmax.f32 %v354, %v473
        %v552 = vmax.f32 %v354, %v474
        %v553 = vmax.f32 %v359, %v472
        %v554 = vmax.f32 %v359, %v473
        %v555 = vmax.f32 %v359, %v474
        %v556 = vmax.f32 %v364, %v472
        %v557 = vmax.f32 %v364, %v473
        %v558 = vmax.f32 %v364, %v474
        %v559 = vmax.f32 %v369, %v472
        %v560 = vmax.f32 %v369, %v473
        %v561 = vmax.f32 %v369, %v474
        %v562 = vmax.f32 %v374, %v472
        %v563 = vmax.f32 %v374, %v473
        %v564 = vmax.f32 %v374, %v474
        %v565 = vmax.f32 %v379, %v472
        %v566 = vmax.f32 %v379, %v473
        %v567 = vmax.f32 %v379, %v474
        %v568 = vmax.f32 %v384, %v472
        %v569 = vmax.f32 %v384, %v473
        %v570 = vmax.f32 %v384, %v474
        %v571 = vmax.f32 %v389, %v472
        %v572 = vmax.f32 %v389, %v473
        %v573 = vmax.f32 %v389, %v474
        %v574 = vmax.f32 %v394, %v472
        %v575 = vmax.f32 %v394, %v473
        %v576 = vmax.f32 %v394, %v474
        %v577 = vmax.f32 %v399, %v472
        %v578 = vmax.f32 %v399, %v473
        %v579 = vmax.f32 %v399, %v474
        %v580 = vmax.f32 %v404, %v472
        %v581 = vmax.f32 %v404, %v473
        %v582 = vmax.f32 %v404, %v474
        %v583 = vmax.f32 %v409, %v472
        %v584 = vmax.f32 %v409, %v473
        %v585 = vmax.f32 %v409, %v474
        %v586 = vmax.f32 %v414, %v472
        %v587 = vmax.f32 %v414, %v473
        %v588 = vmax.f32 %v414, %v474
        %v589 = vmax.f32 %v419, %v472
        %v590 = vmax.f32 %v419, %v473
        %v591 = vmax.f32 %v419, %v474
        %v592 = vmax.f32 %v424, %v472
        %v593 = vmax.f32 %v424, %v473
        %v594 = vmax.f32 %v424, %v474
        %v595 = vmax.f32 %v429, %v472
        %v596 = vmax.f32 %v429, %v473
        %v597 = vmax.f32 %v429, %v474
        %v598 = vmax.f32 %v434, %v472
        %v599 = vmax.f32 %v434, %v473
        %v600 = vmax.f32 %v434, %v474
        %v601 = vmax.f32 %v439, %v472
        %v602 = vmax.f32 %v439, %v473
        %v603 = vmax.f32 %v439, %v474
        %v604 = vmax.f32 %v444, %v472
        %v605 = vmax.f32 %v444, %v473
        %v606 = vmax.f32 %v444, %v474
        %v607 = vmax.f32 %v449, %v472
        %v608 = vmax.f32 %v449, %v473
        %v609 = vmax.f32 %v449, %v474
        %v610 = vmax.f32 %v454, %v472
        %v611 = vmax.f32 %v454, %v473
        %v612 = vmax.f32 %v454, %v474
        %v613 = vmax.f32 %v459, %v472
        %v614 = vmax.f32 %v459, %v473
        %v615 = vmax.f32 %v459, %v474
        %v616 = vmax.f32 %v464, %v472
        %v617 = vmax.f32 %v464, %v473
        %v618 = vmax.f32 %v464, %v474
        %v619 = vmax.f32 %v469, %v472
        %v620 = vmax.f32 %v469, %v473
        %v621 = vmax.f32 %v469, %v474
        %622 = vset.pattern.permute.xlu0 1
        %623 = vperm.xlu0 %622, %v183
        %v624 = vpop.permute.xlu0 %623
        %626 = vset.pattern.permute.xlu0 1
        %627 = vperm.xlu0 %626, %v184
        %v628 = vpop.permute.xlu0 %627
        %630 = vset.pattern.permute.xlu0 1
        %631 = vperm.xlu0 %630, %v185
        %v632 = vpop.permute.xlu0 %631
        %634 = vset.pattern.permute.xlu0 1
        %635 = vperm.xlu0 %634, %v186
        %v636 = vpop.permute.xlu0 %635
        %638 = vset.pattern.permute.xlu0 1
        %639 = vperm.xlu0 %638, %v187
        %v640 = vpop.permute.xlu0 %639
        %642 = vset.pattern.permute.xlu0 1
        %643 = vperm.xlu0 %642, %v188
        %v644 = vpop.permute.xlu0 %643
        %646 = vset.pattern.permute.xlu0 1
        %647 = vperm.xlu0 %646, %v189
        %v648 = vpop.permute.xlu0 %647
        %650 = vset.pattern.permute.xlu0 1
        %651 = vperm.xlu0 %650, %v190
        %v652 = vpop.permute.xlu0 %651
        %654 = vset.pattern.permute.xlu0 1
        %655 = vperm.xlu0 %654, %v191
        %v656 = vpop.permute.xlu0 %655
        %658 = vset.pattern.permute.xlu0 1
        %659 = vperm.xlu0 %658, %v192
        %v660 = vpop.permute.xlu0 %659
        %662 = vset.pattern.permute.xlu0 1
        %663 = vperm.xlu0 %662, %v193
        %v664 = vpop.permute.xlu0 %663
        %666 = vset.pattern.permute.xlu0 1
        %667 = vperm.xlu0 %666, %v194
        %v668 = vpop.permute.xlu0 %667
        %670 = vset.pattern.permute.xlu0 1
        %671 = vperm.xlu0 %670, %v195
        %v672 = vpop.permute.xlu0 %671
        %674 = vset.pattern.permute.xlu0 1
        %675 = vperm.xlu0 %674, %v196
        %v676 = vpop.permute.xlu0 %675
        %678 = vset.pattern.permute.xlu0 1
        %679 = vperm.xlu0 %678, %v197
        %v680 = vpop.permute.xlu0 %679
        %682 = vset.pattern.permute.xlu0 1
        %683 = vperm.xlu0 %682, %v198
        %v684 = vpop.permute.xlu0 %683
        %686 = vset.pattern.permute.xlu0 1
        %687 = vperm.xlu0 %686, %v199
        %v688 = vpop.permute.xlu0 %687
        %690 = vset.pattern.permute.xlu0 1
        %691 = vperm.xlu0 %690, %v200
        %v692 = vpop.permute.xlu0 %691
        %694 = vset.pattern.permute.xlu0 1
        %695 = vperm.xlu0 %694, %v201
        %v696 = vpop.permute.xlu0 %695
        %698 = vset.pattern.permute.xlu0 1
        %699 = vperm.xlu0 %698, %v202
        %v700 = vpop.permute.xlu0 %699
        %702 = vset.pattern.permute.xlu0 1
        %703 = vperm.xlu0 %702, %v203
        %v704 = vpop.permute.xlu0 %703
        %706 = vset.pattern.permute.xlu0 1
        %707 = vperm.xlu0 %706, %v204
        %v708 = vpop.permute.xlu0 %707
        %710 = vset.pattern.permute.xlu0 1
        %711 = vperm.xlu0 %710, %v205
        %v712 = vpop.permute.xlu0 %711
        %714 = vset.pattern.permute.xlu0 1
        %715 = vperm.xlu0 %714, %v206
        %v716 = vpop.permute.xlu0 %715
        %718 = vset.pattern.permute.xlu0 1
        %719 = vperm.xlu0 %718, %v207
        %v720 = vpop.permute.xlu0 %719
        %722 = vset.pattern.permute.xlu0 1
        %723 = vperm.xlu0 %722, %v208
        %v724 = vpop.permute.xlu0 %723
        %726 = vset.pattern.permute.xlu0 1
        %727 = vperm.xlu0 %726, %v209
        %v728 = vpop.permute.xlu0 %727
        %730 = vset.pattern.permute.xlu0 1
        %731 = vperm.xlu0 %730, %v210
        %v732 = vpop.permute.xlu0 %731
        %734 = vset.pattern.permute.xlu0 1
        %735 = vperm.xlu0 %734, %v211
        %v736 = vpop.permute.xlu0 %735
        %738 = vset.pattern.permute.xlu0 1
        %739 = vperm.xlu0 %738, %v212
        %v740 = vpop.permute.xlu0 %739
        %742 = vset.pattern.permute.xlu0 1
        %743 = vperm.xlu0 %742, %v213
        %v744 = vpop.permute.xlu0 %743
        %746 = vset.pattern.permute.xlu0 1
        %747 = vperm.xlu0 %746, %v214
        %v748 = vpop.permute.xlu0 %747
        %750 = vset.pattern.permute.xlu0 1
        %751 = vperm.xlu0 %750, %v215
        %v752 = vpop.permute.xlu0 %751
        %754 = vset.pattern.permute.xlu0 1
        %755 = vperm.xlu0 %754, %v216
        %v756 = vpop.permute.xlu0 %755
        %758 = vset.pattern.permute.xlu0 1
        %759 = vperm.xlu0 %758, %v217
        %v760 = vpop.permute.xlu0 %759
        %762 = vset.pattern.permute.xlu0 1
        %763 = vperm.xlu0 %762, %v218
        %v764 = vpop.permute.xlu0 %763
        %766 = vset.pattern.permute.xlu0 1
        %767 = vperm.xlu0 %766, %v219
        %v768 = vpop.permute.xlu0 %767
        %770 = vset.pattern.permute.xlu0 1
        %771 = vperm.xlu0 %770, %v220
        %v772 = vpop.permute.xlu0 %771
        %774 = vset.pattern.permute.xlu0 1
        %775 = vperm.xlu0 %774, %v221
        %v776 = vpop.permute.xlu0 %775
        %778 = vset.pattern.permute.xlu0 1
        %779 = vperm.xlu0 %778, %v222
        %v780 = vpop.permute.xlu0 %779
        %782 = vset.pattern.permute.xlu0 1
        %783 = vperm.xlu0 %782, %v223
        %v784 = vpop.permute.xlu0 %783
        %786 = vset.pattern.permute.xlu0 1
        %787 = vperm.xlu0 %786, %v224
        %v788 = vpop.permute.xlu0 %787
        %790 = vset.pattern.permute.xlu0 1
        %791 = vperm.xlu0 %790, %v225
        %v792 = vpop.permute.xlu0 %791
        %794 = vset.pattern.permute.xlu0 1
        %795 = vperm.xlu0 %794, %v226
        %v796 = vpop.permute.xlu0 %795
        %798 = vset.pattern.permute.xlu0 1
        %799 = vperm.xlu0 %798, %v227
        %v800 = vpop.permute.xlu0 %799
        %802 = vset.pattern.permute.xlu0 1
        %803 = vperm.xlu0 %802, %v228
        %v804 = vpop.permute.xlu0 %803
        %806 = vset.pattern.permute.xlu0 1
        %807 = vperm.xlu0 %806, %v229
        %v808 = vpop.permute.xlu0 %807
        %810 = vset.pattern.permute.xlu0 1
        %811 = vperm.xlu0 %810, %v230
        %v812 = vpop.permute.xlu0 %811
        %v815 = vperm.slane %v174, 0
        %v816 = vperm.slane %v174, 1
        %v817 = vperm.slane %v174, 2
        %v821 = vmax.f32 %v624, %v815
        %v822 = vmax.f32 %v624, %v816
        %v823 = vmax.f32 %v624, %v817
        %v824 = vmax.f32 %v628, %v815
        %v825 = vmax.f32 %v628, %v816
        %v826 = vmax.f32 %v628, %v817
        %v827 = vmax.f32 %v632, %v815
        %v828 = vmax.f32 %v632, %v816
        %v829 = vmax.f32 %v632, %v817
        %v830 = vmax.f32 %v636, %v815
        %v831 = vmax.f32 %v636, %v816
        %v832 = vmax.f32 %v636, %v817
        %v833 = vmax.f32 %v640, %v815
        %v834 = vmax.f32 %v640, %v816
        %v835 = vmax.f32 %v640, %v817
        %v836 = vmax.f32 %v644, %v815
        %v837 = vmax.f32 %v644, %v816
        %v838 = vmax.f32 %v644, %v817
        %v839 = vmax.f32 %v648, %v815
        %v840 = vmax.f32 %v648, %v816
        %v841 = vmax.f32 %v648, %v817
        %v842 = vmax.f32 %v652, %v815
        %v843 = vmax.f32 %v652, %v816
        %v844 = vmax.f32 %v652, %v817
        %v845 = vmax.f32 %v656, %v815
        %v846 = vmax.f32 %v656, %v816
        %v847 = vmax.f32 %v656, %v817
        %v848 = vmax.f32 %v660, %v815
        %v849 = vmax.f32 %v660, %v816
        %v850 = vmax.f32 %v660, %v817
        %v851 = vmax.f32 %v664, %v815
        %v852 = vmax.f32 %v664, %v816
        %v853 = vmax.f32 %v664, %v817
        %v854 = vmax.f32 %v668, %v815
        %v855 = vmax.f32 %v668, %v816
        %v856 = vmax.f32 %v668, %v817
        %v857 = vmax.f32 %v672, %v815
        %v858 = vmax.f32 %v672, %v816
        %v859 = vmax.f32 %v672, %v817
        %v860 = vmax.f32 %v676, %v815
        %v861 = vmax.f32 %v676, %v816
        %v862 = vmax.f32 %v676, %v817
        %v863 = vmax.f32 %v680, %v815
        %v864 = vmax.f32 %v680, %v816
        %v865 = vmax.f32 %v680, %v817
        %v866 = vmax.f32 %v684, %v815
        %v867 = vmax.f32 %v684, %v816
        %v868 = vmax.f32 %v684, %v817
        %v869 = vmax.f32 %v688, %v815
        %v870 = vmax.f32 %v688, %v816
        %v871 = vmax.f32 %v688, %v817
        %v872 = vmax.f32 %v692, %v815
        %v873 = vmax.f32 %v692, %v816
        %v874 = vmax.f32 %v692, %v817
        %v875 = vmax.f32 %v696, %v815
        %v876 = vmax.f32 %v696, %v816
        %v877 = vmax.f32 %v696, %v817
        %v878 = vmax.f32 %v700, %v815
        %v879 = vmax.f32 %v700, %v816
        %v880 = vmax.f32 %v700, %v817
        %v881 = vmax.f32 %v704, %v815
        %v882 = vmax.f32 %v704, %v816
        %v883 = vmax.f32 %v704, %v817
        %v884 = vmax.f32 %v708, %v815
        %v885 = vmax.f32 %v708, %v816
        %v886 = vmax.f32 %v708, %v817
        %v887 = vmax.f32 %v712, %v815
        %v888 = vmax.f32 %v712, %v816
        %v889 = vmax.f32 %v712, %v817
        %v890 = vmax.f32 %v716, %v815
        %v891 = vmax.f32 %v716, %v816
        %v892 = vmax.f32 %v716, %v817
        %v893 = vmax.f32 %v720, %v815
        %v894 = vmax.f32 %v720, %v816
        %v895 = vmax.f32 %v720, %v817
        %v896 = vmax.f32 %v724, %v815
        %v897 = vmax.f32 %v724, %v816
        %v898 = vmax.f32 %v724, %v817
        %v899 = vmax.f32 %v728, %v815
        %v900 = vmax.f32 %v728, %v816
        %v901 = vmax.f32 %v728, %v817
        %v902 = vmax.f32 %v732, %v815
        %v903 = vmax.f32 %v732, %v816
        %v904 = vmax.f32 %v732, %v817
        %v905 = vmax.f32 %v736, %v815
        %v906 = vmax.f32 %v736, %v816
        %v907 = vmax.f32 %v736, %v817
        %v908 = vmax.f32 %v740, %v815
        %v909 = vmax.f32 %v740, %v816
        %v910 = vmax.f32 %v740, %v817
        %v911 = vmax.f32 %v744, %v815
        %v912 = vmax.f32 %v744, %v816
        %v913 = vmax.f32 %v744, %v817
        %v914 = vmax.f32 %v748, %v815
        %v915 = vmax.f32 %v748, %v816
        %v916 = vmax.f32 %v748, %v817
        %v917 = vmax.f32 %v752, %v815
        %v918 = vmax.f32 %v752, %v816
        %v919 = vmax.f32 %v752, %v817
        %v920 = vmax.f32 %v756, %v815
        %v921 = vmax.f32 %v756, %v816
        %v922 = vmax.f32 %v756, %v817
        %v923 = vmax.f32 %v760, %v815
        %v924 = vmax.f32 %v760, %v816
        %v925 = vmax.f32 %v760, %v817
        %v926 = vmax.f32 %v764, %v815
        %v927 = vmax.f32 %v764, %v816
        %v928 = vmax.f32 %v764, %v817
        %v929 = vmax.f32 %v768, %v815
        %v930 = vmax.f32 %v768, %v816
        %v931 = vmax.f32 %v768, %v817
        %v932 = vmax.f32 %v772, %v815
        %v933 = vmax.f32 %v772, %v816
        %v934 = vmax.f32 %v772, %v817
        %v935 = vmax.f32 %v776, %v815
        %v936 = vmax.f32 %v776, %v816
        %v937 = vmax.f32 %v776, %v817
        %v938 = vmax.f32 %v780, %v815
        %v939 = vmax.f32 %v780, %v816
        %v940 = vmax.f32 %v780, %v817
        %v941 = vmax.f32 %v784, %v815
        %v942 = vmax.f32 %v784, %v816
        %v943 = vmax.f32 %v784, %v817
        %v944 = vmax.f32 %v788, %v815
        %v945 = vmax.f32 %v788, %v816
        %v946 = vmax.f32 %v788, %v817
        %v947 = vmax.f32 %v792, %v815
        %v948 = vmax.f32 %v792, %v816
        %v949 = vmax.f32 %v792, %v817
        %v950 = vmax.f32 %v796, %v815
        %v951 = vmax.f32 %v796, %v816
        %v952 = vmax.f32 %v796, %v817
        %v953 = vmax.f32 %v800, %v815
        %v954 = vmax.f32 %v800, %v816
        %v955 = vmax.f32 %v800, %v817
        %v956 = vmax.f32 %v804, %v815
        %v957 = vmax.f32 %v804, %v816
        %v958 = vmax.f32 %v804, %v817
        %v959 = vmax.f32 %v808, %v815
        %v960 = vmax.f32 %v808, %v816
        %v961 = vmax.f32 %v808, %v817
        %v962 = vmax.f32 %v812, %v815
        %v963 = vmax.f32 %v812, %v816
        %v964 = vmax.f32 %v812, %v817
        %965 = vset.pattern.permute.xlu0 2
        %966 = vperm.xlu0 %965, %v183
        %v967 = vpop.permute.xlu0 %966
        %969 = vset.pattern.permute.xlu0 2
        %970 = vperm.xlu0 %969, %v184
        %v971 = vpop.permute.xlu0 %970
        %973 = vset.pattern.permute.xlu0 2
        %974 = vperm.xlu0 %973, %v185
        %v975 = vpop.permute.xlu0 %974
        %977 = vset.pattern.permute.xlu0 2
        %978 = vperm.xlu0 %977, %v186
        %v979 = vpop.permute.xlu0 %978
        %981 = vset.pattern.permute.xlu0 2
        %982 = vperm.xlu0 %981, %v187
        %v983 = vpop.permute.xlu0 %982
        %985 = vset.pattern.permute.xlu0 2
        %986 = vperm.xlu0 %985, %v188
        %v987 = vpop.permute.xlu0 %986
        %989 = vset.pattern.permute.xlu0 2
        %990 = vperm.xlu0 %989, %v189
        %v991 = vpop.permute.xlu0 %990
        %993 = vset.pattern.permute.xlu0 2
        %994 = vperm.xlu0 %993, %v190
        %v995 = vpop.permute.xlu0 %994
        %997 = vset.pattern.permute.xlu0 2
        %998 = vperm.xlu0 %997, %v191
        %v999 = vpop.permute.xlu0 %998
        %1001 = vset.pattern.permute.xlu0 2
        %1002 = vperm.xlu0 %1001, %v192
        %v1003 = vpop.permute.xlu0 %1002
        %1005 = vset.pattern.permute.xlu0 2
        %1006 = vperm.xlu0 %1005, %v193
        %v1007 = vpop.permute.xlu0 %1006
        %1009 = vset.pattern.permute.xlu0 2
        %1010 = vperm.xlu0 %1009, %v194
        %v1011 = vpop.permute.xlu0 %1010
        %1013 = vset.pattern.permute.xlu0 2
        %1014 = vperm.xlu0 %1013, %v195
        %v1015 = vpop.permute.xlu0 %1014
        %1017 = vset.pattern.permute.xlu0 2
        %1018 = vperm.xlu0 %1017, %v196
        %v1019 = vpop.permute.xlu0 %1018
        %1021 = vset.pattern.permute.xlu0 2
        %1022 = vperm.xlu0 %1021, %v197
        %v1023 = vpop.permute.xlu0 %1022
        %1025 = vset.pattern.permute.xlu0 2
        %1026 = vperm.xlu0 %1025, %v198
        %v1027 = vpop.permute.xlu0 %1026
        %1029 = vset.pattern.permute.xlu0 2
        %1030 = vperm.xlu0 %1029, %v199
        %v1031 = vpop.permute.xlu0 %1030
        %1033 = vset.pattern.permute.xlu0 2
        %1034 = vperm.xlu0 %1033, %v200
        %v1035 = vpop.permute.xlu0 %1034
        %1037 = vset.pattern.permute.xlu0 2
        %1038 = vperm.xlu0 %1037, %v201
        %v1039 = vpop.permute.xlu0 %1038
        %1041 = vset.pattern.permute.xlu0 2
        %1042 = vperm.xlu0 %1041, %v202
        %v1043 = vpop.permute.xlu0 %1042
        %1045 = vset.pattern.permute.xlu0 2
        %1046 = vperm.xlu0 %1045, %v203
        %v1047 = vpop.permute.xlu0 %1046
        %1049 = vset.pattern.permute.xlu0 2
        %1050 = vperm.xlu0 %1049, %v204
        %v1051 = vpop.permute.xlu0 %1050
        %1053 = vset.pattern.permute.xlu0 2
        %1054 = vperm.xlu0 %1053, %v205
        %v1055 = vpop.permute.xlu0 %1054
        %1057 = vset.pattern.permute.xlu0 2
        %1058 = vperm.xlu0 %1057, %v206
        %v1059 = vpop.permute.xlu0 %1058
        %1061 = vset.pattern.permute.xlu0 2
        %1062 = vperm.xlu0 %1061, %v207
        %v1063 = vpop.permute.xlu0 %1062
        %1065 = vset.pattern.permute.xlu0 2
        %1066 = vperm.xlu0 %1065, %v208
        %v1067 = vpop.permute.xlu0 %1066
        %1069 = vset.pattern.permute.xlu0 2
        %1070 = vperm.xlu0 %1069, %v209
        %v1071 = vpop.permute.xlu0 %1070
        %1073 = vset.pattern.permute.xlu0 2
        %1074 = vperm.xlu0 %1073, %v210
        %v1075 = vpop.permute.xlu0 %1074
        %1077 = vset.pattern.permute.xlu0 2
        %1078 = vperm.xlu0 %1077, %v211
        %v1079 = vpop.permute.xlu0 %1078
        %1081 = vset.pattern.permute.xlu0 2
        %1082 = vperm.xlu0 %1081, %v212
        %v1083 = vpop.permute.xlu0 %1082
        %1085 = vset.pattern.permute.xlu0 2
        %1086 = vperm.xlu0 %1085, %v213
        %v1087 = vpop.permute.xlu0 %1086
        %1089 = vset.pattern.permute.xlu0 2
        %1090 = vperm.xlu0 %1089, %v214
        %v1091 = vpop.permute.xlu0 %1090
        %1093 = vset.pattern.permute.xlu0 2
        %1094 = vperm.xlu0 %1093, %v215
        %v1095 = vpop.permute.xlu0 %1094
        %1097 = vset.pattern.permute.xlu0 2
        %1098 = vperm.xlu0 %1097, %v216
        %v1099 = vpop.permute.xlu0 %1098
        %1101 = vset.pattern.permute.xlu0 2
        %1102 = vperm.xlu0 %1101, %v217
        %v1103 = vpop.permute.xlu0 %1102
        %1105 = vset.pattern.permute.xlu0 2
        %1106 = vperm.xlu0 %1105, %v218
        %v1107 = vpop.permute.xlu0 %1106
        %1109 = vset.pattern.permute.xlu0 2
        %1110 = vperm.xlu0 %1109, %v219
        %v1111 = vpop.permute.xlu0 %1110
        %1113 = vset.pattern.permute.xlu0 2
        %1114 = vperm.xlu0 %1113, %v220
        %v1115 = vpop.permute.xlu0 %1114
        %1117 = vset.pattern.permute.xlu0 2
        %1118 = vperm.xlu0 %1117, %v221
        %v1119 = vpop.permute.xlu0 %1118
        %1121 = vset.pattern.permute.xlu0 2
        %1122 = vperm.xlu0 %1121, %v222
        %v1123 = vpop.permute.xlu0 %1122
        %1125 = vset.pattern.permute.xlu0 2
        %1126 = vperm.xlu0 %1125, %v223
        %v1127 = vpop.permute.xlu0 %1126
        %1129 = vset.pattern.permute.xlu0 2
        %1130 = vperm.xlu0 %1129, %v224
        %v1131 = vpop.permute.xlu0 %1130
        %1133 = vset.pattern.permute.xlu0 2
        %1134 = vperm.xlu0 %1133, %v225
        %v1135 = vpop.permute.xlu0 %1134
        %1137 = vset.pattern.permute.xlu0 2
        %1138 = vperm.xlu0 %1137, %v226
        %v1139 = vpop.permute.xlu0 %1138
        %1141 = vset.pattern.permute.xlu0 2
        %1142 = vperm.xlu0 %1141, %v227
        %v1143 = vpop.permute.xlu0 %1142
        %1145 = vset.pattern.permute.xlu0 2
        %1146 = vperm.xlu0 %1145, %v228
        %v1147 = vpop.permute.xlu0 %1146
        %1149 = vset.pattern.permute.xlu0 2
        %1150 = vperm.xlu0 %1149, %v229
        %v1151 = vpop.permute.xlu0 %1150
        %1153 = vset.pattern.permute.xlu0 2
        %1154 = vperm.xlu0 %1153, %v230
        %v1155 = vpop.permute.xlu0 %1154
        %v1158 = vperm.slane %v176, 0
        %v1159 = vperm.slane %v176, 1
        %v1160 = vperm.slane %v176, 2
        %v1164 = vmin.f32 %v967, %v1158
        %v1165 = vmin.f32 %v967, %v1159
        %v1166 = vmin.f32 %v967, %v1160
        %v1167 = vmin.f32 %v971, %v1158
        %v1168 = vmin.f32 %v971, %v1159
        %v1169 = vmin.f32 %v971, %v1160
        %v1170 = vmin.f32 %v975, %v1158
        %v1171 = vmin.f32 %v975, %v1159
        %v1172 = vmin.f32 %v975, %v1160
        %v1173 = vmin.f32 %v979, %v1158
        %v1174 = vmin.f32 %v979, %v1159
        %v1175 = vmin.f32 %v979, %v1160
        %v1176 = vmin.f32 %v983, %v1158
        %v1177 = vmin.f32 %v983, %v1159
        %v1178 = vmin.f32 %v983, %v1160
        %v1179 = vmin.f32 %v987, %v1158
        %v1180 = vmin.f32 %v987, %v1159
        %v1181 = vmin.f32 %v987, %v1160
        %v1182 = vmin.f32 %v991, %v1158
        %v1183 = vmin.f32 %v991, %v1159
        %v1184 = vmin.f32 %v991, %v1160
        %v1185 = vmin.f32 %v995, %v1158
        %v1186 = vmin.f32 %v995, %v1159
        %v1187 = vmin.f32 %v995, %v1160
        %v1188 = vmin.f32 %v999, %v1158
        %v1189 = vmin.f32 %v999, %v1159
        %v1190 = vmin.f32 %v999, %v1160
        %v1191 = vmin.f32 %v1003, %v1158
        %v1192 = vmin.f32 %v1003, %v1159
        %v1193 = vmin.f32 %v1003, %v1160
        %v1194 = vmin.f32 %v1007, %v1158
        %v1195 = vmin.f32 %v1007, %v1159
        %v1196 = vmin.f32 %v1007, %v1160
        %v1197 = vmin.f32 %v1011, %v1158
        %v1198 = vmin.f32 %v1011, %v1159
        %v1199 = vmin.f32 %v1011, %v1160
        %v1200 = vmin.f32 %v1015, %v1158
        %v1201 = vmin.f32 %v1015, %v1159
        %v1202 = vmin.f32 %v1015, %v1160
        %v1203 = vmin.f32 %v1019, %v1158
        %v1204 = vmin.f32 %v1019, %v1159
        %v1205 = vmin.f32 %v1019, %v1160
        %v1206 = vmin.f32 %v1023, %v1158
        %v1207 = vmin.f32 %v1023, %v1159
        %v1208 = vmin.f32 %v1023, %v1160
        %v1209 = vmin.f32 %v1027, %v1158
        %v1210 = vmin.f32 %v1027, %v1159
        %v1211 = vmin.f32 %v1027, %v1160
        %v1212 = vmin.f32 %v1031, %v1158
        %v1213 = vmin.f32 %v1031, %v1159
        %v1214 = vmin.f32 %v1031, %v1160
        %v1215 = vmin.f32 %v1035, %v1158
        %v1216 = vmin.f32 %v1035, %v1159
        %v1217 = vmin.f32 %v1035, %v1160
        %v1218 = vmin.f32 %v1039, %v1158
        %v1219 = vmin.f32 %v1039, %v1159
        %v1220 = vmin.f32 %v1039, %v1160
        %v1221 = vmin.f32 %v1043, %v1158
        %v1222 = vmin.f32 %v1043, %v1159
        %v1223 = vmin.f32 %v1043, %v1160
        %v1224 = vmin.f32 %v1047, %v1158
        %v1225 = vmin.f32 %v1047, %v1159
        %v1226 = vmin.f32 %v1047, %v1160
        %v1227 = vmin.f32 %v1051, %v1158
        %v1228 = vmin.f32 %v1051, %v1159
        %v1229 = vmin.f32 %v1051, %v1160
        %v1230 = vmin.f32 %v1055, %v1158
        %v1231 = vmin.f32 %v1055, %v1159
        %v1232 = vmin.f32 %v1055, %v1160
        %v1233 = vmin.f32 %v1059, %v1158
        %v1234 = vmin.f32 %v1059, %v1159
        %v1235 = vmin.f32 %v1059, %v1160
        %v1236 = vmin.f32 %v1063, %v1158
        %v1237 = vmin.f32 %v1063, %v1159
        %v1238 = vmin.f32 %v1063, %v1160
        %v1239 = vmin.f32 %v1067, %v1158
        %v1240 = vmin.f32 %v1067, %v1159
        %v1241 = vmin.f32 %v1067, %v1160
        %v1242 = vmin.f32 %v1071, %v1158
        %v1243 = vmin.f32 %v1071, %v1159
        %v1244 = vmin.f32 %v1071, %v1160
        %v1245 = vmin.f32 %v1075, %v1158
        %v1246 = vmin.f32 %v1075, %v1159
        %v1247 = vmin.f32 %v1075, %v1160
        %v1248 = vmin.f32 %v1079, %v1158
        %v1249 = vmin.f32 %v1079, %v1159
        %v1250 = vmin.f32 %v1079, %v1160
        %v1251 = vmin.f32 %v1083, %v1158
        %v1252 = vmin.f32 %v1083, %v1159
        %v1253 = vmin.f32 %v1083, %v1160
        %v1254 = vmin.f32 %v1087, %v1158
        %v1255 = vmin.f32 %v1087, %v1159
        %v1256 = vmin.f32 %v1087, %v1160
        %v1257 = vmin.f32 %v1091, %v1158
        %v1258 = vmin.f32 %v1091, %v1159
        %v1259 = vmin.f32 %v1091, %v1160
        %v1260 = vmin.f32 %v1095, %v1158
        %v1261 = vmin.f32 %v1095, %v1159
        %v1262 = vmin.f32 %v1095, %v1160
        %v1263 = vmin.f32 %v1099, %v1158
        %v1264 = vmin.f32 %v1099, %v1159
        %v1265 = vmin.f32 %v1099, %v1160
        %v1266 = vmin.f32 %v1103, %v1158
        %v1267 = vmin.f32 %v1103, %v1159
        %v1268 = vmin.f32 %v1103, %v1160
        %v1269 = vmin.f32 %v1107, %v1158
        %v1270 = vmin.f32 %v1107, %v1159
        %v1271 = vmin.f32 %v1107, %v1160
        %v1272 = vmin.f32 %v1111, %v1158
        %v1273 = vmin.f32 %v1111, %v1159
        %v1274 = vmin.f32 %v1111, %v1160
        %v1275 = vmin.f32 %v1115, %v1158
        %v1276 = vmin.f32 %v1115, %v1159
        %v1277 = vmin.f32 %v1115, %v1160
        %v1278 = vmin.f32 %v1119, %v1158
        %v1279 = vmin.f32 %v1119, %v1159
        %v1280 = vmin.f32 %v1119, %v1160
        %v1281 = vmin.f32 %v1123, %v1158
        %v1282 = vmin.f32 %v1123, %v1159
        %v1283 = vmin.f32 %v1123, %v1160
        %v1284 = vmin.f32 %v1127, %v1158
        %v1285 = vmin.f32 %v1127, %v1159
        %v1286 = vmin.f32 %v1127, %v1160
        %v1287 = vmin.f32 %v1131, %v1158
        %v1288 = vmin.f32 %v1131, %v1159
        %v1289 = vmin.f32 %v1131, %v1160
        %v1290 = vmin.f32 %v1135, %v1158
        %v1291 = vmin.f32 %v1135, %v1159
        %v1292 = vmin.f32 %v1135, %v1160
        %v1293 = vmin.f32 %v1139, %v1158
        %v1294 = vmin.f32 %v1139, %v1159
        %v1295 = vmin.f32 %v1139, %v1160
        %v1296 = vmin.f32 %v1143, %v1158
        %v1297 = vmin.f32 %v1143, %v1159
        %v1298 = vmin.f32 %v1143, %v1160
        %v1299 = vmin.f32 %v1147, %v1158
        %v1300 = vmin.f32 %v1147, %v1159
        %v1301 = vmin.f32 %v1147, %v1160
        %v1302 = vmin.f32 %v1151, %v1158
        %v1303 = vmin.f32 %v1151, %v1159
        %v1304 = vmin.f32 %v1151, %v1160
        %v1305 = vmin.f32 %v1155, %v1158
        %v1306 = vmin.f32 %v1155, %v1159
        %v1307 = vmin.f32 %v1155, %v1160
        %1308 = vset.pattern.permute.xlu0 3
        %1309 = vperm.xlu0 %1308, %v183
        %v1310 = vpop.permute.xlu0 %1309
        %1312 = vset.pattern.permute.xlu0 3
        %1313 = vperm.xlu0 %1312, %v184
        %v1314 = vpop.permute.xlu0 %1313
        %1316 = vset.pattern.permute.xlu0 3
        %1317 = vperm.xlu0 %1316, %v185
        %v1318 = vpop.permute.xlu0 %1317
        %1320 = vset.pattern.permute.xlu0 3
        %1321 = vperm.xlu0 %1320, %v186
        %v1322 = vpop.permute.xlu0 %1321
        %1324 = vset.pattern.permute.xlu0 3
        %1325 = vperm.xlu0 %1324, %v187
        %v1326 = vpop.permute.xlu0 %1325
        %1328 = vset.pattern.permute.xlu0 3
        %1329 = vperm.xlu0 %1328, %v188
        %v1330 = vpop.permute.xlu0 %1329
        %1332 = vset.pattern.permute.xlu0 3
        %1333 = vperm.xlu0 %1332, %v189
        %v1334 = vpop.permute.xlu0 %1333
        %1336 = vset.pattern.permute.xlu0 3
        %1337 = vperm.xlu0 %1336, %v190
        %v1338 = vpop.permute.xlu0 %1337
        %1340 = vset.pattern.permute.xlu0 3
        %1341 = vperm.xlu0 %1340, %v191
        %v1342 = vpop.permute.xlu0 %1341
        %1344 = vset.pattern.permute.xlu0 3
        %1345 = vperm.xlu0 %1344, %v192
        %v1346 = vpop.permute.xlu0 %1345
        %1348 = vset.pattern.permute.xlu0 3
        %1349 = vperm.xlu0 %1348, %v193
        %v1350 = vpop.permute.xlu0 %1349
        %1352 = vset.pattern.permute.xlu0 3
        %1353 = vperm.xlu0 %1352, %v194
        %v1354 = vpop.permute.xlu0 %1353
        %1356 = vset.pattern.permute.xlu0 3
        %1357 = vperm.xlu0 %1356, %v195
        %v1358 = vpop.permute.xlu0 %1357
        %1360 = vset.pattern.permute.xlu0 3
        %1361 = vperm.xlu0 %1360, %v196
        %v1362 = vpop.permute.xlu0 %1361
        %1364 = vset.pattern.permute.xlu0 3
        %1365 = vperm.xlu0 %1364, %v197
        %v1366 = vpop.permute.xlu0 %1365
        %1368 = vset.pattern.permute.xlu0 3
        %1369 = vperm.xlu0 %1368, %v198
        %v1370 = vpop.permute.xlu0 %1369
        %1372 = vset.pattern.permute.xlu0 3
        %1373 = vperm.xlu0 %1372, %v199
        %v1374 = vpop.permute.xlu0 %1373
        %1376 = vset.pattern.permute.xlu0 3
        %1377 = vperm.xlu0 %1376, %v200
        %v1378 = vpop.permute.xlu0 %1377
        %1380 = vset.pattern.permute.xlu0 3
        %1381 = vperm.xlu0 %1380, %v201
        %v1382 = vpop.permute.xlu0 %1381
        %1384 = vset.pattern.permute.xlu0 3
        %1385 = vperm.xlu0 %1384, %v202
        %v1386 = vpop.permute.xlu0 %1385
        %1388 = vset.pattern.permute.xlu0 3
        %1389 = vperm.xlu0 %1388, %v203
        %v1390 = vpop.permute.xlu0 %1389
        %1392 = vset.pattern.permute.xlu0 3
        %1393 = vperm.xlu0 %1392, %v204
        %v1394 = vpop.permute.xlu0 %1393
        %1396 = vset.pattern.permute.xlu0 3
        %1397 = vperm.xlu0 %1396, %v205
        %v1398 = vpop.permute.xlu0 %1397
        %1400 = vset.pattern.permute.xlu0 3
        %1401 = vperm.xlu0 %1400, %v206
        %v1402 = vpop.permute.xlu0 %1401
        %1404 = vset.pattern.permute.xlu0 3
        %1405 = vperm.xlu0 %1404, %v207
        %v1406 = vpop.permute.xlu0 %1405
        %1408 = vset.pattern.permute.xlu0 3
        %1409 = vperm.xlu0 %1408, %v208
        %v1410 = vpop.permute.xlu0 %1409
        %1412 = vset.pattern.permute.xlu0 3
        %1413 = vperm.xlu0 %1412, %v209
        %v1414 = vpop.permute.xlu0 %1413
        %1416 = vset.pattern.permute.xlu0 3
        %1417 = vperm.xlu0 %1416, %v210
        %v1418 = vpop.permute.xlu0 %1417
        %1420 = vset.pattern.permute.xlu0 3
        %1421 = vperm.xlu0 %1420, %v211
        %v1422 = vpop.permute.xlu0 %1421
        %1424 = vset.pattern.permute.xlu0 3
        %1425 = vperm.xlu0 %1424, %v212
        %v1426 = vpop.permute.xlu0 %1425
        %1428 = vset.pattern.permute.xlu0 3
        %1429 = vperm.xlu0 %1428, %v213
        %v1430 = vpop.permute.xlu0 %1429
        %1432 = vset.pattern.permute.xlu0 3
        %1433 = vperm.xlu0 %1432, %v214
        %v1434 = vpop.permute.xlu0 %1433
        %1436 = vset.pattern.permute.xlu0 3
        %1437 = vperm.xlu0 %1436, %v215
        %v1438 = vpop.permute.xlu0 %1437
        %1440 = vset.pattern.permute.xlu0 3
        %1441 = vperm.xlu0 %1440, %v216
        %v1442 = vpop.permute.xlu0 %1441
        %1444 = vset.pattern.permute.xlu0 3
        %1445 = vperm.xlu0 %1444, %v217
        %v1446 = vpop.permute.xlu0 %1445
        %1448 = vset.pattern.permute.xlu0 3
        %1449 = vperm.xlu0 %1448, %v218
        %v1450 = vpop.permute.xlu0 %1449
        %1452 = vset.pattern.permute.xlu0 3
        %1453 = vperm.xlu0 %1452, %v219
        %v1454 = vpop.permute.xlu0 %1453
        %1456 = vset.pattern.permute.xlu0 3
        %1457 = vperm.xlu0 %1456, %v220
        %v1458 = vpop.permute.xlu0 %1457
        %1460 = vset.pattern.permute.xlu0 3
        %1461 = vperm.xlu0 %1460, %v221
        %v1462 = vpop.permute.xlu0 %1461
        %1464 = vset.pattern.permute.xlu0 3
        %1465 = vperm.xlu0 %1464, %v222
        %v1466 = vpop.permute.xlu0 %1465
        %1468 = vset.pattern.permute.xlu0 3
        %1469 = vperm.xlu0 %1468, %v223
        %v1470 = vpop.permute.xlu0 %1469
        %1472 = vset.pattern.permute.xlu0 3
        %1473 = vperm.xlu0 %1472, %v224
        %v1474 = vpop.permute.xlu0 %1473
        %1476 = vset.pattern.permute.xlu0 3
        %1477 = vperm.xlu0 %1476, %v225
        %v1478 = vpop.permute.xlu0 %1477
        %1480 = vset.pattern.permute.xlu0 3
        %1481 = vperm.xlu0 %1480, %v226
        %v1482 = vpop.permute.xlu0 %1481
        %1484 = vset.pattern.permute.xlu0 3
        %1485 = vperm.xlu0 %1484, %v227
        %v1486 = vpop.permute.xlu0 %1485
        %1488 = vset.pattern.permute.xlu0 3
        %1489 = vperm.xlu0 %1488, %v228
        %v1490 = vpop.permute.xlu0 %1489
        %1492 = vset.pattern.permute.xlu0 3
        %1493 = vperm.xlu0 %1492, %v229
        %v1494 = vpop.permute.xlu0 %1493
        %1496 = vset.pattern.permute.xlu0 3
        %1497 = vperm.xlu0 %1496, %v230
        %v1498 = vpop.permute.xlu0 %1497
        %v1501 = vperm.slane %v178, 0
        %v1502 = vperm.slane %v178, 1
        %v1503 = vperm.slane %v178, 2
        %v1507 = vmin.f32 %v1310, %v1501
        %v1508 = vmin.f32 %v1310, %v1502
        %v1509 = vmin.f32 %v1310, %v1503
        %v1510 = vmin.f32 %v1314, %v1501
        %v1511 = vmin.f32 %v1314, %v1502
        %v1512 = vmin.f32 %v1314, %v1503
        %v1513 = vmin.f32 %v1318, %v1501
        %v1514 = vmin.f32 %v1318, %v1502
        %v1515 = vmin.f32 %v1318, %v1503
        %v1516 = vmin.f32 %v1322, %v1501
        %v1517 = vmin.f32 %v1322, %v1502
        %v1518 = vmin.f32 %v1322, %v1503
        %v1519 = vmin.f32 %v1326, %v1501
        %v1520 = vmin.f32 %v1326, %v1502
        %v1521 = vmin.f32 %v1326, %v1503
        %v1522 = vmin.f32 %v1330, %v1501
        %v1523 = vmin.f32 %v1330, %v1502
        %v1524 = vmin.f32 %v1330, %v1503
        %v1525 = vmin.f32 %v1334, %v1501
        %v1526 = vmin.f32 %v1334, %v1502
        %v1527 = vmin.f32 %v1334, %v1503
        %v1528 = vmin.f32 %v1338, %v1501
        %v1529 = vmin.f32 %v1338, %v1502
        %v1530 = vmin.f32 %v1338, %v1503
        %v1531 = vmin.f32 %v1342, %v1501
        %v1532 = vmin.f32 %v1342, %v1502
        %v1533 = vmin.f32 %v1342, %v1503
        %v1534 = vmin.f32 %v1346, %v1501
        %v1535 = vmin.f32 %v1346, %v1502
        %v1536 = vmin.f32 %v1346, %v1503
        %v1537 = vmin.f32 %v1350, %v1501
        %v1538 = vmin.f32 %v1350, %v1502
        %v1539 = vmin.f32 %v1350, %v1503
        %v1540 = vmin.f32 %v1354, %v1501
        %v1541 = vmin.f32 %v1354, %v1502
        %v1542 = vmin.f32 %v1354, %v1503
        %v1543 = vmin.f32 %v1358, %v1501
        %v1544 = vmin.f32 %v1358, %v1502
        %v1545 = vmin.f32 %v1358, %v1503
        %v1546 = vmin.f32 %v1362, %v1501
        %v1547 = vmin.f32 %v1362, %v1502
        %v1548 = vmin.f32 %v1362, %v1503
        %v1549 = vmin.f32 %v1366, %v1501
        %v1550 = vmin.f32 %v1366, %v1502
        %v1551 = vmin.f32 %v1366, %v1503
        %v1552 = vmin.f32 %v1370, %v1501
        %v1553 = vmin.f32 %v1370, %v1502
        %v1554 = vmin.f32 %v1370, %v1503
        %v1555 = vmin.f32 %v1374, %v1501
        %v1556 = vmin.f32 %v1374, %v1502
        %v1557 = vmin.f32 %v1374, %v1503
        %v1558 = vmin.f32 %v1378, %v1501
        %v1559 = vmin.f32 %v1378, %v1502
        %v1560 = vmin.f32 %v1378, %v1503
        %v1561 = vmin.f32 %v1382, %v1501
        %v1562 = vmin.f32 %v1382, %v1502
        %v1563 = vmin.f32 %v1382, %v1503
        %v1564 = vmin.f32 %v1386, %v1501
        %v1565 = vmin.f32 %v1386, %v1502
        %v1566 = vmin.f32 %v1386, %v1503
        %v1567 = vmin.f32 %v1390, %v1501
        %v1568 = vmin.f32 %v1390, %v1502
        %v1569 = vmin.f32 %v1390, %v1503
        %v1570 = vmin.f32 %v1394, %v1501
        %v1571 = vmin.f32 %v1394, %v1502
        %v1572 = vmin.f32 %v1394, %v1503
        %v1573 = vmin.f32 %v1398, %v1501
        %v1574 = vmin.f32 %v1398, %v1502
        %v1575 = vmin.f32 %v1398, %v1503
        %v1576 = vmin.f32 %v1402, %v1501
        %v1577 = vmin.f32 %v1402, %v1502
        %v1578 = vmin.f32 %v1402, %v1503
        %v1579 = vmin.f32 %v1406, %v1501
        %v1580 = vmin.f32 %v1406, %v1502
        %v1581 = vmin.f32 %v1406, %v1503
        %v1582 = vmin.f32 %v1410, %v1501
        %v1583 = vmin.f32 %v1410, %v1502
        %v1584 = vmin.f32 %v1410, %v1503
        %v1585 = vmin.f32 %v1414, %v1501
        %v1586 = vmin.f32 %v1414, %v1502
        %v1587 = vmin.f32 %v1414, %v1503
        %v1588 = vmin.f32 %v1418, %v1501
        %v1589 = vmin.f32 %v1418, %v1502
        %v1590 = vmin.f32 %v1418, %v1503
        %v1591 = vmin.f32 %v1422, %v1501
        %v1592 = vmin.f32 %v1422, %v1502
        %v1593 = vmin.f32 %v1422, %v1503
        %v1594 = vmin.f32 %v1426, %v1501
        %v1595 = vmin.f32 %v1426, %v1502
        %v1596 = vmin.f32 %v1426, %v1503
        %v1597 = vmin.f32 %v1430, %v1501
        %v1598 = vmin.f32 %v1430, %v1502
        %v1599 = vmin.f32 %v1430, %v1503
        %v1600 = vmin.f32 %v1434, %v1501
        %v1601 = vmin.f32 %v1434, %v1502
        %v1602 = vmin.f32 %v1434, %v1503
        %v1603 = vmin.f32 %v1438, %v1501
        %v1604 = vmin.f32 %v1438, %v1502
        %v1605 = vmin.f32 %v1438, %v1503
        %v1606 = vmin.f32 %v1442, %v1501
        %v1607 = vmin.f32 %v1442, %v1502
        %v1608 = vmin.f32 %v1442, %v1503
        %v1609 = vmin.f32 %v1446, %v1501
        %v1610 = vmin.f32 %v1446, %v1502
        %v1611 = vmin.f32 %v1446, %v1503
        %v1612 = vmin.f32 %v1450, %v1501
        %v1613 = vmin.f32 %v1450, %v1502
        %v1614 = vmin.f32 %v1450, %v1503
        %v1615 = vmin.f32 %v1454, %v1501
        %v1616 = vmin.f32 %v1454, %v1502
        %v1617 = vmin.f32 %v1454, %v1503
        %v1618 = vmin.f32 %v1458, %v1501
        %v1619 = vmin.f32 %v1458, %v1502
        %v1620 = vmin.f32 %v1458, %v1503
        %v1621 = vmin.f32 %v1462, %v1501
        %v1622 = vmin.f32 %v1462, %v1502
        %v1623 = vmin.f32 %v1462, %v1503
        %v1624 = vmin.f32 %v1466, %v1501
        %v1625 = vmin.f32 %v1466, %v1502
        %v1626 = vmin.f32 %v1466, %v1503
        %v1627 = vmin.f32 %v1470, %v1501
        %v1628 = vmin.f32 %v1470, %v1502
        %v1629 = vmin.f32 %v1470, %v1503
        %v1630 = vmin.f32 %v1474, %v1501
        %v1631 = vmin.f32 %v1474, %v1502
        %v1632 = vmin.f32 %v1474, %v1503
        %v1633 = vmin.f32 %v1478, %v1501
        %v1634 = vmin.f32 %v1478, %v1502
        %v1635 = vmin.f32 %v1478, %v1503
        %v1636 = vmin.f32 %v1482, %v1501
        %v1637 = vmin.f32 %v1482, %v1502
        %v1638 = vmin.f32 %v1482, %v1503
        %v1639 = vmin.f32 %v1486, %v1501
        %v1640 = vmin.f32 %v1486, %v1502
        %v1641 = vmin.f32 %v1486, %v1503
        %v1642 = vmin.f32 %v1490, %v1501
        %v1643 = vmin.f32 %v1490, %v1502
        %v1644 = vmin.f32 %v1490, %v1503
        %v1645 = vmin.f32 %v1494, %v1501
        %v1646 = vmin.f32 %v1494, %v1502
        %v1647 = vmin.f32 %v1494, %v1503
        %v1648 = vmin.f32 %v1498, %v1501
        %v1649 = vmin.f32 %v1498, %v1502
        %v1650 = vmin.f32 %v1498, %v1503
        %v1651 = vsub.f32 %v1164, %v478
        %v1652 = vsub.f32 %v1165, %v479
        %v1653 = vsub.f32 %v1166, %v480
        %v1654 = vsub.f32 %v1167, %v481
        %v1655 = vsub.f32 %v1168, %v482
        %v1656 = vsub.f32 %v1169, %v483
        %v1657 = vsub.f32 %v1170, %v484
        %v1658 = vsub.f32 %v1171, %v485
        %v1659 = vsub.f32 %v1172, %v486
        %v1660 = vsub.f32 %v1173, %v487
        %v1661 = vsub.f32 %v1174, %v488
        %v1662 = vsub.f32 %v1175, %v489
        %v1663 = vsub.f32 %v1176, %v490
        %v1664 = vsub.f32 %v1177, %v491
        %v1665 = vsub.f32 %v1178, %v492
        %v1666 = vsub.f32 %v1179, %v493
        %v1667 = vsub.f32 %v1180, %v494
        %v1668 = vsub.f32 %v1181, %v495
        %v1669 = vsub.f32 %v1182, %v496
        %v1670 = vsub.f32 %v1183, %v497
        %v1671 = vsub.f32 %v1184, %v498
        %v1672 = vsub.f32 %v1185, %v499
        %v1673 = vsub.f32 %v1186, %v500
        %v1674 = vsub.f32 %v1187, %v501
        %v1675 = vsub.f32 %v1188, %v502
        %v1676 = vsub.f32 %v1189, %v503
        %v1677 = vsub.f32 %v1190, %v504
        %v1678 = vsub.f32 %v1191, %v505
        %v1679 = vsub.f32 %v1192, %v506
        %v1680 = vsub.f32 %v1193, %v507
        %v1681 = vsub.f32 %v1194, %v508
        %v1682 = vsub.f32 %v1195, %v509
        %v1683 = vsub.f32 %v1196, %v510
        %v1684 = vsub.f32 %v1197, %v511
        %v1685 = vsub.f32 %v1198, %v512
        %v1686 = vsub.f32 %v1199, %v513
        %v1687 = vsub.f32 %v1200, %v514
        %v1688 = vsub.f32 %v1201, %v515
        %v1689 = vsub.f32 %v1202, %v516
        %v1690 = vsub.f32 %v1203, %v517
        %v1691 = vsub.f32 %v1204, %v518
        %v1692 = vsub.f32 %v1205, %v519
        %v1693 = vsub.f32 %v1206, %v520
        %v1694 = vsub.f32 %v1207, %v521
        %v1695 = vsub.f32 %v1208, %v522
        %v1696 = vsub.f32 %v1209, %v523
        %v1697 = vsub.f32 %v1210, %v524
        %v1698 = vsub.f32 %v1211, %v525
        %v1699 = vsub.f32 %v1212, %v526
        %v1700 = vsub.f32 %v1213, %v527
        %v1701 = vsub.f32 %v1214, %v528
        %v1702 = vsub.f32 %v1215, %v529
        %v1703 = vsub.f32 %v1216, %v530
        %v1704 = vsub.f32 %v1217, %v531
        %v1705 = vsub.f32 %v1218, %v532
        %v1706 = vsub.f32 %v1219, %v533
        %v1707 = vsub.f32 %v1220, %v534
        %v1708 = vsub.f32 %v1221, %v535
        %v1709 = vsub.f32 %v1222, %v536
        %v1710 = vsub.f32 %v1223, %v537
        %v1711 = vsub.f32 %v1224, %v538
        %v1712 = vsub.f32 %v1225, %v539
        %v1713 = vsub.f32 %v1226, %v540
        %v1714 = vsub.f32 %v1227, %v541
        %v1715 = vsub.f32 %v1228, %v542
        %v1716 = vsub.f32 %v1229, %v543
        %v1717 = vsub.f32 %v1230, %v544
        %v1718 = vsub.f32 %v1231, %v545
        %v1719 = vsub.f32 %v1232, %v546
        %v1720 = vsub.f32 %v1233, %v547
        %v1721 = vsub.f32 %v1234, %v548
        %v1722 = vsub.f32 %v1235, %v549
        %v1723 = vsub.f32 %v1236, %v550
        %v1724 = vsub.f32 %v1237, %v551
        %v1725 = vsub.f32 %v1238, %v552
        %v1726 = vsub.f32 %v1239, %v553
        %v1727 = vsub.f32 %v1240, %v554
        %v1728 = vsub.f32 %v1241, %v555
        %v1729 = vsub.f32 %v1242, %v556
        %v1730 = vsub.f32 %v1243, %v557
        %v1731 = vsub.f32 %v1244, %v558
        %v1732 = vsub.f32 %v1245, %v559
        %v1733 = vsub.f32 %v1246, %v560
        %v1734 = vsub.f32 %v1247, %v561
        %v1735 = vsub.f32 %v1248, %v562
        %v1736 = vsub.f32 %v1249, %v563
        %v1737 = vsub.f32 %v1250, %v564
        %v1738 = vsub.f32 %v1251, %v565
        %v1739 = vsub.f32 %v1252, %v566
        %v1740 = vsub.f32 %v1253, %v567
        %v1741 = vsub.f32 %v1254, %v568
        %v1742 = vsub.f32 %v1255, %v569
        %v1743 = vsub.f32 %v1256, %v570
        %v1744 = vsub.f32 %v1257, %v571
        %v1745 = vsub.f32 %v1258, %v572
        %v1746 = vsub.f32 %v1259, %v573
        %v1747 = vsub.f32 %v1260, %v574
        %v1748 = vsub.f32 %v1261, %v575
        %v1749 = vsub.f32 %v1262, %v576
        %v1750 = vsub.f32 %v1263, %v577
        %v1751 = vsub.f32 %v1264, %v578
        %v1752 = vsub.f32 %v1265, %v579
        %v1753 = vsub.f32 %v1266, %v580
        %v1754 = vsub.f32 %v1267, %v581
        %v1755 = vsub.f32 %v1268, %v582
        %v1756 = vsub.f32 %v1269, %v583
        %v1757 = vsub.f32 %v1270, %v584
        %v1758 = vsub.f32 %v1271, %v585
        %v1759 = vsub.f32 %v1272, %v586
        %v1760 = vsub.f32 %v1273, %v587
        %v1761 = vsub.f32 %v1274, %v588
        %v1762 = vsub.f32 %v1275, %v589
        %v1763 = vsub.f32 %v1276, %v590
        %v1764 = vsub.f32 %v1277, %v591
        %v1765 = vsub.f32 %v1278, %v592
        %v1766 = vsub.f32 %v1279, %v593
        %v1767 = vsub.f32 %v1280, %v594
        %v1768 = vsub.f32 %v1281, %v595
        %v1769 = vsub.f32 %v1282, %v596
        %v1770 = vsub.f32 %v1283, %v597
        %v1771 = vsub.f32 %v1284, %v598
        %v1772 = vsub.f32 %v1285, %v599
        %v1773 = vsub.f32 %v1286, %v600
        %v1774 = vsub.f32 %v1287, %v601
        %v1775 = vsub.f32 %v1288, %v602
        %v1776 = vsub.f32 %v1289, %v603
        %v1777 = vsub.f32 %v1290, %v604
        %v1778 = vsub.f32 %v1291, %v605
        %v1779 = vsub.f32 %v1292, %v606
        %v1780 = vsub.f32 %v1293, %v607
        %v1781 = vsub.f32 %v1294, %v608
        %v1782 = vsub.f32 %v1295, %v609
        %v1783 = vsub.f32 %v1296, %v610
        %v1784 = vsub.f32 %v1297, %v611
        %v1785 = vsub.f32 %v1298, %v612
        %v1786 = vsub.f32 %v1299, %v613
        %v1787 = vsub.f32 %v1300, %v614
        %v1788 = vsub.f32 %v1301, %v615
        %v1789 = vsub.f32 %v1302, %v616
        %v1790 = vsub.f32 %v1303, %v617
        %v1791 = vsub.f32 %v1304, %v618
        %v1792 = vsub.f32 %v1305, %v619
        %v1793 = vsub.f32 %v1306, %v620
        %v1794 = vsub.f32 %v1307, %v621
        %v1795 = vmax.f32 %v1651, 0.0
        %v1796 = vmax.f32 %v1652, 0.0
        %v1797 = vmax.f32 %v1653, 0.0
        %v1798 = vmax.f32 %v1654, 0.0
        %v1799 = vmax.f32 %v1655, 0.0
        %v1800 = vmax.f32 %v1656, 0.0
        %v1801 = vmax.f32 %v1657, 0.0
        %v1802 = vmax.f32 %v1658, 0.0
        %v1803 = vmax.f32 %v1659, 0.0
        %v1804 = vmax.f32 %v1660, 0.0
        %v1805 = vmax.f32 %v1661, 0.0
        %v1806 = vmax.f32 %v1662, 0.0
        %v1807 = vmax.f32 %v1663, 0.0
        %v1808 = vmax.f32 %v1664, 0.0
        %v1809 = vmax.f32 %v1665, 0.0
        %v1810 = vmax.f32 %v1666, 0.0
        %v1811 = vmax.f32 %v1667, 0.0
        %v1812 = vmax.f32 %v1668, 0.0
        %v1813 = vmax.f32 %v1669, 0.0
        %v1814 = vmax.f32 %v1670, 0.0
        %v1815 = vmax.f32 %v1671, 0.0
        %v1816 = vmax.f32 %v1672, 0.0
        %v1817 = vmax.f32 %v1673, 0.0
        %v1818 = vmax.f32 %v1674, 0.0
        %v1819 = vmax.f32 %v1675, 0.0
        %v1820 = vmax.f32 %v1676, 0.0
        %v1821 = vmax.f32 %v1677, 0.0
        %v1822 = vmax.f32 %v1678, 0.0
        %v1823 = vmax.f32 %v1679, 0.0
        %v1824 = vmax.f32 %v1680, 0.0
        %v1825 = vmax.f32 %v1681, 0.0
        %v1826 = vmax.f32 %v1682, 0.0
        %v1827 = vmax.f32 %v1683, 0.0
        %v1828 = vmax.f32 %v1684, 0.0
        %v1829 = vmax.f32 %v1685, 0.0
        %v1830 = vmax.f32 %v1686, 0.0
        %v1831 = vmax.f32 %v1687, 0.0
        %v1832 = vmax.f32 %v1688, 0.0
        %v1833 = vmax.f32 %v1689, 0.0
        %v1834 = vmax.f32 %v1690, 0.0
        %v1835 = vmax.f32 %v1691, 0.0
        %v1836 = vmax.f32 %v1692, 0.0
        %v1837 = vmax.f32 %v1693, 0.0
        %v1838 = vmax.f32 %v1694, 0.0
        %v1839 = vmax.f32 %v1695, 0.0
        %v1840 = vmax.f32 %v1696, 0.0
        %v1841 = vmax.f32 %v1697, 0.0
        %v1842 = vmax.f32 %v1698, 0.0
        %v1843 = vmax.f32 %v1699, 0.0
        %v1844 = vmax.f32 %v1700, 0.0
        %v1845 = vmax.f32 %v1701, 0.0
        %v1846 = vmax.f32 %v1702, 0.0
        %v1847 = vmax.f32 %v1703, 0.0
        %v1848 = vmax.f32 %v1704, 0.0
        %v1849 = vmax.f32 %v1705, 0.0
        %v1850 = vmax.f32 %v1706, 0.0
        %v1851 = vmax.f32 %v1707, 0.0
        %v1852 = vmax.f32 %v1708, 0.0
        %v1853 = vmax.f32 %v1709, 0.0
        %v1854 = vmax.f32 %v1710, 0.0
        %v1855 = vmax.f32 %v1711, 0.0
        %v1856 = vmax.f32 %v1712, 0.0
        %v1857 = vmax.f32 %v1713, 0.0
        %v1858 = vmax.f32 %v1714, 0.0
        %v1859 = vmax.f32 %v1715, 0.0
        %v1860 = vmax.f32 %v1716, 0.0
        %v1861 = vmax.f32 %v1717, 0.0
        %v1862 = vmax.f32 %v1718, 0.0
        %v1863 = vmax.f32 %v1719, 0.0
        %v1864 = vmax.f32 %v1720, 0.0
        %v1865 = vmax.f32 %v1721, 0.0
        %v1866 = vmax.f32 %v1722, 0.0
        %v1867 = vmax.f32 %v1723, 0.0
        %v1868 = vmax.f32 %v1724, 0.0
        %v1869 = vmax.f32 %v1725, 0.0
        %v1870 = vmax.f32 %v1726, 0.0
        %v1871 = vmax.f32 %v1727, 0.0
        %v1872 = vmax.f32 %v1728, 0.0
        %v1873 = vmax.f32 %v1729, 0.0
        %v1874 = vmax.f32 %v1730, 0.0
        %v1875 = vmax.f32 %v1731, 0.0
        %v1876 = vmax.f32 %v1732, 0.0
        %v1877 = vmax.f32 %v1733, 0.0
        %v1878 = vmax.f32 %v1734, 0.0
        %v1879 = vmax.f32 %v1735, 0.0
        %v1880 = vmax.f32 %v1736, 0.0
        %v1881 = vmax.f32 %v1737, 0.0
        %v1882 = vmax.f32 %v1738, 0.0
        %v1883 = vmax.f32 %v1739, 0.0
        %v1884 = vmax.f32 %v1740, 0.0
        %v1885 = vmax.f32 %v1741, 0.0
        %v1886 = vmax.f32 %v1742, 0.0
        %v1887 = vmax.f32 %v1743, 0.0
        %v1888 = vmax.f32 %v1744, 0.0
        %v1889 = vmax.f32 %v1745, 0.0
        %v1890 = vmax.f32 %v1746, 0.0
        %v1891 = vmax.f32 %v1747, 0.0
        %v1892 = vmax.f32 %v1748, 0.0
        %v1893 = vmax.f32 %v1749, 0.0
        %v1894 = vmax.f32 %v1750, 0.0
        %v1895 = vmax.f32 %v1751, 0.0
        %v1896 = vmax.f32 %v1752, 0.0
        %v1897 = vmax.f32 %v1753, 0.0
        %v1898 = vmax.f32 %v1754, 0.0
        %v1899 = vmax.f32 %v1755, 0.0
        %v1900 = vmax.f32 %v1756, 0.0
        %v1901 = vmax.f32 %v1757, 0.0
        %v1902 = vmax.f32 %v1758, 0.0
        %v1903 = vmax.f32 %v1759, 0.0
        %v1904 = vmax.f32 %v1760, 0.0
        %v1905 = vmax.f32 %v1761, 0.0
        %v1906 = vmax.f32 %v1762, 0.0
        %v1907 = vmax.f32 %v1763, 0.0
        %v1908 = vmax.f32 %v1764, 0.0
        %v1909 = vmax.f32 %v1765, 0.0
        %v1910 = vmax.f32 %v1766, 0.0
        %v1911 = vmax.f32 %v1767, 0.0
        %v1912 = vmax.f32 %v1768, 0.0
        %v1913 = vmax.f32 %v1769, 0.0
        %v1914 = vmax.f32 %v1770, 0.0
        %v1915 = vmax.f32 %v1771, 0.0
        %v1916 = vmax.f32 %v1772, 0.0
        %v1917 = vmax.f32 %v1773, 0.0
        %v1918 = vmax.f32 %v1774, 0.0
        %v1919 = vmax.f32 %v1775, 0.0
        %v1920 = vmax.f32 %v1776, 0.0
        %v1921 = vmax.f32 %v1777, 0.0
        %v1922 = vmax.f32 %v1778, 0.0
        %v1923 = vmax.f32 %v1779, 0.0
        %v1924 = vmax.f32 %v1780, 0.0
        %v1925 = vmax.f32 %v1781, 0.0
        %v1926 = vmax.f32 %v1782, 0.0
        %v1927 = vmax.f32 %v1783, 0.0
        %v1928 = vmax.f32 %v1784, 0.0
        %v1929 = vmax.f32 %v1785, 0.0
        %v1930 = vmax.f32 %v1786, 0.0
        %v1931 = vmax.f32 %v1787, 0.0
        %v1932 = vmax.f32 %v1788, 0.0
        %v1933 = vmax.f32 %v1789, 0.0
        %v1934 = vmax.f32 %v1790, 0.0
        %v1935 = vmax.f32 %v1791, 0.0
        %v1936 = vmax.f32 %v1792, 0.0
        %v1937 = vmax.f32 %v1793, 0.0
        %v1938 = vmax.f32 %v1794, 0.0
        %v1939 = vsub.f32 %v1507, %v821
        %v1940 = vsub.f32 %v1508, %v822
        %v1941 = vsub.f32 %v1509, %v823
        %v1942 = vsub.f32 %v1510, %v824
        %v1943 = vsub.f32 %v1511, %v825
        %v1944 = vsub.f32 %v1512, %v826
        %v1945 = vsub.f32 %v1513, %v827
        %v1946 = vsub.f32 %v1514, %v828
        %v1947 = vsub.f32 %v1515, %v829
        %v1948 = vsub.f32 %v1516, %v830
        %v1949 = vsub.f32 %v1517, %v831
        %v1950 = vsub.f32 %v1518, %v832
        %v1951 = vsub.f32 %v1519, %v833
        %v1952 = vsub.f32 %v1520, %v834
        %v1953 = vsub.f32 %v1521, %v835
        %v1954 = vsub.f32 %v1522, %v836
        %v1955 = vsub.f32 %v1523, %v837
        %v1956 = vsub.f32 %v1524, %v838
        %v1957 = vsub.f32 %v1525, %v839
        %v1958 = vsub.f32 %v1526, %v840
        %v1959 = vsub.f32 %v1527, %v841
        %v1960 = vsub.f32 %v1528, %v842
        %v1961 = vsub.f32 %v1529, %v843
        %v1962 = vsub.f32 %v1530, %v844
        %v1963 = vsub.f32 %v1531, %v845
        %v1964 = vsub.f32 %v1532, %v846
        %v1965 = vsub.f32 %v1533, %v847
        %v1966 = vsub.f32 %v1534, %v848
        %v1967 = vsub.f32 %v1535, %v849
        %v1968 = vsub.f32 %v1536, %v850
        %v1969 = vsub.f32 %v1537, %v851
        %v1970 = vsub.f32 %v1538, %v852
        %v1971 = vsub.f32 %v1539, %v853
        %v1972 = vsub.f32 %v1540, %v854
        %v1973 = vsub.f32 %v1541, %v855
        %v1974 = vsub.f32 %v1542, %v856
        %v1975 = vsub.f32 %v1543, %v857
        %v1976 = vsub.f32 %v1544, %v858
        %v1977 = vsub.f32 %v1545, %v859
        %v1978 = vsub.f32 %v1546, %v860
        %v1979 = vsub.f32 %v1547, %v861
        %v1980 = vsub.f32 %v1548, %v862
        %v1981 = vsub.f32 %v1549, %v863
        %v1982 = vsub.f32 %v1550, %v864
        %v1983 = vsub.f32 %v1551, %v865
        %v1984 = vsub.f32 %v1552, %v866
        %v1985 = vsub.f32 %v1553, %v867
        %v1986 = vsub.f32 %v1554, %v868
        %v1987 = vsub.f32 %v1555, %v869
        %v1988 = vsub.f32 %v1556, %v870
        %v1989 = vsub.f32 %v1557, %v871
        %v1990 = vsub.f32 %v1558, %v872
        %v1991 = vsub.f32 %v1559, %v873
        %v1992 = vsub.f32 %v1560, %v874
        %v1993 = vsub.f32 %v1561, %v875
        %v1994 = vsub.f32 %v1562, %v876
        %v1995 = vsub.f32 %v1563, %v877
        %v1996 = vsub.f32 %v1564, %v878
        %v1997 = vsub.f32 %v1565, %v879
        %v1998 = vsub.f32 %v1566, %v880
        %v1999 = vsub.f32 %v1567, %v881
        %v2000 = vsub.f32 %v1568, %v882
        %v2001 = vsub.f32 %v1569, %v883
        %v2002 = vsub.f32 %v1570, %v884
        %v2003 = vsub.f32 %v1571, %v885
        %v2004 = vsub.f32 %v1572, %v886
        %v2005 = vsub.f32 %v1573, %v887
        %v2006 = vsub.f32 %v1574, %v888
        %v2007 = vsub.f32 %v1575, %v889
        %v2008 = vsub.f32 %v1576, %v890
        %v2009 = vsub.f32 %v1577, %v891
        %v2010 = vsub.f32 %v1578, %v892
        %v2011 = vsub.f32 %v1579, %v893
        %v2012 = vsub.f32 %v1580, %v894
        %v2013 = vsub.f32 %v1581, %v895
        %v2014 = vsub.f32 %v1582, %v896
        %v2015 = vsub.f32 %v1583, %v897
        %v2016 = vsub.f32 %v1584, %v898
        %v2017 = vsub.f32 %v1585, %v899
        %v2018 = vsub.f32 %v1586, %v900
        %v2019 = vsub.f32 %v1587, %v901
        %v2020 = vsub.f32 %v1588, %v902
        %v2021 = vsub.f32 %v1589, %v903
        %v2022 = vsub.f32 %v1590, %v904
        %v2023 = vsub.f32 %v1591, %v905
        %v2024 = vsub.f32 %v1592, %v906
        %v2025 = vsub.f32 %v1593, %v907
        %v2026 = vsub.f32 %v1594, %v908
        %v2027 = vsub.f32 %v1595, %v909
        %v2028 = vsub.f32 %v1596, %v910
        %v2029 = vsub.f32 %v1597, %v911
        %v2030 = vsub.f32 %v1598, %v912
        %v2031 = vsub.f32 %v1599, %v913
        %v2032 = vsub.f32 %v1600, %v914
        %v2033 = vsub.f32 %v1601, %v915
        %v2034 = vsub.f32 %v1602, %v916
        %v2035 = vsub.f32 %v1603, %v917
        %v2036 = vsub.f32 %v1604, %v918
        %v2037 = vsub.f32 %v1605, %v919
        %v2038 = vsub.f32 %v1606, %v920
        %v2039 = vsub.f32 %v1607, %v921
        %v2040 = vsub.f32 %v1608, %v922
        %v2041 = vsub.f32 %v1609, %v923
        %v2042 = vsub.f32 %v1610, %v924
        %v2043 = vsub.f32 %v1611, %v925
        %v2044 = vsub.f32 %v1612, %v926
        %v2045 = vsub.f32 %v1613, %v927
        %v2046 = vsub.f32 %v1614, %v928
        %v2047 = vsub.f32 %v1615, %v929
        %v2048 = vsub.f32 %v1616, %v930
        %v2049 = vsub.f32 %v1617, %v931
        %v2050 = vsub.f32 %v1618, %v932
        %v2051 = vsub.f32 %v1619, %v933
        %v2052 = vsub.f32 %v1620, %v934
        %v2053 = vsub.f32 %v1621, %v935
        %v2054 = vsub.f32 %v1622, %v936
        %v2055 = vsub.f32 %v1623, %v937
        %v2056 = vsub.f32 %v1624, %v938
        %v2057 = vsub.f32 %v1625, %v939
        %v2058 = vsub.f32 %v1626, %v940
        %v2059 = vsub.f32 %v1627, %v941
        %v2060 = vsub.f32 %v1628, %v942
        %v2061 = vsub.f32 %v1629, %v943
        %v2062 = vsub.f32 %v1630, %v944
        %v2063 = vsub.f32 %v1631, %v945
        %v2064 = vsub.f32 %v1632, %v946
        %v2065 = vsub.f32 %v1633, %v947
        %v2066 = vsub.f32 %v1634, %v948
        %v2067 = vsub.f32 %v1635, %v949
        %v2068 = vsub.f32 %v1636, %v950
        %v2069 = vsub.f32 %v1637, %v951
        %v2070 = vsub.f32 %v1638, %v952
        %v2071 = vsub.f32 %v1639, %v953
        %v2072 = vsub.f32 %v1640, %v954
        %v2073 = vsub.f32 %v1641, %v955
        %v2074 = vsub.f32 %v1642, %v956
        %v2075 = vsub.f32 %v1643, %v957
        %v2076 = vsub.f32 %v1644, %v958
        %v2077 = vsub.f32 %v1645, %v959
        %v2078 = vsub.f32 %v1646, %v960
        %v2079 = vsub.f32 %v1647, %v961
        %v2080 = vsub.f32 %v1648, %v962
        %v2081 = vsub.f32 %v1649, %v963
        %v2082 = vsub.f32 %v1650, %v964
        %v2083 = vmax.f32 %v1939, 0.0
        %v2084 = vmax.f32 %v1940, 0.0
        %v2085 = vmax.f32 %v1941, 0.0
        %v2086 = vmax.f32 %v1942, 0.0
        %v2087 = vmax.f32 %v1943, 0.0
        %v2088 = vmax.f32 %v1944, 0.0
        %v2089 = vmax.f32 %v1945, 0.0
        %v2090 = vmax.f32 %v1946, 0.0
        %v2091 = vmax.f32 %v1947, 0.0
        %v2092 = vmax.f32 %v1948, 0.0
        %v2093 = vmax.f32 %v1949, 0.0
        %v2094 = vmax.f32 %v1950, 0.0
        %v2095 = vmax.f32 %v1951, 0.0
        %v2096 = vmax.f32 %v1952, 0.0
        %v2097 = vmax.f32 %v1953, 0.0
        %v2098 = vmax.f32 %v1954, 0.0
        %v2099 = vmax.f32 %v1955, 0.0
        %v2100 = vmax.f32 %v1956, 0.0
        %v2101 = vmax.f32 %v1957, 0.0
        %v2102 = vmax.f32 %v1958, 0.0
        %v2103 = vmax.f32 %v1959, 0.0
        %v2104 = vmax.f32 %v1960, 0.0
        %v2105 = vmax.f32 %v1961, 0.0
        %v2106 = vmax.f32 %v1962, 0.0
        %v2107 = vmax.f32 %v1963, 0.0
        %v2108 = vmax.f32 %v1964, 0.0
        %v2109 = vmax.f32 %v1965, 0.0
        %v2110 = vmax.f32 %v1966, 0.0
        %v2111 = vmax.f32 %v1967, 0.0
        %v2112 = vmax.f32 %v1968, 0.0
        %v2113 = vmax.f32 %v1969, 0.0
        %v2114 = vmax.f32 %v1970, 0.0
        %v2115 = vmax.f32 %v1971, 0.0
        %v2116 = vmax.f32 %v1972, 0.0
        %v2117 = vmax.f32 %v1973, 0.0
        %v2118 = vmax.f32 %v1974, 0.0
        %v2119 = vmax.f32 %v1975, 0.0
        %v2120 = vmax.f32 %v1976, 0.0
        %v2121 = vmax.f32 %v1977, 0.0
        %v2122 = vmax.f32 %v1978, 0.0
        %v2123 = vmax.f32 %v1979, 0.0
        %v2124 = vmax.f32 %v1980, 0.0
        %v2125 = vmax.f32 %v1981, 0.0
        %v2126 = vmax.f32 %v1982, 0.0
        %v2127 = vmax.f32 %v1983, 0.0
        %v2128 = vmax.f32 %v1984, 0.0
        %v2129 = vmax.f32 %v1985, 0.0
        %v2130 = vmax.f32 %v1986, 0.0
        %v2131 = vmax.f32 %v1987, 0.0
        %v2132 = vmax.f32 %v1988, 0.0
        %v2133 = vmax.f32 %v1989, 0.0
        %v2134 = vmax.f32 %v1990, 0.0
        %v2135 = vmax.f32 %v1991, 0.0
        %v2136 = vmax.f32 %v1992, 0.0
        %v2137 = vmax.f32 %v1993, 0.0
        %v2138 = vmax.f32 %v1994, 0.0
        %v2139 = vmax.f32 %v1995, 0.0
        %v2140 = vmax.f32 %v1996, 0.0
        %v2141 = vmax.f32 %v1997, 0.0
        %v2142 = vmax.f32 %v1998, 0.0
        %v2143 = vmax.f32 %v1999, 0.0
        %v2144 = vmax.f32 %v2000, 0.0
        %v2145 = vmax.f32 %v2001, 0.0
        %v2146 = vmax.f32 %v2002, 0.0
        %v2147 = vmax.f32 %v2003, 0.0
        %v2148 = vmax.f32 %v2004, 0.0
        %v2149 = vmax.f32 %v2005, 0.0
        %v2150 = vmax.f32 %v2006, 0.0
        %v2151 = vmax.f32 %v2007, 0.0
        %v2152 = vmax.f32 %v2008, 0.0
        %v2153 = vmax.f32 %v2009, 0.0
        %v2154 = vmax.f32 %v2010, 0.0
        %v2155 = vmax.f32 %v2011, 0.0
        %v2156 = vmax.f32 %v2012, 0.0
        %v2157 = vmax.f32 %v2013, 0.0
        %v2158 = vmax.f32 %v2014, 0.0
        %v2159 = vmax.f32 %v2015, 0.0
        %v2160 = vmax.f32 %v2016, 0.0
        %v2161 = vmax.f32 %v2017, 0.0
        %v2162 = vmax.f32 %v2018, 0.0
        %v2163 = vmax.f32 %v2019, 0.0
        %v2164 = vmax.f32 %v2020, 0.0
        %v2165 = vmax.f32 %v2021, 0.0
        %v2166 = vmax.f32 %v2022, 0.0
        %v2167 = vmax.f32 %v2023, 0.0
        %v2168 = vmax.f32 %v2024, 0.0
        %v2169 = vmax.f32 %v2025, 0.0
        %v2170 = vmax.f32 %v2026, 0.0
        %v2171 = vmax.f32 %v2027, 0.0
        %v2172 = vmax.f32 %v2028, 0.0
        %v2173 = vmax.f32 %v2029, 0.0
        %v2174 = vmax.f32 %v2030, 0.0
        %v2175 = vmax.f32 %v2031, 0.0
        %v2176 = vmax.f32 %v2032, 0.0
        %v2177 = vmax.f32 %v2033, 0.0
        %v2178 = vmax.f32 %v2034, 0.0
        %v2179 = vmax.f32 %v2035, 0.0
        %v2180 = vmax.f32 %v2036, 0.0
        %v2181 = vmax.f32 %v2037, 0.0
        %v2182 = vmax.f32 %v2038, 0.0
        %v2183 = vmax.f32 %v2039, 0.0
        %v2184 = vmax.f32 %v2040, 0.0
        %v2185 = vmax.f32 %v2041, 0.0
        %v2186 = vmax.f32 %v2042, 0.0
        %v2187 = vmax.f32 %v2043, 0.0
        %v2188 = vmax.f32 %v2044, 0.0
        %v2189 = vmax.f32 %v2045, 0.0
        %v2190 = vmax.f32 %v2046, 0.0
        %v2191 = vmax.f32 %v2047, 0.0
        %v2192 = vmax.f32 %v2048, 0.0
        %v2193 = vmax.f32 %v2049, 0.0
        %v2194 = vmax.f32 %v2050, 0.0
        %v2195 = vmax.f32 %v2051, 0.0
        %v2196 = vmax.f32 %v2052, 0.0
        %v2197 = vmax.f32 %v2053, 0.0
        %v2198 = vmax.f32 %v2054, 0.0
        %v2199 = vmax.f32 %v2055, 0.0
        %v2200 = vmax.f32 %v2056, 0.0
        %v2201 = vmax.f32 %v2057, 0.0
        %v2202 = vmax.f32 %v2058, 0.0
        %v2203 = vmax.f32 %v2059, 0.0
        %v2204 = vmax.f32 %v2060, 0.0
        %v2205 = vmax.f32 %v2061, 0.0
        %v2206 = vmax.f32 %v2062, 0.0
        %v2207 = vmax.f32 %v2063, 0.0
        %v2208 = vmax.f32 %v2064, 0.0
        %v2209 = vmax.f32 %v2065, 0.0
        %v2210 = vmax.f32 %v2066, 0.0
        %v2211 = vmax.f32 %v2067, 0.0
        %v2212 = vmax.f32 %v2068, 0.0
        %v2213 = vmax.f32 %v2069, 0.0
        %v2214 = vmax.f32 %v2070, 0.0
        %v2215 = vmax.f32 %v2071, 0.0
        %v2216 = vmax.f32 %v2072, 0.0
        %v2217 = vmax.f32 %v2073, 0.0
        %v2218 = vmax.f32 %v2074, 0.0
        %v2219 = vmax.f32 %v2075, 0.0
        %v2220 = vmax.f32 %v2076, 0.0
        %v2221 = vmax.f32 %v2077, 0.0
        %v2222 = vmax.f32 %v2078, 0.0
        %v2223 = vmax.f32 %v2079, 0.0
        %v2224 = vmax.f32 %v2080, 0.0
        %v2225 = vmax.f32 %v2081, 0.0
        %v2226 = vmax.f32 %v2082, 0.0
        %v2227 = vmul.f32 %v1795, %v2083
        %v2228 = vmul.f32 %v1796, %v2084
        %v2229 = vmul.f32 %v1797, %v2085
        %v2230 = vmul.f32 %v1798, %v2086
        %v2231 = vmul.f32 %v1799, %v2087
        %v2232 = vmul.f32 %v1800, %v2088
        %v2233 = vmul.f32 %v1801, %v2089
        %v2234 = vmul.f32 %v1802, %v2090
        %v2235 = vmul.f32 %v1803, %v2091
        %v2236 = vmul.f32 %v1804, %v2092
        %v2237 = vmul.f32 %v1805, %v2093
        %v2238 = vmul.f32 %v1806, %v2094
        %v2239 = vmul.f32 %v1807, %v2095
        %v2240 = vmul.f32 %v1808, %v2096
        %v2241 = vmul.f32 %v1809, %v2097
        %v2242 = vmul.f32 %v1810, %v2098
        %v2243 = vmul.f32 %v1811, %v2099
        %v2244 = vmul.f32 %v1812, %v2100
        %v2245 = vmul.f32 %v1813, %v2101
        %v2246 = vmul.f32 %v1814, %v2102
        %v2247 = vmul.f32 %v1815, %v2103
        %v2248 = vmul.f32 %v1816, %v2104
        %v2249 = vmul.f32 %v1817, %v2105
        %v2250 = vmul.f32 %v1818, %v2106
        %v2251 = vmul.f32 %v1819, %v2107
        %v2252 = vmul.f32 %v1820, %v2108
        %v2253 = vmul.f32 %v1821, %v2109
        %v2254 = vmul.f32 %v1822, %v2110
        %v2255 = vmul.f32 %v1823, %v2111
        %v2256 = vmul.f32 %v1824, %v2112
        %v2257 = vmul.f32 %v1825, %v2113
        %v2258 = vmul.f32 %v1826, %v2114
        %v2259 = vmul.f32 %v1827, %v2115
        %v2260 = vmul.f32 %v1828, %v2116
        %v2261 = vmul.f32 %v1829, %v2117
        %v2262 = vmul.f32 %v1830, %v2118
        %v2263 = vmul.f32 %v1831, %v2119
        %v2264 = vmul.f32 %v1832, %v2120
        %v2265 = vmul.f32 %v1833, %v2121
        %v2266 = vmul.f32 %v1834, %v2122
        %v2267 = vmul.f32 %v1835, %v2123
        %v2268 = vmul.f32 %v1836, %v2124
        %v2269 = vmul.f32 %v1837, %v2125
        %v2270 = vmul.f32 %v1838, %v2126
        %v2271 = vmul.f32 %v1839, %v2127
        %v2272 = vmul.f32 %v1840, %v2128
        %v2273 = vmul.f32 %v1841, %v2129
        %v2274 = vmul.f32 %v1842, %v2130
        %v2275 = vmul.f32 %v1843, %v2131
        %v2276 = vmul.f32 %v1844, %v2132
        %v2277 = vmul.f32 %v1845, %v2133
        %v2278 = vmul.f32 %v1846, %v2134
        %v2279 = vmul.f32 %v1847, %v2135
        %v2280 = vmul.f32 %v1848, %v2136
        %v2281 = vmul.f32 %v1849, %v2137
        %v2282 = vmul.f32 %v1850, %v2138
        %v2283 = vmul.f32 %v1851, %v2139
        %v2284 = vmul.f32 %v1852, %v2140
        %v2285 = vmul.f32 %v1853, %v2141
        %v2286 = vmul.f32 %v1854, %v2142
        %v2287 = vmul.f32 %v1855, %v2143
        %v2288 = vmul.f32 %v1856, %v2144
        %v2289 = vmul.f32 %v1857, %v2145
        %v2290 = vmul.f32 %v1858, %v2146
        %v2291 = vmul.f32 %v1859, %v2147
        %v2292 = vmul.f32 %v1860, %v2148
        %v2293 = vmul.f32 %v1861, %v2149
        %v2294 = vmul.f32 %v1862, %v2150
        %v2295 = vmul.f32 %v1863, %v2151
        %v2296 = vmul.f32 %v1864, %v2152
        %v2297 = vmul.f32 %v1865, %v2153
        %v2298 = vmul.f32 %v1866, %v2154
        %v2299 = vmul.f32 %v1867, %v2155
        %v2300 = vmul.f32 %v1868, %v2156
        %v2301 = vmul.f32 %v1869, %v2157
        %v2302 = vmul.f32 %v1870, %v2158
        %v2303 = vmul.f32 %v1871, %v2159
        %v2304 = vmul.f32 %v1872, %v2160
        %v2305 = vmul.f32 %v1873, %v2161
        %v2306 = vmul.f32 %v1874, %v2162
        %v2307 = vmul.f32 %v1875, %v2163
        %v2308 = vmul.f32 %v1876, %v2164
        %v2309 = vmul.f32 %v1877, %v2165
        %v2310 = vmul.f32 %v1878, %v2166
        %v2311 = vmul.f32 %v1879, %v2167
        %v2312 = vmul.f32 %v1880, %v2168
        %v2313 = vmul.f32 %v1881, %v2169
        %v2314 = vmul.f32 %v1882, %v2170
        %v2315 = vmul.f32 %v1883, %v2171
        %v2316 = vmul.f32 %v1884, %v2172
        %v2317 = vmul.f32 %v1885, %v2173
        %v2318 = vmul.f32 %v1886, %v2174
        %v2319 = vmul.f32 %v1887, %v2175
        %v2320 = vmul.f32 %v1888, %v2176
        %v2321 = vmul.f32 %v1889, %v2177
        %v2322 = vmul.f32 %v1890, %v2178
        %v2323 = vmul.f32 %v1891, %v2179
        %v2324 = vmul.f32 %v1892, %v2180
        %v2325 = vmul.f32 %v1893, %v2181
        %v2326 = vmul.f32 %v1894, %v2182
        %v2327 = vmul.f32 %v1895, %v2183
        %v2328 = vmul.f32 %v1896, %v2184
        %v2329 = vmul.f32 %v1897, %v2185
        %v2330 = vmul.f32 %v1898, %v2186
        %v2331 = vmul.f32 %v1899, %v2187
        %v2332 = vmul.f32 %v1900, %v2188
        %v2333 = vmul.f32 %v1901, %v2189
        %v2334 = vmul.f32 %v1902, %v2190
        %v2335 = vmul.f32 %v1903, %v2191
        %v2336 = vmul.f32 %v1904, %v2192
        %v2337 = vmul.f32 %v1905, %v2193
        %v2338 = vmul.f32 %v1906, %v2194
        %v2339 = vmul.f32 %v1907, %v2195
        %v2340 = vmul.f32 %v1908, %v2196
        %v2341 = vmul.f32 %v1909, %v2197
        %v2342 = vmul.f32 %v1910, %v2198
        %v2343 = vmul.f32 %v1911, %v2199
        %v2344 = vmul.f32 %v1912, %v2200
        %v2345 = vmul.f32 %v1913, %v2201
        %v2346 = vmul.f32 %v1914, %v2202
        %v2347 = vmul.f32 %v1915, %v2203
        %v2348 = vmul.f32 %v1916, %v2204
        %v2349 = vmul.f32 %v1917, %v2205
        %v2350 = vmul.f32 %v1918, %v2206
        %v2351 = vmul.f32 %v1919, %v2207
        %v2352 = vmul.f32 %v1920, %v2208
        %v2353 = vmul.f32 %v1921, %v2209
        %v2354 = vmul.f32 %v1922, %v2210
        %v2355 = vmul.f32 %v1923, %v2211
        %v2356 = vmul.f32 %v1924, %v2212
        %v2357 = vmul.f32 %v1925, %v2213
        %v2358 = vmul.f32 %v1926, %v2214
        %v2359 = vmul.f32 %v1927, %v2215
        %v2360 = vmul.f32 %v1928, %v2216
        %v2361 = vmul.f32 %v1929, %v2217
        %v2362 = vmul.f32 %v1930, %v2218
        %v2363 = vmul.f32 %v1931, %v2219
        %v2364 = vmul.f32 %v1932, %v2220
        %v2365 = vmul.f32 %v1933, %v2221
        %v2366 = vmul.f32 %v1934, %v2222
        %v2367 = vmul.f32 %v1935, %v2223
        %v2368 = vmul.f32 %v1936, %v2224
        %v2369 = vmul.f32 %v1937, %v2225
        %v2370 = vmul.f32 %v1938, %v2226
        %2371 = vset.pattern.permute.xlu0 4
        %2372 = vperm.xlu0 %2371, %v183
        %v2373 = vpop.permute.xlu0 %2372
        %2375 = vset.pattern.permute.xlu0 4
        %2376 = vperm.xlu0 %2375, %v184
        %v2377 = vpop.permute.xlu0 %2376
        %2379 = vset.pattern.permute.xlu0 4
        %2380 = vperm.xlu0 %2379, %v185
        %v2381 = vpop.permute.xlu0 %2380
        %2383 = vset.pattern.permute.xlu0 4
        %2384 = vperm.xlu0 %2383, %v186
        %v2385 = vpop.permute.xlu0 %2384
        %2387 = vset.pattern.permute.xlu0 4
        %2388 = vperm.xlu0 %2387, %v187
        %v2389 = vpop.permute.xlu0 %2388
        %2391 = vset.pattern.permute.xlu0 4
        %2392 = vperm.xlu0 %2391, %v188
        %v2393 = vpop.permute.xlu0 %2392
        %2395 = vset.pattern.permute.xlu0 4
        %2396 = vperm.xlu0 %2395, %v189
        %v2397 = vpop.permute.xlu0 %2396
        %2399 = vset.pattern.permute.xlu0 4
        %2400 = vperm.xlu0 %2399, %v190
        %v2401 = vpop.permute.xlu0 %2400
        %2403 = vset.pattern.permute.xlu0 4
        %2404 = vperm.xlu0 %2403, %v191
        %v2405 = vpop.permute.xlu0 %2404
        %2407 = vset.pattern.permute.xlu0 4
        %2408 = vperm.xlu0 %2407, %v192
        %v2409 = vpop.permute.xlu0 %2408
        %2411 = vset.pattern.permute.xlu0 4
        %2412 = vperm.xlu0 %2411, %v193
        %v2413 = vpop.permute.xlu0 %2412
        %2415 = vset.pattern.permute.xlu0 4
        %2416 = vperm.xlu0 %2415, %v194
        %v2417 = vpop.permute.xlu0 %2416
        %2419 = vset.pattern.permute.xlu0 4
        %2420 = vperm.xlu0 %2419, %v195
        %v2421 = vpop.permute.xlu0 %2420
        %2423 = vset.pattern.permute.xlu0 4
        %2424 = vperm.xlu0 %2423, %v196
        %v2425 = vpop.permute.xlu0 %2424
        %2427 = vset.pattern.permute.xlu0 4
        %2428 = vperm.xlu0 %2427, %v197
        %v2429 = vpop.permute.xlu0 %2428
        %2431 = vset.pattern.permute.xlu0 4
        %2432 = vperm.xlu0 %2431, %v198
        %v2433 = vpop.permute.xlu0 %2432
        %2435 = vset.pattern.permute.xlu0 4
        %2436 = vperm.xlu0 %2435, %v199
        %v2437 = vpop.permute.xlu0 %2436
        %2439 = vset.pattern.permute.xlu0 4
        %2440 = vperm.xlu0 %2439, %v200
        %v2441 = vpop.permute.xlu0 %2440
        %2443 = vset.pattern.permute.xlu0 4
        %2444 = vperm.xlu0 %2443, %v201
        %v2445 = vpop.permute.xlu0 %2444
        %2447 = vset.pattern.permute.xlu0 4
        %2448 = vperm.xlu0 %2447, %v202
        %v2449 = vpop.permute.xlu0 %2448
        %2451 = vset.pattern.permute.xlu0 4
        %2452 = vperm.xlu0 %2451, %v203
        %v2453 = vpop.permute.xlu0 %2452
        %2455 = vset.pattern.permute.xlu0 4
        %2456 = vperm.xlu0 %2455, %v204
        %v2457 = vpop.permute.xlu0 %2456
        %2459 = vset.pattern.permute.xlu0 4
        %2460 = vperm.xlu0 %2459, %v205
        %v2461 = vpop.permute.xlu0 %2460
        %2463 = vset.pattern.permute.xlu0 4
        %2464 = vperm.xlu0 %2463, %v206
        %v2465 = vpop.permute.xlu0 %2464
        %2467 = vset.pattern.permute.xlu0 4
        %2468 = vperm.xlu0 %2467, %v207
        %v2469 = vpop.permute.xlu0 %2468
        %2471 = vset.pattern.permute.xlu0 4
        %2472 = vperm.xlu0 %2471, %v208
        %v2473 = vpop.permute.xlu0 %2472
        %2475 = vset.pattern.permute.xlu0 4
        %2476 = vperm.xlu0 %2475, %v209
        %v2477 = vpop.permute.xlu0 %2476
        %2479 = vset.pattern.permute.xlu0 4
        %2480 = vperm.xlu0 %2479, %v210
        %v2481 = vpop.permute.xlu0 %2480
        %2483 = vset.pattern.permute.xlu0 4
        %2484 = vperm.xlu0 %2483, %v211
        %v2485 = vpop.permute.xlu0 %2484
        %2487 = vset.pattern.permute.xlu0 4
        %2488 = vperm.xlu0 %2487, %v212
        %v2489 = vpop.permute.xlu0 %2488
        %2491 = vset.pattern.permute.xlu0 4
        %2492 = vperm.xlu0 %2491, %v213
        %v2493 = vpop.permute.xlu0 %2492
        %2495 = vset.pattern.permute.xlu0 4
        %2496 = vperm.xlu0 %2495, %v214
        %v2497 = vpop.permute.xlu0 %2496
        %2499 = vset.pattern.permute.xlu0 4
        %2500 = vperm.xlu0 %2499, %v215
        %v2501 = vpop.permute.xlu0 %2500
        %2503 = vset.pattern.permute.xlu0 4
        %2504 = vperm.xlu0 %2503, %v216
        %v2505 = vpop.permute.xlu0 %2504
        %2507 = vset.pattern.permute.xlu0 4
        %2508 = vperm.xlu0 %2507, %v217
        %v2509 = vpop.permute.xlu0 %2508
        %2511 = vset.pattern.permute.xlu0 4
        %2512 = vperm.xlu0 %2511, %v218
        %v2513 = vpop.permute.xlu0 %2512
        %2515 = vset.pattern.permute.xlu0 4
        %2516 = vperm.xlu0 %2515, %v219
        %v2517 = vpop.permute.xlu0 %2516
        %2519 = vset.pattern.permute.xlu0 4
        %2520 = vperm.xlu0 %2519, %v220
        %v2521 = vpop.permute.xlu0 %2520
        %2523 = vset.pattern.permute.xlu0 4
        %2524 = vperm.xlu0 %2523, %v221
        %v2525 = vpop.permute.xlu0 %2524
        %2527 = vset.pattern.permute.xlu0 4
        %2528 = vperm.xlu0 %2527, %v222
        %v2529 = vpop.permute.xlu0 %2528
        %2531 = vset.pattern.permute.xlu0 4
        %2532 = vperm.xlu0 %2531, %v223
        %v2533 = vpop.permute.xlu0 %2532
        %2535 = vset.pattern.permute.xlu0 4
        %2536 = vperm.xlu0 %2535, %v224
        %v2537 = vpop.permute.xlu0 %2536
        %2539 = vset.pattern.permute.xlu0 4
        %2540 = vperm.xlu0 %2539, %v225
        %v2541 = vpop.permute.xlu0 %2540
        %2543 = vset.pattern.permute.xlu0 4
        %2544 = vperm.xlu0 %2543, %v226
        %v2545 = vpop.permute.xlu0 %2544
        %2547 = vset.pattern.permute.xlu0 4
        %2548 = vperm.xlu0 %2547, %v227
        %v2549 = vpop.permute.xlu0 %2548
        %2551 = vset.pattern.permute.xlu0 4
        %2552 = vperm.xlu0 %2551, %v228
        %v2553 = vpop.permute.xlu0 %2552
        %2555 = vset.pattern.permute.xlu0 4
        %2556 = vperm.xlu0 %2555, %v229
        %v2557 = vpop.permute.xlu0 %2556
        %2559 = vset.pattern.permute.xlu0 4
        %2560 = vperm.xlu0 %2559, %v230
        %v2561 = vpop.permute.xlu0 %2560
        %v2564 = vperm.slane %v180, 0
        %v2565 = vperm.slane %v180, 1
        %v2566 = vperm.slane %v180, 2
        %v2570 = vadd.f32 %v2373, %v2564
        %v2571 = vadd.f32 %v2373, %v2565
        %v2572 = vadd.f32 %v2373, %v2566
        %v2573 = vadd.f32 %v2377, %v2564
        %v2574 = vadd.f32 %v2377, %v2565
        %v2575 = vadd.f32 %v2377, %v2566
        %v2576 = vadd.f32 %v2381, %v2564
        %v2577 = vadd.f32 %v2381, %v2565
        %v2578 = vadd.f32 %v2381, %v2566
        %v2579 = vadd.f32 %v2385, %v2564
        %v2580 = vadd.f32 %v2385, %v2565
        %v2581 = vadd.f32 %v2385, %v2566
        %v2582 = vadd.f32 %v2389, %v2564
        %v2583 = vadd.f32 %v2389, %v2565
        %v2584 = vadd.f32 %v2389, %v2566
        %v2585 = vadd.f32 %v2393, %v2564
        %v2586 = vadd.f32 %v2393, %v2565
        %v2587 = vadd.f32 %v2393, %v2566
        %v2588 = vadd.f32 %v2397, %v2564
        %v2589 = vadd.f32 %v2397, %v2565
        %v2590 = vadd.f32 %v2397, %v2566
        %v2591 = vadd.f32 %v2401, %v2564
        %v2592 = vadd.f32 %v2401, %v2565
        %v2593 = vadd.f32 %v2401, %v2566
        %v2594 = vadd.f32 %v2405, %v2564
        %v2595 = vadd.f32 %v2405, %v2565
        %v2596 = vadd.f32 %v2405, %v2566
        %v2597 = vadd.f32 %v2409, %v2564
        %v2598 = vadd.f32 %v2409, %v2565
        %v2599 = vadd.f32 %v2409, %v2566
        %v2600 = vadd.f32 %v2413, %v2564
        %v2601 = vadd.f32 %v2413, %v2565
        %v2602 = vadd.f32 %v2413, %v2566
        %v2603 = vadd.f32 %v2417, %v2564
        %v2604 = vadd.f32 %v2417, %v2565
        %v2605 = vadd.f32 %v2417, %v2566
        %v2606 = vadd.f32 %v2421, %v2564
        %v2607 = vadd.f32 %v2421, %v2565
        %v2608 = vadd.f32 %v2421, %v2566
        %v2609 = vadd.f32 %v2425, %v2564
        %v2610 = vadd.f32 %v2425, %v2565
        %v2611 = vadd.f32 %v2425, %v2566
        %v2612 = vadd.f32 %v2429, %v2564
        %v2613 = vadd.f32 %v2429, %v2565
        %v2614 = vadd.f32 %v2429, %v2566
        %v2615 = vadd.f32 %v2433, %v2564
        %v2616 = vadd.f32 %v2433, %v2565
        %v2617 = vadd.f32 %v2433, %v2566
        %v2618 = vadd.f32 %v2437, %v2564
        %v2619 = vadd.f32 %v2437, %v2565
        %v2620 = vadd.f32 %v2437, %v2566
        %v2621 = vadd.f32 %v2441, %v2564
        %v2622 = vadd.f32 %v2441, %v2565
        %v2623 = vadd.f32 %v2441, %v2566
        %v2624 = vadd.f32 %v2445, %v2564
        %v2625 = vadd.f32 %v2445, %v2565
        %v2626 = vadd.f32 %v2445, %v2566
        %v2627 = vadd.f32 %v2449, %v2564
        %v2628 = vadd.f32 %v2449, %v2565
        %v2629 = vadd.f32 %v2449, %v2566
        %v2630 = vadd.f32 %v2453, %v2564
        %v2631 = vadd.f32 %v2453, %v2565
        %v2632 = vadd.f32 %v2453, %v2566
        %v2633 = vadd.f32 %v2457, %v2564
        %v2634 = vadd.f32 %v2457, %v2565
        %v2635 = vadd.f32 %v2457, %v2566
        %v2636 = vadd.f32 %v2461, %v2564
        %v2637 = vadd.f32 %v2461, %v2565
        %v2638 = vadd.f32 %v2461, %v2566
        %v2639 = vadd.f32 %v2465, %v2564
        %v2640 = vadd.f32 %v2465, %v2565
        %v2641 = vadd.f32 %v2465, %v2566
        %v2642 = vadd.f32 %v2469, %v2564
        %v2643 = vadd.f32 %v2469, %v2565
        %v2644 = vadd.f32 %v2469, %v2566
        %v2645 = vadd.f32 %v2473, %v2564
        %v2646 = vadd.f32 %v2473, %v2565
        %v2647 = vadd.f32 %v2473, %v2566
        %v2648 = vadd.f32 %v2477, %v2564
        %v2649 = vadd.f32 %v2477, %v2565
        %v2650 = vadd.f32 %v2477, %v2566
        %v2651 = vadd.f32 %v2481, %v2564
        %v2652 = vadd.f32 %v2481, %v2565
        %v2653 = vadd.f32 %v2481, %v2566
        %v2654 = vadd.f32 %v2485, %v2564
        %v2655 = vadd.f32 %v2485, %v2565
        %v2656 = vadd.f32 %v2485, %v2566
        %v2657 = vadd.f32 %v2489, %v2564
        %v2658 = vadd.f32 %v2489, %v2565
        %v2659 = vadd.f32 %v2489, %v2566
        %v2660 = vadd.f32 %v2493, %v2564
        %v2661 = vadd.f32 %v2493, %v2565
        %v2662 = vadd.f32 %v2493, %v2566
        %v2663 = vadd.f32 %v2497, %v2564
        %v2664 = vadd.f32 %v2497, %v2565
        %v2665 = vadd.f32 %v2497, %v2566
        %v2666 = vadd.f32 %v2501, %v2564
        %v2667 = vadd.f32 %v2501, %v2565
        %v2668 = vadd.f32 %v2501, %v2566
        %v2669 = vadd.f32 %v2505, %v2564
        %v2670 = vadd.f32 %v2505, %v2565
        %v2671 = vadd.f32 %v2505, %v2566
        %v2672 = vadd.f32 %v2509, %v2564
        %v2673 = vadd.f32 %v2509, %v2565
        %v2674 = vadd.f32 %v2509, %v2566
        %v2675 = vadd.f32 %v2513, %v2564
        %v2676 = vadd.f32 %v2513, %v2565
        %v2677 = vadd.f32 %v2513, %v2566
        %v2678 = vadd.f32 %v2517, %v2564
        %v2679 = vadd.f32 %v2517, %v2565
        %v2680 = vadd.f32 %v2517, %v2566
        %v2681 = vadd.f32 %v2521, %v2564
        %v2682 = vadd.f32 %v2521, %v2565
        %v2683 = vadd.f32 %v2521, %v2566
        %v2684 = vadd.f32 %v2525, %v2564
        %v2685 = vadd.f32 %v2525, %v2565
        %v2686 = vadd.f32 %v2525, %v2566
        %v2687 = vadd.f32 %v2529, %v2564
        %v2688 = vadd.f32 %v2529, %v2565
        %v2689 = vadd.f32 %v2529, %v2566
        %v2690 = vadd.f32 %v2533, %v2564
        %v2691 = vadd.f32 %v2533, %v2565
        %v2692 = vadd.f32 %v2533, %v2566
        %v2693 = vadd.f32 %v2537, %v2564
        %v2694 = vadd.f32 %v2537, %v2565
        %v2695 = vadd.f32 %v2537, %v2566
        %v2696 = vadd.f32 %v2541, %v2564
        %v2697 = vadd.f32 %v2541, %v2565
        %v2698 = vadd.f32 %v2541, %v2566
        %v2699 = vadd.f32 %v2545, %v2564
        %v2700 = vadd.f32 %v2545, %v2565
        %v2701 = vadd.f32 %v2545, %v2566
        %v2702 = vadd.f32 %v2549, %v2564
        %v2703 = vadd.f32 %v2549, %v2565
        %v2704 = vadd.f32 %v2549, %v2566
        %v2705 = vadd.f32 %v2553, %v2564
        %v2706 = vadd.f32 %v2553, %v2565
        %v2707 = vadd.f32 %v2553, %v2566
        %v2708 = vadd.f32 %v2557, %v2564
        %v2709 = vadd.f32 %v2557, %v2565
        %v2710 = vadd.f32 %v2557, %v2566
        %v2711 = vadd.f32 %v2561, %v2564
        %v2712 = vadd.f32 %v2561, %v2565
        %v2713 = vadd.f32 %v2561, %v2566
        %v2714 = vsub.f32 %v2570, %v2227
        %v2715 = vsub.f32 %v2571, %v2228
        %v2716 = vsub.f32 %v2572, %v2229
        %v2717 = vsub.f32 %v2573, %v2230
        %v2718 = vsub.f32 %v2574, %v2231
        %v2719 = vsub.f32 %v2575, %v2232
        %v2720 = vsub.f32 %v2576, %v2233
        %v2721 = vsub.f32 %v2577, %v2234
        %v2722 = vsub.f32 %v2578, %v2235
        %v2723 = vsub.f32 %v2579, %v2236
        %v2724 = vsub.f32 %v2580, %v2237
        %v2725 = vsub.f32 %v2581, %v2238
        %v2726 = vsub.f32 %v2582, %v2239
        %v2727 = vsub.f32 %v2583, %v2240
        %v2728 = vsub.f32 %v2584, %v2241
        %v2729 = vsub.f32 %v2585, %v2242
        %v2730 = vsub.f32 %v2586, %v2243
        %v2731 = vsub.f32 %v2587, %v2244
        %v2732 = vsub.f32 %v2588, %v2245
        %v2733 = vsub.f32 %v2589, %v2246
        %v2734 = vsub.f32 %v2590, %v2247
        %v2735 = vsub.f32 %v2591, %v2248
        %v2736 = vsub.f32 %v2592, %v2249
        %v2737 = vsub.f32 %v2593, %v2250
        %v2738 = vsub.f32 %v2594, %v2251
        %v2739 = vsub.f32 %v2595, %v2252
        %v2740 = vsub.f32 %v2596, %v2253
        %v2741 = vsub.f32 %v2597, %v2254
        %v2742 = vsub.f32 %v2598, %v2255
        %v2743 = vsub.f32 %v2599, %v2256
        %v2744 = vsub.f32 %v2600, %v2257
        %v2745 = vsub.f32 %v2601, %v2258
        %v2746 = vsub.f32 %v2602, %v2259
        %v2747 = vsub.f32 %v2603, %v2260
        %v2748 = vsub.f32 %v2604, %v2261
        %v2749 = vsub.f32 %v2605, %v2262
        %v2750 = vsub.f32 %v2606, %v2263
        %v2751 = vsub.f32 %v2607, %v2264
        %v2752 = vsub.f32 %v2608, %v2265
        %v2753 = vsub.f32 %v2609, %v2266
        %v2754 = vsub.f32 %v2610, %v2267
        %v2755 = vsub.f32 %v2611, %v2268
        %v2756 = vsub.f32 %v2612, %v2269
        %v2757 = vsub.f32 %v2613, %v2270
        %v2758 = vsub.f32 %v2614, %v2271
        %v2759 = vsub.f32 %v2615, %v2272
        %v2760 = vsub.f32 %v2616, %v2273
        %v2761 = vsub.f32 %v2617, %v2274
        %v2762 = vsub.f32 %v2618, %v2275
        %v2763 = vsub.f32 %v2619, %v2276
        %v2764 = vsub.f32 %v2620, %v2277
        %v2765 = vsub.f32 %v2621, %v2278
        %v2766 = vsub.f32 %v2622, %v2279
        %v2767 = vsub.f32 %v2623, %v2280
        %v2768 = vsub.f32 %v2624, %v2281
        %v2769 = vsub.f32 %v2625, %v2282
        %v2770 = vsub.f32 %v2626, %v2283
        %v2771 = vsub.f32 %v2627, %v2284
        %v2772 = vsub.f32 %v2628, %v2285
        %v2773 = vsub.f32 %v2629, %v2286
        %v2774 = vsub.f32 %v2630, %v2287
        %v2775 = vsub.f32 %v2631, %v2288
        %v2776 = vsub.f32 %v2632, %v2289
        %v2777 = vsub.f32 %v2633, %v2290
        %v2778 = vsub.f32 %v2634, %v2291
        %v2779 = vsub.f32 %v2635, %v2292
        %v2780 = vsub.f32 %v2636, %v2293
        %v2781 = vsub.f32 %v2637, %v2294
        %v2782 = vsub.f32 %v2638, %v2295
        %v2783 = vsub.f32 %v2639, %v2296
        %v2784 = vsub.f32 %v2640, %v2297
        %v2785 = vsub.f32 %v2641, %v2298
        %v2786 = vsub.f32 %v2642, %v2299
        %v2787 = vsub.f32 %v2643, %v2300
        %v2788 = vsub.f32 %v2644, %v2301
        %v2789 = vsub.f32 %v2645, %v2302
        %v2790 = vsub.f32 %v2646, %v2303
        %v2791 = vsub.f32 %v2647, %v2304
        %v2792 = vsub.f32 %v2648, %v2305
        %v2793 = vsub.f32 %v2649, %v2306
        %v2794 = vsub.f32 %v2650, %v2307
        %v2795 = vsub.f32 %v2651, %v2308
        %v2796 = vsub.f32 %v2652, %v2309
        %v2797 = vsub.f32 %v2653, %v2310
        %v2798 = vsub.f32 %v2654, %v2311
        %v2799 = vsub.f32 %v2655, %v2312
        %v2800 = vsub.f32 %v2656, %v2313
        %v2801 = vsub.f32 %v2657, %v2314
        %v2802 = vsub.f32 %v2658, %v2315
        %v2803 = vsub.f32 %v2659, %v2316
        %v2804 = vsub.f32 %v2660, %v2317
        %v2805 = vsub.f32 %v2661, %v2318
        %v2806 = vsub.f32 %v2662, %v2319
        %v2807 = vsub.f32 %v2663, %v2320
        %v2808 = vsub.f32 %v2664, %v2321
        %v2809 = vsub.f32 %v2665, %v2322
        %v2810 = vsub.f32 %v2666, %v2323
        %v2811 = vsub.f32 %v2667, %v2324
        %v2812 = vsub.f32 %v2668, %v2325
        %v2813 = vsub.f32 %v2669, %v2326
        %v2814 = vsub.f32 %v2670, %v2327
        %v2815 = vsub.f32 %v2671, %v2328
        %v2816 = vsub.f32 %v2672, %v2329
        %v2817 = vsub.f32 %v2673, %v2330
        %v2818 = vsub.f32 %v2674, %v2331
        %v2819 = vsub.f32 %v2675, %v2332
        %v2820 = vsub.f32 %v2676, %v2333
        %v2821 = vsub.f32 %v2677, %v2334
        %v2822 = vsub.f32 %v2678, %v2335
        %v2823 = vsub.f32 %v2679, %v2336
        %v2824 = vsub.f32 %v2680, %v2337
        %v2825 = vsub.f32 %v2681, %v2338
        %v2826 = vsub.f32 %v2682, %v2339
        %v2827 = vsub.f32 %v2683, %v2340
        %v2828 = vsub.f32 %v2684, %v2341
        %v2829 = vsub.f32 %v2685, %v2342
        %v2830 = vsub.f32 %v2686, %v2343
        %v2831 = vsub.f32 %v2687, %v2344
        %v2832 = vsub.f32 %v2688, %v2345
        %v2833 = vsub.f32 %v2689, %v2346
        %v2834 = vsub.f32 %v2690, %v2347
        %v2835 = vsub.f32 %v2691, %v2348
        %v2836 = vsub.f32 %v2692, %v2349
        %v2837 = vsub.f32 %v2693, %v2350
        %v2838 = vsub.f32 %v2694, %v2351
        %v2839 = vsub.f32 %v2695, %v2352
        %v2840 = vsub.f32 %v2696, %v2353
        %v2841 = vsub.f32 %v2697, %v2354
        %v2842 = vsub.f32 %v2698, %v2355
        %v2843 = vsub.f32 %v2699, %v2356
        %v2844 = vsub.f32 %v2700, %v2357
        %v2845 = vsub.f32 %v2701, %v2358
        %v2846 = vsub.f32 %v2702, %v2359
        %v2847 = vsub.f32 %v2703, %v2360
        %v2848 = vsub.f32 %v2704, %v2361
        %v2849 = vsub.f32 %v2705, %v2362
        %v2850 = vsub.f32 %v2706, %v2363
        %v2851 = vsub.f32 %v2707, %v2364
        %v2852 = vsub.f32 %v2708, %v2365
        %v2853 = vsub.f32 %v2709, %v2366
        %v2854 = vsub.f32 %v2710, %v2367
        %v2855 = vsub.f32 %v2711, %v2368
        %v2856 = vsub.f32 %v2712, %v2369
        %v2857 = vsub.f32 %v2713, %v2370
        %v2858 = vadd.f32 %v2714, 1e-07
        %v2859 = vadd.f32 %v2715, 1e-07
        %v2860 = vadd.f32 %v2716, 1e-07
        %v2861 = vadd.f32 %v2717, 1e-07
        %v2862 = vadd.f32 %v2718, 1e-07
        %v2863 = vadd.f32 %v2719, 1e-07
        %v2864 = vadd.f32 %v2720, 1e-07
        %v2865 = vadd.f32 %v2721, 1e-07
        %v2866 = vadd.f32 %v2722, 1e-07
        %v2867 = vadd.f32 %v2723, 1e-07
        %v2868 = vadd.f32 %v2724, 1e-07
        %v2869 = vadd.f32 %v2725, 1e-07
        %v2870 = vadd.f32 %v2726, 1e-07
        %v2871 = vadd.f32 %v2727, 1e-07
        %v2872 = vadd.f32 %v2728, 1e-07
        %v2873 = vadd.f32 %v2729, 1e-07
        %v2874 = vadd.f32 %v2730, 1e-07
        %v2875 = vadd.f32 %v2731, 1e-07
        %v2876 = vadd.f32 %v2732, 1e-07
        %v2877 = vadd.f32 %v2733, 1e-07
        %v2878 = vadd.f32 %v2734, 1e-07
        %v2879 = vadd.f32 %v2735, 1e-07
        %v2880 = vadd.f32 %v2736, 1e-07
        %v2881 = vadd.f32 %v2737, 1e-07
        %v2882 = vadd.f32 %v2738, 1e-07
        %v2883 = vadd.f32 %v2739, 1e-07
        %v2884 = vadd.f32 %v2740, 1e-07
        %v2885 = vadd.f32 %v2741, 1e-07
        %v2886 = vadd.f32 %v2742, 1e-07
        %v2887 = vadd.f32 %v2743, 1e-07
        %v2888 = vadd.f32 %v2744, 1e-07
        %v2889 = vadd.f32 %v2745, 1e-07
        %v2890 = vadd.f32 %v2746, 1e-07
        %v2891 = vadd.f32 %v2747, 1e-07
        %v2892 = vadd.f32 %v2748, 1e-07
        %v2893 = vadd.f32 %v2749, 1e-07
        %v2894 = vadd.f32 %v2750, 1e-07
        %v2895 = vadd.f32 %v2751, 1e-07
        %v2896 = vadd.f32 %v2752, 1e-07
        %v2897 = vadd.f32 %v2753, 1e-07
        %v2898 = vadd.f32 %v2754, 1e-07
        %v2899 = vadd.f32 %v2755, 1e-07
        %v2900 = vadd.f32 %v2756, 1e-07
        %v2901 = vadd.f32 %v2757, 1e-07
        %v2902 = vadd.f32 %v2758, 1e-07
        %v2903 = vadd.f32 %v2759, 1e-07
        %v2904 = vadd.f32 %v2760, 1e-07
        %v2905 = vadd.f32 %v2761, 1e-07
        %v2906 = vadd.f32 %v2762, 1e-07
        %v2907 = vadd.f32 %v2763, 1e-07
        %v2908 = vadd.f32 %v2764, 1e-07
        %v2909 = vadd.f32 %v2765, 1e-07
        %v2910 = vadd.f32 %v2766, 1e-07
        %v2911 = vadd.f32 %v2767, 1e-07
        %v2912 = vadd.f32 %v2768, 1e-07
        %v2913 = vadd.f32 %v2769, 1e-07
        %v2914 = vadd.f32 %v2770, 1e-07
        %v2915 = vadd.f32 %v2771, 1e-07
        %v2916 = vadd.f32 %v2772, 1e-07
        %v2917 = vadd.f32 %v2773, 1e-07
        %v2918 = vadd.f32 %v2774, 1e-07
        %v2919 = vadd.f32 %v2775, 1e-07
        %v2920 = vadd.f32 %v2776, 1e-07
        %v2921 = vadd.f32 %v2777, 1e-07
        %v2922 = vadd.f32 %v2778, 1e-07
        %v2923 = vadd.f32 %v2779, 1e-07
        %v2924 = vadd.f32 %v2780, 1e-07
        %v2925 = vadd.f32 %v2781, 1e-07
        %v2926 = vadd.f32 %v2782, 1e-07
        %v2927 = vadd.f32 %v2783, 1e-07
        %v2928 = vadd.f32 %v2784, 1e-07
        %v2929 = vadd.f32 %v2785, 1e-07
        %v2930 = vadd.f32 %v2786, 1e-07
        %v2931 = vadd.f32 %v2787, 1e-07
        %v2932 = vadd.f32 %v2788, 1e-07
        %v2933 = vadd.f32 %v2789, 1e-07
        %v2934 = vadd.f32 %v2790, 1e-07
        %v2935 = vadd.f32 %v2791, 1e-07
        %v2936 = vadd.f32 %v2792, 1e-07
        %v2937 = vadd.f32 %v2793, 1e-07
        %v2938 = vadd.f32 %v2794, 1e-07
        %v2939 = vadd.f32 %v2795, 1e-07
        %v2940 = vadd.f32 %v2796, 1e-07
        %v2941 = vadd.f32 %v2797, 1e-07
        %v2942 = vadd.f32 %v2798, 1e-07
        %v2943 = vadd.f32 %v2799, 1e-07
        %v2944 = vadd.f32 %v2800, 1e-07
        %v2945 = vadd.f32 %v2801, 1e-07
        %v2946 = vadd.f32 %v2802, 1e-07
        %v2947 = vadd.f32 %v2803, 1e-07
        %v2948 = vadd.f32 %v2804, 1e-07
        %v2949 = vadd.f32 %v2805, 1e-07
        %v2950 = vadd.f32 %v2806, 1e-07
        %v2951 = vadd.f32 %v2807, 1e-07
        %v2952 = vadd.f32 %v2808, 1e-07
        %v2953 = vadd.f32 %v2809, 1e-07
        %v2954 = vadd.f32 %v2810, 1e-07
        %v2955 = vadd.f32 %v2811, 1e-07
        %v2956 = vadd.f32 %v2812, 1e-07
        %v2957 = vadd.f32 %v2813, 1e-07
        %v2958 = vadd.f32 %v2814, 1e-07
        %v2959 = vadd.f32 %v2815, 1e-07
        %v2960 = vadd.f32 %v2816, 1e-07
        %v2961 = vadd.f32 %v2817, 1e-07
        %v2962 = vadd.f32 %v2818, 1e-07
        %v2963 = vadd.f32 %v2819, 1e-07
        %v2964 = vadd.f32 %v2820, 1e-07
        %v2965 = vadd.f32 %v2821, 1e-07
        %v2966 = vadd.f32 %v2822, 1e-07
        %v2967 = vadd.f32 %v2823, 1e-07
        %v2968 = vadd.f32 %v2824, 1e-07
        %v2969 = vadd.f32 %v2825, 1e-07
        %v2970 = vadd.f32 %v2826, 1e-07
        %v2971 = vadd.f32 %v2827, 1e-07
        %v2972 = vadd.f32 %v2828, 1e-07
        %v2973 = vadd.f32 %v2829, 1e-07
        %v2974 = vadd.f32 %v2830, 1e-07
        %v2975 = vadd.f32 %v2831, 1e-07
        %v2976 = vadd.f32 %v2832, 1e-07
        %v2977 = vadd.f32 %v2833, 1e-07
        %v2978 = vadd.f32 %v2834, 1e-07
        %v2979 = vadd.f32 %v2835, 1e-07
        %v2980 = vadd.f32 %v2836, 1e-07
        %v2981 = vadd.f32 %v2837, 1e-07
        %v2982 = vadd.f32 %v2838, 1e-07
        %v2983 = vadd.f32 %v2839, 1e-07
        %v2984 = vadd.f32 %v2840, 1e-07
        %v2985 = vadd.f32 %v2841, 1e-07
        %v2986 = vadd.f32 %v2842, 1e-07
        %v2987 = vadd.f32 %v2843, 1e-07
        %v2988 = vadd.f32 %v2844, 1e-07
        %v2989 = vadd.f32 %v2845, 1e-07
        %v2990 = vadd.f32 %v2846, 1e-07
        %v2991 = vadd.f32 %v2847, 1e-07
        %v2992 = vadd.f32 %v2848, 1e-07
        %v2993 = vadd.f32 %v2849, 1e-07
        %v2994 = vadd.f32 %v2850, 1e-07
        %v2995 = vadd.f32 %v2851, 1e-07
        %v2996 = vadd.f32 %v2852, 1e-07
        %v2997 = vadd.f32 %v2853, 1e-07
        %v2998 = vadd.f32 %v2854, 1e-07
        %v2999 = vadd.f32 %v2855, 1e-07
        %v3000 = vadd.f32 %v2856, 1e-07
        %v3001 = vadd.f32 %v2857, 1e-07
        %v3002 = vmul.f32 %v2858, 0.45
        %v3003 = vmul.f32 %v2859, 0.45
        %v3004 = vmul.f32 %v2860, 0.45
        %v3005 = vmul.f32 %v2861, 0.45
        %v3006 = vmul.f32 %v2862, 0.45
        %v3007 = vmul.f32 %v2863, 0.45
        %v3008 = vmul.f32 %v2864, 0.45
        %v3009 = vmul.f32 %v2865, 0.45
        %v3010 = vmul.f32 %v2866, 0.45
        %v3011 = vmul.f32 %v2867, 0.45
        %v3012 = vmul.f32 %v2868, 0.45
        %v3013 = vmul.f32 %v2869, 0.45
        %v3014 = vmul.f32 %v2870, 0.45
        %v3015 = vmul.f32 %v2871, 0.45
        %v3016 = vmul.f32 %v2872, 0.45
        %v3017 = vmul.f32 %v2873, 0.45
        %v3018 = vmul.f32 %v2874, 0.45
        %v3019 = vmul.f32 %v2875, 0.45
        %v3020 = vmul.f32 %v2876, 0.45
        %v3021 = vmul.f32 %v2877, 0.45
        %v3022 = vmul.f32 %v2878, 0.45
        %v3023 = vmul.f32 %v2879, 0.45
        %v3024 = vmul.f32 %v2880, 0.45
        %v3025 = vmul.f32 %v2881, 0.45
        %v3026 = vmul.f32 %v2882, 0.45
        %v3027 = vmul.f32 %v2883, 0.45
        %v3028 = vmul.f32 %v2884, 0.45
        %v3029 = vmul.f32 %v2885, 0.45
        %v3030 = vmul.f32 %v2886, 0.45
        %v3031 = vmul.f32 %v2887, 0.45
        %v3032 = vmul.f32 %v2888, 0.45
        %v3033 = vmul.f32 %v2889, 0.45
        %v3034 = vmul.f32 %v2890, 0.45
        %v3035 = vmul.f32 %v2891, 0.45
        %v3036 = vmul.f32 %v2892, 0.45
        %v3037 = vmul.f32 %v2893, 0.45
        %v3038 = vmul.f32 %v2894, 0.45
        %v3039 = vmul.f32 %v2895, 0.45
        %v3040 = vmul.f32 %v2896, 0.45
        %v3041 = vmul.f32 %v2897, 0.45
        %v3042 = vmul.f32 %v2898, 0.45
        %v3043 = vmul.f32 %v2899, 0.45
        %v3044 = vmul.f32 %v2900, 0.45
        %v3045 = vmul.f32 %v2901, 0.45
        %v3046 = vmul.f32 %v2902, 0.45
        %v3047 = vmul.f32 %v2903, 0.45
        %v3048 = vmul.f32 %v2904, 0.45
        %v3049 = vmul.f32 %v2905, 0.45
        %v3050 = vmul.f32 %v2906, 0.45
        %v3051 = vmul.f32 %v2907, 0.45
        %v3052 = vmul.f32 %v2908, 0.45
        %v3053 = vmul.f32 %v2909, 0.45
        %v3054 = vmul.f32 %v2910, 0.45
        %v3055 = vmul.f32 %v2911, 0.45
        %v3056 = vmul.f32 %v2912, 0.45
        %v3057 = vmul.f32 %v2913, 0.45
        %v3058 = vmul.f32 %v2914, 0.45
        %v3059 = vmul.f32 %v2915, 0.45
        %v3060 = vmul.f32 %v2916, 0.45
        %v3061 = vmul.f32 %v2917, 0.45
        %v3062 = vmul.f32 %v2918, 0.45
        %v3063 = vmul.f32 %v2919, 0.45
        %v3064 = vmul.f32 %v2920, 0.45
        %v3065 = vmul.f32 %v2921, 0.45
        %v3066 = vmul.f32 %v2922, 0.45
        %v3067 = vmul.f32 %v2923, 0.45
        %v3068 = vmul.f32 %v2924, 0.45
        %v3069 = vmul.f32 %v2925, 0.45
        %v3070 = vmul.f32 %v2926, 0.45
        %v3071 = vmul.f32 %v2927, 0.45
        %v3072 = vmul.f32 %v2928, 0.45
        %v3073 = vmul.f32 %v2929, 0.45
        %v3074 = vmul.f32 %v2930, 0.45
        %v3075 = vmul.f32 %v2931, 0.45
        %v3076 = vmul.f32 %v2932, 0.45
        %v3077 = vmul.f32 %v2933, 0.45
        %v3078 = vmul.f32 %v2934, 0.45
        %v3079 = vmul.f32 %v2935, 0.45
        %v3080 = vmul.f32 %v2936, 0.45
        %v3081 = vmul.f32 %v2937, 0.45
        %v3082 = vmul.f32 %v2938, 0.45
        %v3083 = vmul.f32 %v2939, 0.45
        %v3084 = vmul.f32 %v2940, 0.45
        %v3085 = vmul.f32 %v2941, 0.45
        %v3086 = vmul.f32 %v2942, 0.45
        %v3087 = vmul.f32 %v2943, 0.45
        %v3088 = vmul.f32 %v2944, 0.45
        %v3089 = vmul.f32 %v2945, 0.45
        %v3090 = vmul.f32 %v2946, 0.45
        %v3091 = vmul.f32 %v2947, 0.45
        %v3092 = vmul.f32 %v2948, 0.45
        %v3093 = vmul.f32 %v2949, 0.45
        %v3094 = vmul.f32 %v2950, 0.45
        %v3095 = vmul.f32 %v2951, 0.45
        %v3096 = vmul.f32 %v2952, 0.45
        %v3097 = vmul.f32 %v2953, 0.45
        %v3098 = vmul.f32 %v2954, 0.45
        %v3099 = vmul.f32 %v2955, 0.45
        %v3100 = vmul.f32 %v2956, 0.45
        %v3101 = vmul.f32 %v2957, 0.45
        %v3102 = vmul.f32 %v2958, 0.45
        %v3103 = vmul.f32 %v2959, 0.45
        %v3104 = vmul.f32 %v2960, 0.45
        %v3105 = vmul.f32 %v2961, 0.45
        %v3106 = vmul.f32 %v2962, 0.45
        %v3107 = vmul.f32 %v2963, 0.45
        %v3108 = vmul.f32 %v2964, 0.45
        %v3109 = vmul.f32 %v2965, 0.45
        %v3110 = vmul.f32 %v2966, 0.45
        %v3111 = vmul.f32 %v2967, 0.45
        %v3112 = vmul.f32 %v2968, 0.45
        %v3113 = vmul.f32 %v2969, 0.45
        %v3114 = vmul.f32 %v2970, 0.45
        %v3115 = vmul.f32 %v2971, 0.45
        %v3116 = vmul.f32 %v2972, 0.45
        %v3117 = vmul.f32 %v2973, 0.45
        %v3118 = vmul.f32 %v2974, 0.45
        %v3119 = vmul.f32 %v2975, 0.45
        %v3120 = vmul.f32 %v2976, 0.45
        %v3121 = vmul.f32 %v2977, 0.45
        %v3122 = vmul.f32 %v2978, 0.45
        %v3123 = vmul.f32 %v2979, 0.45
        %v3124 = vmul.f32 %v2980, 0.45
        %v3125 = vmul.f32 %v2981, 0.45
        %v3126 = vmul.f32 %v2982, 0.45
        %v3127 = vmul.f32 %v2983, 0.45
        %v3128 = vmul.f32 %v2984, 0.45
        %v3129 = vmul.f32 %v2985, 0.45
        %v3130 = vmul.f32 %v2986, 0.45
        %v3131 = vmul.f32 %v2987, 0.45
        %v3132 = vmul.f32 %v2988, 0.45
        %v3133 = vmul.f32 %v2989, 0.45
        %v3134 = vmul.f32 %v2990, 0.45
        %v3135 = vmul.f32 %v2991, 0.45
        %v3136 = vmul.f32 %v2992, 0.45
        %v3137 = vmul.f32 %v2993, 0.45
        %v3138 = vmul.f32 %v2994, 0.45
        %v3139 = vmul.f32 %v2995, 0.45
        %v3140 = vmul.f32 %v2996, 0.45
        %v3141 = vmul.f32 %v2997, 0.45
        %v3142 = vmul.f32 %v2998, 0.45
        %v3143 = vmul.f32 %v2999, 0.45
        %v3144 = vmul.f32 %v3000, 0.45
        %v3145 = vmul.f32 %v3001, 0.45
        %vm3146 = vcmp.gt.f32.partialorder %v2227, %v3002
        %vm3147 = vcmp.gt.f32.partialorder %v2228, %v3003
        %vm3148 = vcmp.gt.f32.partialorder %v2229, %v3004
        %vm3149 = vcmp.gt.f32.partialorder %v2230, %v3005
        %vm3150 = vcmp.gt.f32.partialorder %v2231, %v3006
        %vm3151 = vcmp.gt.f32.partialorder %v2232, %v3007
        %vm3152 = vcmp.gt.f32.partialorder %v2233, %v3008
        %vm3153 = vcmp.gt.f32.partialorder %v2234, %v3009
        %vm3154 = vcmp.gt.f32.partialorder %v2235, %v3010
        %vm3155 = vcmp.gt.f32.partialorder %v2236, %v3011
        %vm3156 = vcmp.gt.f32.partialorder %v2237, %v3012
        %vm3157 = vcmp.gt.f32.partialorder %v2238, %v3013
        %vm3158 = vcmp.gt.f32.partialorder %v2239, %v3014
        %vm3159 = vcmp.gt.f32.partialorder %v2240, %v3015
        %vm3160 = vcmp.gt.f32.partialorder %v2241, %v3016
        %vm3161 = vcmp.gt.f32.partialorder %v2242, %v3017
        %vm3162 = vcmp.gt.f32.partialorder %v2243, %v3018
        %vm3163 = vcmp.gt.f32.partialorder %v2244, %v3019
        %vm3164 = vcmp.gt.f32.partialorder %v2245, %v3020
        %vm3165 = vcmp.gt.f32.partialorder %v2246, %v3021
        %vm3166 = vcmp.gt.f32.partialorder %v2247, %v3022
        %vm3167 = vcmp.gt.f32.partialorder %v2248, %v3023
        %vm3168 = vcmp.gt.f32.partialorder %v2249, %v3024
        %vm3169 = vcmp.gt.f32.partialorder %v2250, %v3025
        %vm3170 = vcmp.gt.f32.partialorder %v2251, %v3026
        %vm3171 = vcmp.gt.f32.partialorder %v2252, %v3027
        %vm3172 = vcmp.gt.f32.partialorder %v2253, %v3028
        %vm3173 = vcmp.gt.f32.partialorder %v2254, %v3029
        %vm3174 = vcmp.gt.f32.partialorder %v2255, %v3030
        %vm3175 = vcmp.gt.f32.partialorder %v2256, %v3031
        %vm3176 = vcmp.gt.f32.partialorder %v2257, %v3032
        %vm3177 = vcmp.gt.f32.partialorder %v2258, %v3033
        %vm3178 = vcmp.gt.f32.partialorder %v2259, %v3034
        %vm3179 = vcmp.gt.f32.partialorder %v2260, %v3035
        %vm3180 = vcmp.gt.f32.partialorder %v2261, %v3036
        %vm3181 = vcmp.gt.f32.partialorder %v2262, %v3037
        %vm3182 = vcmp.gt.f32.partialorder %v2263, %v3038
        %vm3183 = vcmp.gt.f32.partialorder %v2264, %v3039
        %vm3184 = vcmp.gt.f32.partialorder %v2265, %v3040
        %vm3185 = vcmp.gt.f32.partialorder %v2266, %v3041
        %vm3186 = vcmp.gt.f32.partialorder %v2267, %v3042
        %vm3187 = vcmp.gt.f32.partialorder %v2268, %v3043
        %vm3188 = vcmp.gt.f32.partialorder %v2269, %v3044
        %vm3189 = vcmp.gt.f32.partialorder %v2270, %v3045
        %vm3190 = vcmp.gt.f32.partialorder %v2271, %v3046
        %vm3191 = vcmp.gt.f32.partialorder %v2272, %v3047
        %vm3192 = vcmp.gt.f32.partialorder %v2273, %v3048
        %vm3193 = vcmp.gt.f32.partialorder %v2274, %v3049
        %vm3194 = vcmp.gt.f32.partialorder %v2275, %v3050
        %vm3195 = vcmp.gt.f32.partialorder %v2276, %v3051
        %vm3196 = vcmp.gt.f32.partialorder %v2277, %v3052
        %vm3197 = vcmp.gt.f32.partialorder %v2278, %v3053
        %vm3198 = vcmp.gt.f32.partialorder %v2279, %v3054
        %vm3199 = vcmp.gt.f32.partialorder %v2280, %v3055
        %vm3200 = vcmp.gt.f32.partialorder %v2281, %v3056
        %vm3201 = vcmp.gt.f32.partialorder %v2282, %v3057
        %vm3202 = vcmp.gt.f32.partialorder %v2283, %v3058
        %vm3203 = vcmp.gt.f32.partialorder %v2284, %v3059
        %vm3204 = vcmp.gt.f32.partialorder %v2285, %v3060
        %vm3205 = vcmp.gt.f32.partialorder %v2286, %v3061
        %vm3206 = vcmp.gt.f32.partialorder %v2287, %v3062
        %vm3207 = vcmp.gt.f32.partialorder %v2288, %v3063
        %vm3208 = vcmp.gt.f32.partialorder %v2289, %v3064
        %vm3209 = vcmp.gt.f32.partialorder %v2290, %v3065
        %vm3210 = vcmp.gt.f32.partialorder %v2291, %v3066
        %vm3211 = vcmp.gt.f32.partialorder %v2292, %v3067
        %vm3212 = vcmp.gt.f32.partialorder %v2293, %v3068
        %vm3213 = vcmp.gt.f32.partialorder %v2294, %v3069
        %vm3214 = vcmp.gt.f32.partialorder %v2295, %v3070
        %vm3215 = vcmp.gt.f32.partialorder %v2296, %v3071
        %vm3216 = vcmp.gt.f32.partialorder %v2297, %v3072
        %vm3217 = vcmp.gt.f32.partialorder %v2298, %v3073
        %vm3218 = vcmp.gt.f32.partialorder %v2299, %v3074
        %vm3219 = vcmp.gt.f32.partialorder %v2300, %v3075
        %vm3220 = vcmp.gt.f32.partialorder %v2301, %v3076
        %vm3221 = vcmp.gt.f32.partialorder %v2302, %v3077
        %vm3222 = vcmp.gt.f32.partialorder %v2303, %v3078
        %vm3223 = vcmp.gt.f32.partialorder %v2304, %v3079
        %vm3224 = vcmp.gt.f32.partialorder %v2305, %v3080
        %vm3225 = vcmp.gt.f32.partialorder %v2306, %v3081
        %vm3226 = vcmp.gt.f32.partialorder %v2307, %v3082
        %vm3227 = vcmp.gt.f32.partialorder %v2308, %v3083
        %vm3228 = vcmp.gt.f32.partialorder %v2309, %v3084
        %vm3229 = vcmp.gt.f32.partialorder %v2310, %v3085
        %vm3230 = vcmp.gt.f32.partialorder %v2311, %v3086
        %vm3231 = vcmp.gt.f32.partialorder %v2312, %v3087
        %vm3232 = vcmp.gt.f32.partialorder %v2313, %v3088
        %vm3233 = vcmp.gt.f32.partialorder %v2314, %v3089
        %vm3234 = vcmp.gt.f32.partialorder %v2315, %v3090
        %vm3235 = vcmp.gt.f32.partialorder %v2316, %v3091
        %vm3236 = vcmp.gt.f32.partialorder %v2317, %v3092
        %vm3237 = vcmp.gt.f32.partialorder %v2318, %v3093
        %vm3238 = vcmp.gt.f32.partialorder %v2319, %v3094
        %vm3239 = vcmp.gt.f32.partialorder %v2320, %v3095
        %vm3240 = vcmp.gt.f32.partialorder %v2321, %v3096
        %vm3241 = vcmp.gt.f32.partialorder %v2322, %v3097
        %vm3242 = vcmp.gt.f32.partialorder %v2323, %v3098
        %vm3243 = vcmp.gt.f32.partialorder %v2324, %v3099
        %vm3244 = vcmp.gt.f32.partialorder %v2325, %v3100
        %vm3245 = vcmp.gt.f32.partialorder %v2326, %v3101
        %vm3246 = vcmp.gt.f32.partialorder %v2327, %v3102
        %vm3247 = vcmp.gt.f32.partialorder %v2328, %v3103
        %vm3248 = vcmp.gt.f32.partialorder %v2329, %v3104
        %vm3249 = vcmp.gt.f32.partialorder %v2330, %v3105
        %vm3250 = vcmp.gt.f32.partialorder %v2331, %v3106
        %vm3251 = vcmp.gt.f32.partialorder %v2332, %v3107
        %vm3252 = vcmp.gt.f32.partialorder %v2333, %v3108
        %vm3253 = vcmp.gt.f32.partialorder %v2334, %v3109
        %vm3254 = vcmp.gt.f32.partialorder %v2335, %v3110
        %vm3255 = vcmp.gt.f32.partialorder %v2336, %v3111
        %vm3256 = vcmp.gt.f32.partialorder %v2337, %v3112
        %vm3257 = vcmp.gt.f32.partialorder %v2338, %v3113
        %vm3258 = vcmp.gt.f32.partialorder %v2339, %v3114
        %vm3259 = vcmp.gt.f32.partialorder %v2340, %v3115
        %vm3260 = vcmp.gt.f32.partialorder %v2341, %v3116
        %vm3261 = vcmp.gt.f32.partialorder %v2342, %v3117
        %vm3262 = vcmp.gt.f32.partialorder %v2343, %v3118
        %vm3263 = vcmp.gt.f32.partialorder %v2344, %v3119
        %vm3264 = vcmp.gt.f32.partialorder %v2345, %v3120
        %vm3265 = vcmp.gt.f32.partialorder %v2346, %v3121
        %vm3266 = vcmp.gt.f32.partialorder %v2347, %v3122
        %vm3267 = vcmp.gt.f32.partialorder %v2348, %v3123
        %vm3268 = vcmp.gt.f32.partialorder %v2349, %v3124
        %vm3269 = vcmp.gt.f32.partialorder %v2350, %v3125
        %vm3270 = vcmp.gt.f32.partialorder %v2351, %v3126
        %vm3271 = vcmp.gt.f32.partialorder %v2352, %v3127
        %vm3272 = vcmp.gt.f32.partialorder %v2353, %v3128
        %vm3273 = vcmp.gt.f32.partialorder %v2354, %v3129
        %vm3274 = vcmp.gt.f32.partialorder %v2355, %v3130
        %vm3275 = vcmp.gt.f32.partialorder %v2356, %v3131
        %vm3276 = vcmp.gt.f32.partialorder %v2357, %v3132
        %vm3277 = vcmp.gt.f32.partialorder %v2358, %v3133
        %vm3278 = vcmp.gt.f32.partialorder %v2359, %v3134
        %vm3279 = vcmp.gt.f32.partialorder %v2360, %v3135
        %vm3280 = vcmp.gt.f32.partialorder %v2361, %v3136
        %vm3281 = vcmp.gt.f32.partialorder %v2362, %v3137
        %vm3282 = vcmp.gt.f32.partialorder %v2363, %v3138
        %vm3283 = vcmp.gt.f32.partialorder %v2364, %v3139
        %vm3284 = vcmp.gt.f32.partialorder %v2365, %v3140
        %vm3285 = vcmp.gt.f32.partialorder %v2366, %v3141
        %vm3286 = vcmp.gt.f32.partialorder %v2367, %v3142
        %vm3287 = vcmp.gt.f32.partialorder %v2368, %v3143
        %vm3288 = vcmp.gt.f32.partialorder %v2369, %v3144
        %vm3289 = vcmp.gt.f32.partialorder %v2370, %v3145
        %v3290 = vlaneseq
        %v3291 = vshrl.u32 %v3290, 7
        %v3292 = vadd.s32 %v3291, 8
        %v3293 = vadd.s32 %v3291, 16
        %v3294 = vadd.s32 %v3291, 24
        %v3295 = vadd.s32 %v3291, 32
        %v3296 = vadd.s32 %v3291, 40
        %v3297 = vadd.s32 %v3291, 48
        %v3298 = vadd.s32 %v3291, 56
        %v3299 = vadd.s32 %v3291, 64
        %v3300 = vadd.s32 %v3291, 72
        %v3301 = vadd.s32 %v3291, 80
        %v3302 = vadd.s32 %v3291, 88
        %v3303 = vadd.s32 %v3291, 96
        %v3304 = vadd.s32 %v3291, 104
        %v3305 = vadd.s32 %v3291, 112
        %v3306 = vadd.s32 %v3291, 120
        %v3307 = vadd.s32 %v3291, 128
        %v3308 = vadd.s32 %v3291, 136
        %v3309 = vadd.s32 %v3291, 144
        %v3310 = vadd.s32 %v3291, 152
        %v3311 = vadd.s32 %v3291, 160
        %v3312 = vadd.s32 %v3291, 168
        %v3313 = vadd.s32 %v3291, 176
        %v3314 = vadd.s32 %v3291, 184
        %v3315 = vadd.s32 %v3291, 192
        %v3316 = vadd.s32 %v3291, 200
        %v3317 = vadd.s32 %v3291, 208
        %v3318 = vadd.s32 %v3291, 216
        %v3319 = vadd.s32 %v3291, 224
        %v3320 = vadd.s32 %v3291, 232
        %v3321 = vadd.s32 %v3291, 240
        %v3322 = vadd.s32 %v3291, 248
        %v3323 = vadd.s32 %v3291, 256
        %v3324 = vadd.s32 %v3291, 264
        %v3325 = vadd.s32 %v3291, 272
        %v3326 = vadd.s32 %v3291, 280
        %v3327 = vadd.s32 %v3291, 288
        %v3328 = vadd.s32 %v3291, 296
        %v3329 = vadd.s32 %v3291, 304
        %v3330 = vadd.s32 %v3291, 312
        %v3331 = vadd.s32 %v3291, 320
        %v3332 = vadd.s32 %v3291, 328
        %v3333 = vadd.s32 %v3291, 336
        %v3334 = vadd.s32 %v3291, 344
        %v3335 = vadd.s32 %v3291, 352
        %v3336 = vadd.s32 %v3291, 360
        %v3337 = vadd.s32 %v3291, 368
        %v3338 = vadd.s32 %v3291, 376
        %v3339 = vlaneseq
        %v3340 = vand.u32 %v3339, 127
        %v3341 = vadd.s32 %v3340, 128
        %v3342 = vadd.s32 %v3340, 256
        %vm3343 = vcmp.gt.s32.totalorder %v3340, %v3291
        %vm3344 = vcmp.gt.s32.totalorder %v3341, %v3291
        %vm3345 = vcmp.gt.s32.totalorder %v3342, %v3291
        %vm3346 = vcmp.gt.s32.totalorder %v3340, %v3292
        %vm3347 = vcmp.gt.s32.totalorder %v3341, %v3292
        %vm3348 = vcmp.gt.s32.totalorder %v3342, %v3292
        %vm3349 = vcmp.gt.s32.totalorder %v3340, %v3293
        %vm3350 = vcmp.gt.s32.totalorder %v3341, %v3293
        %vm3351 = vcmp.gt.s32.totalorder %v3342, %v3293
        %vm3352 = vcmp.gt.s32.totalorder %v3340, %v3294
        %vm3353 = vcmp.gt.s32.totalorder %v3341, %v3294
        %vm3354 = vcmp.gt.s32.totalorder %v3342, %v3294
        %vm3355 = vcmp.gt.s32.totalorder %v3340, %v3295
        %vm3356 = vcmp.gt.s32.totalorder %v3341, %v3295
        %vm3357 = vcmp.gt.s32.totalorder %v3342, %v3295
        %vm3358 = vcmp.gt.s32.totalorder %v3340, %v3296
        %vm3359 = vcmp.gt.s32.totalorder %v3341, %v3296
        %vm3360 = vcmp.gt.s32.totalorder %v3342, %v3296
        %vm3361 = vcmp.gt.s32.totalorder %v3340, %v3297
        %vm3362 = vcmp.gt.s32.totalorder %v3341, %v3297
        %vm3363 = vcmp.gt.s32.totalorder %v3342, %v3297
        %vm3364 = vcmp.gt.s32.totalorder %v3340, %v3298
        %vm3365 = vcmp.gt.s32.totalorder %v3341, %v3298
        %vm3366 = vcmp.gt.s32.totalorder %v3342, %v3298
        %vm3367 = vcmp.gt.s32.totalorder %v3340, %v3299
        %vm3368 = vcmp.gt.s32.totalorder %v3341, %v3299
        %vm3369 = vcmp.gt.s32.totalorder %v3342, %v3299
        %vm3370 = vcmp.gt.s32.totalorder %v3340, %v3300
        %vm3371 = vcmp.gt.s32.totalorder %v3341, %v3300
        %vm3372 = vcmp.gt.s32.totalorder %v3342, %v3300
        %vm3373 = vcmp.gt.s32.totalorder %v3340, %v3301
        %vm3374 = vcmp.gt.s32.totalorder %v3341, %v3301
        %vm3375 = vcmp.gt.s32.totalorder %v3342, %v3301
        %vm3376 = vcmp.gt.s32.totalorder %v3340, %v3302
        %vm3377 = vcmp.gt.s32.totalorder %v3341, %v3302
        %vm3378 = vcmp.gt.s32.totalorder %v3342, %v3302
        %vm3379 = vcmp.gt.s32.totalorder %v3340, %v3303
        %vm3380 = vcmp.gt.s32.totalorder %v3341, %v3303
        %vm3381 = vcmp.gt.s32.totalorder %v3342, %v3303
        %vm3382 = vcmp.gt.s32.totalorder %v3340, %v3304
        %vm3383 = vcmp.gt.s32.totalorder %v3341, %v3304
        %vm3384 = vcmp.gt.s32.totalorder %v3342, %v3304
        %vm3385 = vcmp.gt.s32.totalorder %v3340, %v3305
        %vm3386 = vcmp.gt.s32.totalorder %v3341, %v3305
        %vm3387 = vcmp.gt.s32.totalorder %v3342, %v3305
        %vm3388 = vcmp.gt.s32.totalorder %v3340, %v3306
        %vm3389 = vcmp.gt.s32.totalorder %v3341, %v3306
        %vm3390 = vcmp.gt.s32.totalorder %v3342, %v3306
        %vm3391 = vcmp.gt.s32.totalorder %v3340, %v3307
        %vm3392 = vcmp.gt.s32.totalorder %v3341, %v3307
        %vm3393 = vcmp.gt.s32.totalorder %v3342, %v3307
        %vm3394 = vcmp.gt.s32.totalorder %v3340, %v3308
        %vm3395 = vcmp.gt.s32.totalorder %v3341, %v3308
        %vm3396 = vcmp.gt.s32.totalorder %v3342, %v3308
        %vm3397 = vcmp.gt.s32.totalorder %v3340, %v3309
        %vm3398 = vcmp.gt.s32.totalorder %v3341, %v3309
        %vm3399 = vcmp.gt.s32.totalorder %v3342, %v3309
        %vm3400 = vcmp.gt.s32.totalorder %v3340, %v3310
        %vm3401 = vcmp.gt.s32.totalorder %v3341, %v3310
        %vm3402 = vcmp.gt.s32.totalorder %v3342, %v3310
        %vm3403 = vcmp.gt.s32.totalorder %v3340, %v3311
        %vm3404 = vcmp.gt.s32.totalorder %v3341, %v3311
        %vm3405 = vcmp.gt.s32.totalorder %v3342, %v3311
        %vm3406 = vcmp.gt.s32.totalorder %v3340, %v3312
        %vm3407 = vcmp.gt.s32.totalorder %v3341, %v3312
        %vm3408 = vcmp.gt.s32.totalorder %v3342, %v3312
        %vm3409 = vcmp.gt.s32.totalorder %v3340, %v3313
        %vm3410 = vcmp.gt.s32.totalorder %v3341, %v3313
        %vm3411 = vcmp.gt.s32.totalorder %v3342, %v3313
        %vm3412 = vcmp.gt.s32.totalorder %v3340, %v3314
        %vm3413 = vcmp.gt.s32.totalorder %v3341, %v3314
        %vm3414 = vcmp.gt.s32.totalorder %v3342, %v3314
        %vm3415 = vcmp.gt.s32.totalorder %v3340, %v3315
        %vm3416 = vcmp.gt.s32.totalorder %v3341, %v3315
        %vm3417 = vcmp.gt.s32.totalorder %v3342, %v3315
        %vm3418 = vcmp.gt.s32.totalorder %v3340, %v3316
        %vm3419 = vcmp.gt.s32.totalorder %v3341, %v3316
        %vm3420 = vcmp.gt.s32.totalorder %v3342, %v3316
        %vm3421 = vcmp.gt.s32.totalorder %v3340, %v3317
        %vm3422 = vcmp.gt.s32.totalorder %v3341, %v3317
        %vm3423 = vcmp.gt.s32.totalorder %v3342, %v3317
        %vm3424 = vcmp.gt.s32.totalorder %v3340, %v3318
        %vm3425 = vcmp.gt.s32.totalorder %v3341, %v3318
        %vm3426 = vcmp.gt.s32.totalorder %v3342, %v3318
        %vm3427 = vcmp.gt.s32.totalorder %v3340, %v3319
        %vm3428 = vcmp.gt.s32.totalorder %v3341, %v3319
        %vm3429 = vcmp.gt.s32.totalorder %v3342, %v3319
        %vm3430 = vcmp.gt.s32.totalorder %v3340, %v3320
        %vm3431 = vcmp.gt.s32.totalorder %v3341, %v3320
        %vm3432 = vcmp.gt.s32.totalorder %v3342, %v3320
        %vm3433 = vcmp.gt.s32.totalorder %v3340, %v3321
        %vm3434 = vcmp.gt.s32.totalorder %v3341, %v3321
        %vm3435 = vcmp.gt.s32.totalorder %v3342, %v3321
        %vm3436 = vcmp.gt.s32.totalorder %v3340, %v3322
        %vm3437 = vcmp.gt.s32.totalorder %v3341, %v3322
        %vm3438 = vcmp.gt.s32.totalorder %v3342, %v3322
        %vm3439 = vcmp.gt.s32.totalorder %v3340, %v3323
        %vm3440 = vcmp.gt.s32.totalorder %v3341, %v3323
        %vm3441 = vcmp.gt.s32.totalorder %v3342, %v3323
        %vm3442 = vcmp.gt.s32.totalorder %v3340, %v3324
        %vm3443 = vcmp.gt.s32.totalorder %v3341, %v3324
        %vm3444 = vcmp.gt.s32.totalorder %v3342, %v3324
        %vm3445 = vcmp.gt.s32.totalorder %v3340, %v3325
        %vm3446 = vcmp.gt.s32.totalorder %v3341, %v3325
        %vm3447 = vcmp.gt.s32.totalorder %v3342, %v3325
        %vm3448 = vcmp.gt.s32.totalorder %v3340, %v3326
        %vm3449 = vcmp.gt.s32.totalorder %v3341, %v3326
        %vm3450 = vcmp.gt.s32.totalorder %v3342, %v3326
        %vm3451 = vcmp.gt.s32.totalorder %v3340, %v3327
        %vm3452 = vcmp.gt.s32.totalorder %v3341, %v3327
        %vm3453 = vcmp.gt.s32.totalorder %v3342, %v3327
        %vm3454 = vcmp.gt.s32.totalorder %v3340, %v3328
        %vm3455 = vcmp.gt.s32.totalorder %v3341, %v3328
        %vm3456 = vcmp.gt.s32.totalorder %v3342, %v3328
        %vm3457 = vcmp.gt.s32.totalorder %v3340, %v3329
        %vm3458 = vcmp.gt.s32.totalorder %v3341, %v3329
        %vm3459 = vcmp.gt.s32.totalorder %v3342, %v3329
        %vm3460 = vcmp.gt.s32.totalorder %v3340, %v3330
        %vm3461 = vcmp.gt.s32.totalorder %v3341, %v3330
        %vm3462 = vcmp.gt.s32.totalorder %v3342, %v3330
        %vm3463 = vcmp.gt.s32.totalorder %v3340, %v3331
        %vm3464 = vcmp.gt.s32.totalorder %v3341, %v3331
        %vm3465 = vcmp.gt.s32.totalorder %v3342, %v3331
        %vm3466 = vcmp.gt.s32.totalorder %v3340, %v3332
        %vm3467 = vcmp.gt.s32.totalorder %v3341, %v3332
        %vm3468 = vcmp.gt.s32.totalorder %v3342, %v3332
        %vm3469 = vcmp.gt.s32.totalorder %v3340, %v3333
        %vm3470 = vcmp.gt.s32.totalorder %v3341, %v3333
        %vm3471 = vcmp.gt.s32.totalorder %v3342, %v3333
        %vm3472 = vcmp.gt.s32.totalorder %v3340, %v3334
        %vm3473 = vcmp.gt.s32.totalorder %v3341, %v3334
        %vm3474 = vcmp.gt.s32.totalorder %v3342, %v3334
        %vm3475 = vcmp.gt.s32.totalorder %v3340, %v3335
        %vm3476 = vcmp.gt.s32.totalorder %v3341, %v3335
        %vm3477 = vcmp.gt.s32.totalorder %v3342, %v3335
        %vm3478 = vcmp.gt.s32.totalorder %v3340, %v3336
        %vm3479 = vcmp.gt.s32.totalorder %v3341, %v3336
        %vm3480 = vcmp.gt.s32.totalorder %v3342, %v3336
        %vm3481 = vcmp.gt.s32.totalorder %v3340, %v3337
        %vm3482 = vcmp.gt.s32.totalorder %v3341, %v3337
        %vm3483 = vcmp.gt.s32.totalorder %v3342, %v3337
        %vm3484 = vcmp.gt.s32.totalorder %v3340, %v3338
        %vm3485 = vcmp.gt.s32.totalorder %v3341, %v3338
        %vm3486 = vcmp.gt.s32.totalorder %v3342, %v3338
        %vm3487 = vmand %vm3146, %vm3343
        %vm3488 = vmand %vm3147, %vm3344
        %vm3489 = vmand %vm3148, %vm3345
        %vm3490 = vmand %vm3149, %vm3346
        %vm3491 = vmand %vm3150, %vm3347
        %vm3492 = vmand %vm3151, %vm3348
        %vm3493 = vmand %vm3152, %vm3349
        %vm3494 = vmand %vm3153, %vm3350
        %vm3495 = vmand %vm3154, %vm3351
        %vm3496 = vmand %vm3155, %vm3352
        %vm3497 = vmand %vm3156, %vm3353
        %vm3498 = vmand %vm3157, %vm3354
        %vm3499 = vmand %vm3158, %vm3355
        %vm3500 = vmand %vm3159, %vm3356
        %vm3501 = vmand %vm3160, %vm3357
        %vm3502 = vmand %vm3161, %vm3358
        %vm3503 = vmand %vm3162, %vm3359
        %vm3504 = vmand %vm3163, %vm3360
        %vm3505 = vmand %vm3164, %vm3361
        %vm3506 = vmand %vm3165, %vm3362
        %vm3507 = vmand %vm3166, %vm3363
        %vm3508 = vmand %vm3167, %vm3364
        %vm3509 = vmand %vm3168, %vm3365
        %vm3510 = vmand %vm3169, %vm3366
        %vm3511 = vmand %vm3170, %vm3367
        %vm3512 = vmand %vm3171, %vm3368
        %vm3513 = vmand %vm3172, %vm3369
        %vm3514 = vmand %vm3173, %vm3370
        %vm3515 = vmand %vm3174, %vm3371
        %vm3516 = vmand %vm3175, %vm3372
        %vm3517 = vmand %vm3176, %vm3373
        %vm3518 = vmand %vm3177, %vm3374
        %vm3519 = vmand %vm3178, %vm3375
        %vm3520 = vmand %vm3179, %vm3376
        %vm3521 = vmand %vm3180, %vm3377
        %vm3522 = vmand %vm3181, %vm3378
        %vm3523 = vmand %vm3182, %vm3379
        %vm3524 = vmand %vm3183, %vm3380
        %vm3525 = vmand %vm3184, %vm3381
        %vm3526 = vmand %vm3185, %vm3382
        %vm3527 = vmand %vm3186, %vm3383
        %vm3528 = vmand %vm3187, %vm3384
        %vm3529 = vmand %vm3188, %vm3385
        %vm3530 = vmand %vm3189, %vm3386
        %vm3531 = vmand %vm3190, %vm3387
        %vm3532 = vmand %vm3191, %vm3388
        %vm3533 = vmand %vm3192, %vm3389
        %vm3534 = vmand %vm3193, %vm3390
        %vm3535 = vmand %vm3194, %vm3391
        %vm3536 = vmand %vm3195, %vm3392
        %vm3537 = vmand %vm3196, %vm3393
        %vm3538 = vmand %vm3197, %vm3394
        %vm3539 = vmand %vm3198, %vm3395
        %vm3540 = vmand %vm3199, %vm3396
        %vm3541 = vmand %vm3200, %vm3397
        %vm3542 = vmand %vm3201, %vm3398
        %vm3543 = vmand %vm3202, %vm3399
        %vm3544 = vmand %vm3203, %vm3400
        %vm3545 = vmand %vm3204, %vm3401
        %vm3546 = vmand %vm3205, %vm3402
        %vm3547 = vmand %vm3206, %vm3403
        %vm3548 = vmand %vm3207, %vm3404
        %vm3549 = vmand %vm3208, %vm3405
        %vm3550 = vmand %vm3209, %vm3406
        %vm3551 = vmand %vm3210, %vm3407
        %vm3552 = vmand %vm3211, %vm3408
        %vm3553 = vmand %vm3212, %vm3409
        %vm3554 = vmand %vm3213, %vm3410
        %vm3555 = vmand %vm3214, %vm3411
        %vm3556 = vmand %vm3215, %vm3412
        %vm3557 = vmand %vm3216, %vm3413
        %vm3558 = vmand %vm3217, %vm3414
        %vm3559 = vmand %vm3218, %vm3415
        %vm3560 = vmand %vm3219, %vm3416
        %vm3561 = vmand %vm3220, %vm3417
        %vm3562 = vmand %vm3221, %vm3418
        %vm3563 = vmand %vm3222, %vm3419
        %vm3564 = vmand %vm3223, %vm3420
        %vm3565 = vmand %vm3224, %vm3421
        %vm3566 = vmand %vm3225, %vm3422
        %vm3567 = vmand %vm3226, %vm3423
        %vm3568 = vmand %vm3227, %vm3424
        %vm3569 = vmand %vm3228, %vm3425
        %vm3570 = vmand %vm3229, %vm3426
        %vm3571 = vmand %vm3230, %vm3427
        %vm3572 = vmand %vm3231, %vm3428
        %vm3573 = vmand %vm3232, %vm3429
        %vm3574 = vmand %vm3233, %vm3430
        %vm3575 = vmand %vm3234, %vm3431
        %vm3576 = vmand %vm3235, %vm3432
        %vm3577 = vmand %vm3236, %vm3433
        %vm3578 = vmand %vm3237, %vm3434
        %vm3579 = vmand %vm3238, %vm3435
        %vm3580 = vmand %vm3239, %vm3436
        %vm3581 = vmand %vm3240, %vm3437
        %vm3582 = vmand %vm3241, %vm3438
        %vm3583 = vmand %vm3242, %vm3439
        %vm3584 = vmand %vm3243, %vm3440
        %vm3585 = vmand %vm3244, %vm3441
        %vm3586 = vmand %vm3245, %vm3442
        %vm3587 = vmand %vm3246, %vm3443
        %vm3588 = vmand %vm3247, %vm3444
        %vm3589 = vmand %vm3248, %vm3445
        %vm3590 = vmand %vm3249, %vm3446
        %vm3591 = vmand %vm3250, %vm3447
        %vm3592 = vmand %vm3251, %vm3448
        %vm3593 = vmand %vm3252, %vm3449
        %vm3594 = vmand %vm3253, %vm3450
        %vm3595 = vmand %vm3254, %vm3451
        %vm3596 = vmand %vm3255, %vm3452
        %vm3597 = vmand %vm3256, %vm3453
        %vm3598 = vmand %vm3257, %vm3454
        %vm3599 = vmand %vm3258, %vm3455
        %vm3600 = vmand %vm3259, %vm3456
        %vm3601 = vmand %vm3260, %vm3457
        %vm3602 = vmand %vm3261, %vm3458
        %vm3603 = vmand %vm3262, %vm3459
        %vm3604 = vmand %vm3263, %vm3460
        %vm3605 = vmand %vm3264, %vm3461
        %vm3606 = vmand %vm3265, %vm3462
        %vm3607 = vmand %vm3266, %vm3463
        %vm3608 = vmand %vm3267, %vm3464
        %vm3609 = vmand %vm3268, %vm3465
        %vm3610 = vmand %vm3269, %vm3466
        %vm3611 = vmand %vm3270, %vm3467
        %vm3612 = vmand %vm3271, %vm3468
        %vm3613 = vmand %vm3272, %vm3469
        %vm3614 = vmand %vm3273, %vm3470
        %vm3615 = vmand %vm3274, %vm3471
        %vm3616 = vmand %vm3275, %vm3472
        %vm3617 = vmand %vm3276, %vm3473
        %vm3618 = vmand %vm3277, %vm3474
        %vm3619 = vmand %vm3278, %vm3475
        %vm3620 = vmand %vm3279, %vm3476
        %vm3621 = vmand %vm3280, %vm3477
        %vm3622 = vmand %vm3281, %vm3478
        %vm3623 = vmand %vm3282, %vm3479
        %vm3624 = vmand %vm3283, %vm3480
        %vm3625 = vmand %vm3284, %vm3481
        %vm3626 = vmand %vm3285, %vm3482
        %vm3627 = vmand %vm3286, %vm3483
        %vm3628 = vmand %vm3287, %vm3484
        %vm3629 = vmand %vm3288, %vm3485
        %vm3630 = vmand %vm3289, %vm3486
        %v3631 = vsel %vm3487, 1.0, 0.0
        %v3632 = vsel %vm3488, 1.0, 0.0
        %v3633 = vsel %vm3489, 1.0, 0.0
        %v3634 = vsel %vm3490, 1.0, 0.0
        %v3635 = vsel %vm3491, 1.0, 0.0
        %v3636 = vsel %vm3492, 1.0, 0.0
        %v3637 = vsel %vm3493, 1.0, 0.0
        %v3638 = vsel %vm3494, 1.0, 0.0
        %v3639 = vsel %vm3495, 1.0, 0.0
        %v3640 = vsel %vm3496, 1.0, 0.0
        %v3641 = vsel %vm3497, 1.0, 0.0
        %v3642 = vsel %vm3498, 1.0, 0.0
        %v3643 = vsel %vm3499, 1.0, 0.0
        %v3644 = vsel %vm3500, 1.0, 0.0
        %v3645 = vsel %vm3501, 1.0, 0.0
        %v3646 = vsel %vm3502, 1.0, 0.0
        %v3647 = vsel %vm3503, 1.0, 0.0
        %v3648 = vsel %vm3504, 1.0, 0.0
        %v3649 = vsel %vm3505, 1.0, 0.0
        %v3650 = vsel %vm3506, 1.0, 0.0
        %v3651 = vsel %vm3507, 1.0, 0.0
        %v3652 = vsel %vm3508, 1.0, 0.0
        %v3653 = vsel %vm3509, 1.0, 0.0
        %v3654 = vsel %vm3510, 1.0, 0.0
        %v3655 = vsel %vm3511, 1.0, 0.0
        %v3656 = vsel %vm3512, 1.0, 0.0
        %v3657 = vsel %vm3513, 1.0, 0.0
        %v3658 = vsel %vm3514, 1.0, 0.0
        %v3659 = vsel %vm3515, 1.0, 0.0
        %v3660 = vsel %vm3516, 1.0, 0.0
        %v3661 = vsel %vm3517, 1.0, 0.0
        %v3662 = vsel %vm3518, 1.0, 0.0
        %v3663 = vsel %vm3519, 1.0, 0.0
        %v3664 = vsel %vm3520, 1.0, 0.0
        %v3665 = vsel %vm3521, 1.0, 0.0
        %v3666 = vsel %vm3522, 1.0, 0.0
        %v3667 = vsel %vm3523, 1.0, 0.0
        %v3668 = vsel %vm3524, 1.0, 0.0
        %v3669 = vsel %vm3525, 1.0, 0.0
        %v3670 = vsel %vm3526, 1.0, 0.0
        %v3671 = vsel %vm3527, 1.0, 0.0
        %v3672 = vsel %vm3528, 1.0, 0.0
        %v3673 = vsel %vm3529, 1.0, 0.0
        %v3674 = vsel %vm3530, 1.0, 0.0
        %v3675 = vsel %vm3531, 1.0, 0.0
        %v3676 = vsel %vm3532, 1.0, 0.0
        %v3677 = vsel %vm3533, 1.0, 0.0
        %v3678 = vsel %vm3534, 1.0, 0.0
        %v3679 = vsel %vm3535, 1.0, 0.0
        %v3680 = vsel %vm3536, 1.0, 0.0
        %v3681 = vsel %vm3537, 1.0, 0.0
        %v3682 = vsel %vm3538, 1.0, 0.0
        %v3683 = vsel %vm3539, 1.0, 0.0
        %v3684 = vsel %vm3540, 1.0, 0.0
        %v3685 = vsel %vm3541, 1.0, 0.0
        %v3686 = vsel %vm3542, 1.0, 0.0
        %v3687 = vsel %vm3543, 1.0, 0.0
        %v3688 = vsel %vm3544, 1.0, 0.0
        %v3689 = vsel %vm3545, 1.0, 0.0
        %v3690 = vsel %vm3546, 1.0, 0.0
        %v3691 = vsel %vm3547, 1.0, 0.0
        %v3692 = vsel %vm3548, 1.0, 0.0
        %v3693 = vsel %vm3549, 1.0, 0.0
        %v3694 = vsel %vm3550, 1.0, 0.0
        %v3695 = vsel %vm3551, 1.0, 0.0
        %v3696 = vsel %vm3552, 1.0, 0.0
        %v3697 = vsel %vm3553, 1.0, 0.0
        %v3698 = vsel %vm3554, 1.0, 0.0
        %v3699 = vsel %vm3555, 1.0, 0.0
        %v3700 = vsel %vm3556, 1.0, 0.0
        %v3701 = vsel %vm3557, 1.0, 0.0
        %v3702 = vsel %vm3558, 1.0, 0.0
        %v3703 = vsel %vm3559, 1.0, 0.0
        %v3704 = vsel %vm3560, 1.0, 0.0
        %v3705 = vsel %vm3561, 1.0, 0.0
        %v3706 = vsel %vm3562, 1.0, 0.0
        %v3707 = vsel %vm3563, 1.0, 0.0
        %v3708 = vsel %vm3564, 1.0, 0.0
        %v3709 = vsel %vm3565, 1.0, 0.0
        %v3710 = vsel %vm3566, 1.0, 0.0
        %v3711 = vsel %vm3567, 1.0, 0.0
        %v3712 = vsel %vm3568, 1.0, 0.0
        %v3713 = vsel %vm3569, 1.0, 0.0
        %v3714 = vsel %vm3570, 1.0, 0.0
        %v3715 = vsel %vm3571, 1.0, 0.0
        %v3716 = vsel %vm3572, 1.0, 0.0
        %v3717 = vsel %vm3573, 1.0, 0.0
        %v3718 = vsel %vm3574, 1.0, 0.0
        %v3719 = vsel %vm3575, 1.0, 0.0
        %v3720 = vsel %vm3576, 1.0, 0.0
        %v3721 = vsel %vm3577, 1.0, 0.0
        %v3722 = vsel %vm3578, 1.0, 0.0
        %v3723 = vsel %vm3579, 1.0, 0.0
        %v3724 = vsel %vm3580, 1.0, 0.0
        %v3725 = vsel %vm3581, 1.0, 0.0
        %v3726 = vsel %vm3582, 1.0, 0.0
        %v3727 = vsel %vm3583, 1.0, 0.0
        %v3728 = vsel %vm3584, 1.0, 0.0
        %v3729 = vsel %vm3585, 1.0, 0.0
        %v3730 = vsel %vm3586, 1.0, 0.0
        %v3731 = vsel %vm3587, 1.0, 0.0
        %v3732 = vsel %vm3588, 1.0, 0.0
        %v3733 = vsel %vm3589, 1.0, 0.0
        %v3734 = vsel %vm3590, 1.0, 0.0
        %v3735 = vsel %vm3591, 1.0, 0.0
        %v3736 = vsel %vm3592, 1.0, 0.0
        %v3737 = vsel %vm3593, 1.0, 0.0
        %v3738 = vsel %vm3594, 1.0, 0.0
        %v3739 = vsel %vm3595, 1.0, 0.0
        %v3740 = vsel %vm3596, 1.0, 0.0
        %v3741 = vsel %vm3597, 1.0, 0.0
        %v3742 = vsel %vm3598, 1.0, 0.0
        %v3743 = vsel %vm3599, 1.0, 0.0
        %v3744 = vsel %vm3600, 1.0, 0.0
        %v3745 = vsel %vm3601, 1.0, 0.0
        %v3746 = vsel %vm3602, 1.0, 0.0
        %v3747 = vsel %vm3603, 1.0, 0.0
        %v3748 = vsel %vm3604, 1.0, 0.0
        %v3749 = vsel %vm3605, 1.0, 0.0
        %v3750 = vsel %vm3606, 1.0, 0.0
        %v3751 = vsel %vm3607, 1.0, 0.0
        %v3752 = vsel %vm3608, 1.0, 0.0
        %v3753 = vsel %vm3609, 1.0, 0.0
        %v3754 = vsel %vm3610, 1.0, 0.0
        %v3755 = vsel %vm3611, 1.0, 0.0
        %v3756 = vsel %vm3612, 1.0, 0.0
        %v3757 = vsel %vm3613, 1.0, 0.0
        %v3758 = vsel %vm3614, 1.0, 0.0
        %v3759 = vsel %vm3615, 1.0, 0.0
        %v3760 = vsel %vm3616, 1.0, 0.0
        %v3761 = vsel %vm3617, 1.0, 0.0
        %v3762 = vsel %vm3618, 1.0, 0.0
        %v3763 = vsel %vm3619, 1.0, 0.0
        %v3764 = vsel %vm3620, 1.0, 0.0
        %v3765 = vsel %vm3621, 1.0, 0.0
        %v3766 = vsel %vm3622, 1.0, 0.0
        %v3767 = vsel %vm3623, 1.0, 0.0
        %v3768 = vsel %vm3624, 1.0, 0.0
        %v3769 = vsel %vm3625, 1.0, 0.0
        %v3770 = vsel %vm3626, 1.0, 0.0
        %v3771 = vsel %vm3627, 1.0, 0.0
        %v3772 = vsel %vm3628, 1.0, 0.0
        %v3773 = vsel %vm3629, 1.0, 0.0
        %v3774 = vsel %vm3630, 1.0, 0.0
        %3775 = vst [vmem:[#allocation2] sm:$0xff] %v3631
        %3776 = vst [vmem:[#allocation2 + $0x8] sm:$0xff] %v3632
        %3777 = vst [vmem:[#allocation2 + $0x10] sm:$0xff] %v3633
        %3778 = vst [vmem:[#allocation2 + $0x18] sm:$0xff] %v3634
        %3779 = vst [vmem:[#allocation2 + $0x20] sm:$0xff] %v3635
        %3780 = vst [vmem:[#allocation2 + $0x28] sm:$0xff] %v3636
        %3781 = vst [vmem:[#allocation2 + $0x30] sm:$0xff] %v3637
        %3782 = vst [vmem:[#allocation2 + $0x38] sm:$0xff] %v3638
        %3783 = vst [vmem:[#allocation2 + $0x40] sm:$0xff] %v3639
        %3784 = vst [vmem:[#allocation2 + $0x48] sm:$0xff] %v3640
        %3785 = vst [vmem:[#allocation2 + $0x50] sm:$0xff] %v3641
        %3786 = vst [vmem:[#allocation2 + $0x58] sm:$0xff] %v3642
        %3787 = vst [vmem:[#allocation2 + $0x60] sm:$0xff] %v3643
        %3788 = vst [vmem:[#allocation2 + $0x68] sm:$0xff] %v3644
        %3789 = vst [vmem:[#allocation2 + $0x70] sm:$0xff] %v3645
        %3790 = vst [vmem:[#allocation2 + $0x78] sm:$0xff] %v3646
        %3791 = vst [vmem:[#allocation2 + $0x80] sm:$0xff] %v3647
        %3792 = vst [vmem:[#allocation2 + $0x88] sm:$0xff] %v3648
        %3793 = vst [vmem:[#allocation2 + $0x90] sm:$0xff] %v3649
        %3794 = vst [vmem:[#allocation2 + $0x98] sm:$0xff] %v3650
        %3795 = vst [vmem:[#allocation2 + $0xa0] sm:$0xff] %v3651
        %3796 = vst [vmem:[#allocation2 + $0xa8] sm:$0xff] %v3652
        %3797 = vst [vmem:[#allocation2 + $0xb0] sm:$0xff] %v3653
        %3798 = vst [vmem:[#allocation2 + $0xb8] sm:$0xff] %v3654
        %3799 = vst [vmem:[#allocation2 + $0xc0] sm:$0xff] %v3655
        %3800 = vst [vmem:[#allocation2 + $0xc8] sm:$0xff] %v3656
        %3801 = vst [vmem:[#allocation2 + $0xd0] sm:$0xff] %v3657
        %3802 = vst [vmem:[#allocation2 + $0xd8] sm:$0xff] %v3658
        %3803 = vst [vmem:[#allocation2 + $0xe0] sm:$0xff] %v3659
        %3804 = vst [vmem:[#allocation2 + $0xe8] sm:$0xff] %v3660
        %3805 = vst [vmem:[#allocation2 + $0xf0] sm:$0xff] %v3661
        %3806 = vst [vmem:[#allocation2 + $0xf8] sm:$0xff] %v3662
        %3807 = vst [vmem:[#allocation2 + $0x100] sm:$0xff] %v3663
        %3808 = vst [vmem:[#allocation2 + $0x108] sm:$0xff] %v3664
        %3809 = vst [vmem:[#allocation2 + $0x110] sm:$0xff] %v3665
        %3810 = vst [vmem:[#allocation2 + $0x118] sm:$0xff] %v3666
        %3811 = vst [vmem:[#allocation2 + $0x120] sm:$0xff] %v3667
        %3812 = vst [vmem:[#allocation2 + $0x128] sm:$0xff] %v3668
        %3813 = vst [vmem:[#allocation2 + $0x130] sm:$0xff] %v3669
        %3814 = vst [vmem:[#allocation2 + $0x138] sm:$0xff] %v3670
        %3815 = vst [vmem:[#allocation2 + $0x140] sm:$0xff] %v3671
        %3816 = vst [vmem:[#allocation2 + $0x148] sm:$0xff] %v3672
        %3817 = vst [vmem:[#allocation2 + $0x150] sm:$0xff] %v3673
        %3818 = vst [vmem:[#allocation2 + $0x158] sm:$0xff] %v3674
        %3819 = vst [vmem:[#allocation2 + $0x160] sm:$0xff] %v3675
        %3820 = vst [vmem:[#allocation2 + $0x168] sm:$0xff] %v3676
        %3821 = vst [vmem:[#allocation2 + $0x170] sm:$0xff] %v3677
        %3822 = vst [vmem:[#allocation2 + $0x178] sm:$0xff] %v3678
        %3823 = vst [vmem:[#allocation2 + $0x180] sm:$0xff] %v3679
        %3824 = vst [vmem:[#allocation2 + $0x188] sm:$0xff] %v3680
        %3825 = vst [vmem:[#allocation2 + $0x190] sm:$0xff] %v3681
        %3826 = vst [vmem:[#allocation2 + $0x198] sm:$0xff] %v3682
        %3827 = vst [vmem:[#allocation2 + $0x1a0] sm:$0xff] %v3683
        %3828 = vst [vmem:[#allocation2 + $0x1a8] sm:$0xff] %v3684
        %3829 = vst [vmem:[#allocation2 + $0x1b0] sm:$0xff] %v3685
        %3830 = vst [vmem:[#allocation2 + $0x1b8] sm:$0xff] %v3686
        %3831 = vst [vmem:[#allocation2 + $0x1c0] sm:$0xff] %v3687
        %3832 = vst [vmem:[#allocation2 + $0x1c8] sm:$0xff] %v3688
        %3833 = vst [vmem:[#allocation2 + $0x1d0] sm:$0xff] %v3689
        %3834 = vst [vmem:[#allocation2 + $0x1d8] sm:$0xff] %v3690
        %3835 = vst [vmem:[#allocation2 + $0x1e0] sm:$0xff] %v3691
        %3836 = vst [vmem:[#allocation2 + $0x1e8] sm:$0xff] %v3692
        %3837 = vst [vmem:[#allocation2 + $0x1f0] sm:$0xff] %v3693
        %3838 = vst [vmem:[#allocation2 + $0x1f8] sm:$0xff] %v3694
        %3839 = vst [vmem:[#allocation2 + $0x200] sm:$0xff] %v3695
        %3840 = vst [vmem:[#allocation2 + $0x208] sm:$0xff] %v3696
        %3841 = vst [vmem:[#allocation2 + $0x210] sm:$0xff] %v3697
        %3842 = vst [vmem:[#allocation2 + $0x218] sm:$0xff] %v3698
        %3843 = vst [vmem:[#allocation2 + $0x220] sm:$0xff] %v3699
        %3844 = vst [vmem:[#allocation2 + $0x228] sm:$0xff] %v3700
        %3845 = vst [vmem:[#allocation2 + $0x230] sm:$0xff] %v3701
        %3846 = vst [vmem:[#allocation2 + $0x238] sm:$0xff] %v3702
        %3847 = vst [vmem:[#allocation2 + $0x240] sm:$0xff] %v3703
        %3848 = vst [vmem:[#allocation2 + $0x248] sm:$0xff] %v3704
        %3849 = vst [vmem:[#allocation2 + $0x250] sm:$0xff] %v3705
        %3850 = vst [vmem:[#allocation2 + $0x258] sm:$0xff] %v3706
        %3851 = vst [vmem:[#allocation2 + $0x260] sm:$0xff] %v3707
        %3852 = vst [vmem:[#allocation2 + $0x268] sm:$0xff] %v3708
        %3853 = vst [vmem:[#allocation2 + $0x270] sm:$0xff] %v3709
        %3854 = vst [vmem:[#allocation2 + $0x278] sm:$0xff] %v3710
        %3855 = vst [vmem:[#allocation2 + $0x280] sm:$0xff] %v3711
        %3856 = vst [vmem:[#allocation2 + $0x288] sm:$0xff] %v3712
        %3857 = vst [vmem:[#allocation2 + $0x290] sm:$0xff] %v3713
        %3858 = vst [vmem:[#allocation2 + $0x298] sm:$0xff] %v3714
        %3859 = vst [vmem:[#allocation2 + $0x2a0] sm:$0xff] %v3715
        %3860 = vst [vmem:[#allocation2 + $0x2a8] sm:$0xff] %v3716
        %3861 = vst [vmem:[#allocation2 + $0x2b0] sm:$0xff] %v3717
        %3862 = vst [vmem:[#allocation2 + $0x2b8] sm:$0xff] %v3718
        %3863 = vst [vmem:[#allocation2 + $0x2c0] sm:$0xff] %v3719
        %3864 = vst [vmem:[#allocation2 + $0x2c8] sm:$0xff] %v3720
        %3865 = vst [vmem:[#allocation2 + $0x2d0] sm:$0xff] %v3721
        %3866 = vst [vmem:[#allocation2 + $0x2d8] sm:$0xff] %v3722
        %3867 = vst [vmem:[#allocation2 + $0x2e0] sm:$0xff] %v3723
        %3868 = vst [vmem:[#allocation2 + $0x2e8] sm:$0xff] %v3724
        %3869 = vst [vmem:[#allocation2 + $0x2f0] sm:$0xff] %v3725
        %3870 = vst [vmem:[#allocation2 + $0x2f8] sm:$0xff] %v3726
        %3871 = vst [vmem:[#allocation2 + $0x300] sm:$0xff] %v3727
        %3872 = vst [vmem:[#allocation2 + $0x308] sm:$0xff] %v3728
        %3873 = vst [vmem:[#allocation2 + $0x310] sm:$0xff] %v3729
        %3874 = vst [vmem:[#allocation2 + $0x318] sm:$0xff] %v3730
        %3875 = vst [vmem:[#allocation2 + $0x320] sm:$0xff] %v3731
        %3876 = vst [vmem:[#allocation2 + $0x328] sm:$0xff] %v3732
        %3877 = vst [vmem:[#allocation2 + $0x330] sm:$0xff] %v3733
        %3878 = vst [vmem:[#allocation2 + $0x338] sm:$0xff] %v3734
        %3879 = vst [vmem:[#allocation2 + $0x340] sm:$0xff] %v3735
        %3880 = vst [vmem:[#allocation2 + $0x348] sm:$0xff] %v3736
        %3881 = vst [vmem:[#allocation2 + $0x350] sm:$0xff] %v3737
        %3882 = vst [vmem:[#allocation2 + $0x358] sm:$0xff] %v3738
        %3883 = vst [vmem:[#allocation2 + $0x360] sm:$0xff] %v3739
        %3884 = vst [vmem:[#allocation2 + $0x368] sm:$0xff] %v3740
        %3885 = vst [vmem:[#allocation2 + $0x370] sm:$0xff] %v3741
        %3886 = vst [vmem:[#allocation2 + $0x378] sm:$0xff] %v3742
        %3887 = vst [vmem:[#allocation2 + $0x380] sm:$0xff] %v3743
        %3888 = vst [vmem:[#allocation2 + $0x388] sm:$0xff] %v3744
        %3889 = vst [vmem:[#allocation2 + $0x390] sm:$0xff] %v3745
        %3890 = vst [vmem:[#allocation2 + $0x398] sm:$0xff] %v3746
        %3891 = vst [vmem:[#allocation2 + $0x3a0] sm:$0xff] %v3747
        %3892 = vst [vmem:[#allocation2 + $0x3a8] sm:$0xff] %v3748
        %3893 = vst [vmem:[#allocation2 + $0x3b0] sm:$0xff] %v3749
        %3894 = vst [vmem:[#allocation2 + $0x3b8] sm:$0xff] %v3750
        %3895 = vst [vmem:[#allocation2 + $0x3c0] sm:$0xff] %v3751
        %3896 = vst [vmem:[#allocation2 + $0x3c8] sm:$0xff] %v3752
        %3897 = vst [vmem:[#allocation2 + $0x3d0] sm:$0xff] %v3753
        %3898 = vst [vmem:[#allocation2 + $0x3d8] sm:$0xff] %v3754
        %3899 = vst [vmem:[#allocation2 + $0x3e0] sm:$0xff] %v3755
        %3900 = vst [vmem:[#allocation2 + $0x3e8] sm:$0xff] %v3756
        %3901 = vst [vmem:[#allocation2 + $0x3f0] sm:$0xff] %v3757
        %3902 = vst [vmem:[#allocation2 + $0x3f8] sm:$0xff] %v3758
        %3903 = vst [vmem:[#allocation2 + $0x400] sm:$0xff] %v3759
        %3904 = vst [vmem:[#allocation2 + $0x408] sm:$0xff] %v3760
        %3905 = vst [vmem:[#allocation2 + $0x410] sm:$0xff] %v3761
        %3906 = vst [vmem:[#allocation2 + $0x418] sm:$0xff] %v3762
        %3907 = vst [vmem:[#allocation2 + $0x420] sm:$0xff] %v3763
        %3908 = vst [vmem:[#allocation2 + $0x428] sm:$0xff] %v3764
        %3909 = vst [vmem:[#allocation2 + $0x430] sm:$0xff] %v3765
        %3910 = vst [vmem:[#allocation2 + $0x438] sm:$0xff] %v3766
        %3911 = vst [vmem:[#allocation2 + $0x440] sm:$0xff] %v3767
        %3912 = vst [vmem:[#allocation2 + $0x448] sm:$0xff] %v3768
        %3913 = vst [vmem:[#allocation2 + $0x450] sm:$0xff] %v3769
        %3914 = vst [vmem:[#allocation2 + $0x458] sm:$0xff] %v3770
        %3915 = vst [vmem:[#allocation2 + $0x460] sm:$0xff] %v3771
        %3916 = vst [vmem:[#allocation2 + $0x468] sm:$0xff] %v3772
        %3917 = vst [vmem:[#allocation2 + $0x470] sm:$0xff] %v3773
        %3918 = vst [vmem:[#allocation2 + $0x478] sm:$0xff] %v3774
        // While loop
        $region29: #{tpu_custom_call.1} parent=27 // loop_pre_header
          _
        $region30: #{tpu_custom_call.1} parent=27 // loop_header
          %s3920 = sphi 0, %s3922
          %p3921 = scmp.ge.s32.totalorder %s3920, %s171
          %v3925 = vphi %v182, %v3979
        $region31: #{tpu_custom_call.1} parent=27 // loop_header_branch
          %3924 = sbr.rel (%p3921) target = $region35
        $region32: #{tpu_custom_call.1} parent=27 // loop_body
          %s3926 = sshra.s32 %s3920, 3
          %s3927 = sand.u32 %s3920, 7
          %s3928 = sshra.s32 %s3920, 3
          %s3929 = sand.u32 %s3920, 7
          %s3930 = smul.u32 %s3926, 3
          %s3931 = smul.u32 %s3930, 8
          %s3932 = sadd.s32 %s3931, %s3929
          %s3933 = scalar_lea.vmem [#allocation2], %s3932
          %v3934 = vld [vmem:[%s3933] ss:$8 sm:$0x7]
          %v3935 = vstv %s3920
          %vm3936 = vcmp.eq.s32.totalorder %v3340, %v3935
          %vm3937 = vcmp.eq.s32.totalorder %v3341, %v3935
          %vm3938 = vcmp.eq.s32.totalorder %v3342, %v3935
          %v3940 = vperm.slane %v3925, 0
          %v3941 = vperm.slane %v3925, 1
          %v3942 = vperm.slane %v3925, 2
          %v3946 = vsel %vm3936, %v3940, 0.0
          %v3947 = vsel %vm3937, %v3941, 0.0
          %v3948 = vsel %vm3938, %v3942, 0.0
          %vm3949 = vcmask 1040384
          %v3950 = vsel %vm3949, %v3946, -inf
          %v3951 = vsel %vm3949, %v3947, -inf
          %v3952 = vsel %vm3949, %v3948, -inf
          %v3953 = vmax.f32 %v3950, %v3951
          %v3954 = vmax.f32 %v3953, %v3952
          %3955 = vmax.xlane.f32.xlu0 %v3954
          %v3956 = vpop.xlane.xlu0 %3955
          %v3958 = vperm.slane %v3934, 0
          %v3959 = vperm.slane %v3934, 1
          %v3960 = vperm.slane %v3934, 2
          %v3964 = vmul.f32 %v3956, %v3958
          %v3965 = vmul.f32 %v3956, %v3959
          %v3966 = vmul.f32 %v3956, %v3960
          %v3967 = vsub.f32 1.0, %v3964
          %v3968 = vsub.f32 1.0, %v3965
          %v3969 = vsub.f32 1.0, %v3966
          %v3973 = vrot.slane %v3968, 7
          %v3974 = vrot.slane %v3969, 6
          %v3975 = vsel %vm3949, %v3967, %v3973
          %vm3976 = vcmask 1041408
          %v3977 = vsel %vm3976, %v3975, %v3974
          %v3979 = vmul.f32 %v3925, %v3977
        $region33: #{tpu_custom_call.1} parent=27 // loop_footer
          %s3922 = sadd.s32 %s3920, 1
        $region34: #{tpu_custom_call.1} parent=27 // loop_footer_branch
          %3919 = sbr.rel target = $region30
        $region35: #{tpu_custom_call.1} parent=27 // loop_exit
          _
        %v3980 = vlaneseq
        %vm3981 = vcmp.ge.s32.totalorder %v3980, 0
        %vm3982 = vcmp.lt.s32.totalorder %v3980, 384
        %vm3983 = vmand %vm3981, %vm3982
        %3984 = vst.msk [vmem:[%s160] sm:$0x7] %vm3983, %v3925
        %s3985 = sand.u32 %s85, 1
        %s3986 = scalar_lea.sflag [#allocation6], %s3985
        %s3987 = sand.u32 %s85, 1
        %s3988 = smul.addr %s3987, 3
        %s3989 = scalar_lea.vmem [#allocation5], %s3988
        // Predicated region
        $region36: #{tpu_custom_call.1} parent=27 // pred_check
          %p3990 = pneg %p95
        $region37: #{tpu_custom_call.1} parent=27 // pred_check_branch
          %3992 = sbr.rel (%p3990) target = $region39
        $region38: #{tpu_custom_call.1} parent=27 // pred_region
          %3994 = vsyncadd %s3986, 0
          %s3995 = smul.addr %s25, 3
          %s3996 = scalar_lea.hbm %s3, %s3995
          %s3998 = sshll.u32 %s3989, 4
          %s3999 = int_to_ptr.vmem [resolvable:$true] %s3998
          %s4000 = sshll.u32 %s3996, 4
          %s4001 = int_to_ptr.hbm [resolvable:$true] %s4000
          %4003 = dma.vmem_to_hbm [thread:$0]  %s3999, 48, %s4001, %s3986
        $region39: #{tpu_custom_call.1} parent=27 // pred_fallthru
          _
      $region28: #{tpu_custom_call.1} parent=5 // pred_fallthru
        _
      %p4004 = scmp.le.s32.totalorder 2, %s20
      // Predicated region
      $region40: #{tpu_custom_call.1} parent=5 // pred_check
        %p4005 = pneg %p4004
      $region41: #{tpu_custom_call.1} parent=5 // pred_check_branch
        %4007 = sbr.rel (%p4005) target = $region43
      $region42: #{tpu_custom_call.1} parent=5 // pred_region
        %s4008 = ssub.s32 %s20, 2
        // Predicated region
        $region44: #{tpu_custom_call.1} parent=42 // pred_check
          %p4009 = pneg %p101
        $region45: #{tpu_custom_call.1} parent=42 // pred_check_branch
          %4011 = sbr.rel (%p4009) target = $region47
        $region46: #{tpu_custom_call.1} parent=42 // pred_region
          %s4012 = sand.u32 %s86, 1
          %s4013 = scalar_lea.sflag [#allocation6], %s4012
          %s4014 = sand.u32 %s86, 1
          %s4015 = smul.addr %s4014, 3
          %s4016 = scalar_lea.vmem [#allocation5], %s4015
          %4018 = dma.done %s4013, 48
        $region47: #{tpu_custom_call.1} parent=42 // pred_fallthru
          _
      $region43: #{tpu_custom_call.1} parent=5 // pred_fallthru
        _
    $region6: #{tpu_custom_call.1} parent=1 // loop_footer
      %s24 = sadd.s32 1, %s20
    $region7: #{tpu_custom_call.1} parent=1 // loop_footer_branch
      %19 = sbr.rel target = $region3
    $region8: #{tpu_custom_call.1} parent=1 // loop_exit
      _
    %4019 = vsyncpa [#allocation6], 1
    %s4020 = scalar_lea.sflag [#allocation6], 1
    %4021 = vsyncpa %s4020, 1

</llo_original>
